<compile_context>
chip_gen: v6e
topology: v6e:2x2x1
jax: 0.10.0
libtpu: 0.0.40
codegen_flags: <defaults>
</compile_context>

<pallas_src>
import jax
import jax.numpy as jnp
import numpy as np
from jax.experimental import pallas as pl
from jax.experimental.pallas import tpu as pltpu


def _round_up(x, m):
    return ((x + m - 1) // m) * m


# ----------------------------------------------------------------------------
# Pallas kernel: fused (input-projection + LSTM recurrence) over time chunks
#   grid = (num_directions, num_batch_blocks, num_time_chunks)
#     axis 0 ("parallel")  : direction (independent)
#     axis 1 ("parallel")  : batch block (independent)
#     axis 2 ("arbitrary") : time chunks (sequential recurrence, carry in h/c)
# ----------------------------------------------------------------------------
def _make_lstm_chunk_kernel(TC: int, BB: int, H: int, D: int, unroll: int):
    GH = 4 * H

    def kernel(len_ref, x_ref, wih_ref, whh_ref, b_ref,
               y_ref, h_ref, c_ref, gx_ref):
        d = pl.program_id(0)
        c = pl.program_id(2)
        n_chunks = pl.num_programs(2)

        @pl.when(c == 0)
        def _():
            # encoder_state=None -> zero initial (h, c) for this direction/block
            h_ref[...] = jnp.zeros_like(h_ref)
            c_ref[...] = jnp.zeros_like(c_ref)

        # ---- fused input projection for the whole chunk: one MXU-friendly
        # ---- (TC*BB, D) @ (D, 4H) matmul, accumulated in f32, bias added once.
        x2d = x_ref[...].reshape(TC * BB, D)                    # bf16
        gx = jnp.dot(x2d, wih_ref[0],
                     preferred_element_type=jnp.float32)        # (TC*BB, GH) f32
        gx_ref[...] = (gx + b_ref[0]).reshape(TC, BB, GH)

        whh = whh_ref[0]       # (H, GH) bf16, resident recurrent weights
        lens = len_ref[...]    # (BB, 1)  int32 sequence lengths

        # Direction handling: the index_map already hands chunks in reverse
        # order for d == 1; within the chunk only the affine step index
        # li = base + sign*s differs (per-chunk scalars, no per-step selects).
        chunk_blk = jnp.where(d == 0, c, n_chunks - 1 - c)
        t0 = chunk_blk * TC
        base = jnp.where(d == 0, 0, TC - 1)
        sign = jnp.where(d == 0, 1, -1)

        def step(s, carry):
            h, cell = carry                                     # f32 (BB, H)
            li = base + sign * s
            t = t0 + li
            gates = gx_ref[li] + jnp.dot(h.astype(whh.dtype), whh,
                                         preferred_element_type=jnp.float32)
            i = jax.nn.sigmoid(gates[:, 0 * H:1 * H])
            f = jax.nn.sigmoid(gates[:, 1 * H:2 * H])
            g = jnp.tanh(gates[:, 2 * H:3 * H])
            o = jax.nn.sigmoid(gates[:, 3 * H:4 * H])
            cell_new = f * cell + i * g
            h_new = o * jnp.tanh(cell_new)
            mask = t < lens                                     # packed-seq mask
            y_ref[li] = jnp.where(mask, h_new, 0.0).astype(y_ref.dtype)
            return (jnp.where(mask, h_new, h), jnp.where(mask, cell_new, cell))

        hN, cN = jax.lax.fori_loop(0, TC, step, (h_ref[0], c_ref[0]),
                                   unroll=unroll)
        h_ref[0] = hN
        c_ref[0] = cN

    return kernel


def lstm_layer_pallas(x, lengths_col, wih_t, whh_t, bias, *, TC,
                      batch_block=None, unroll=8,
                      vmem_limit_bytes=32 * 1024 * 1024):
    """One (possibly bidirectional) LSTM layer with fused input projection.

    x           : (T_pad, B_pad, D) bf16 layer input
    lengths_col : (B_pad, 1) int32
    wih_t       : (num_dir, D, 4*H_pad) bf16
    whh_t       : (num_dir, H_pad, 4*H_pad) bf16
    bias        : (num_dir, 1, 4*H_pad) f32 (b_ih + b_hh)
    returns y (T_pad, B_pad, num_dir*H_pad) bf16, h_n, c_n (num_dir, B_pad, H_pad) f32
    """
    T_pad, B_pad, D = x.shape
    num_dir, H, GH = whh_t.shape
    assert GH == 4 * H
    assert T_pad % TC == 0
    n_chunks = T_pad // TC

    BB = B_pad if batch_block is None else batch_block
    assert BB % 8 == 0 and B_pad % BB == 0
    n_b = B_pad // BB

    def tblk(d, c):
        # forward (d=0): chunk c ; backward (d=1): chunk n_chunks-1-c
        return c + d * (n_chunks - 1 - 2 * c)

    kernel = _make_lstm_chunk_kernel(TC, BB, H, D, min(unroll, TC))

    return pl.pallas_call(
        kernel,
        out_shape=(
            jax.ShapeDtypeStruct((T_pad, B_pad, num_dir * H), x.dtype),   # y
            jax.ShapeDtypeStruct((num_dir, B_pad, H), jnp.float32),       # h_n
            jax.ShapeDtypeStruct((num_dir, B_pad, H), jnp.float32),       # c_n
        ),
        grid=(num_dir, n_b, n_chunks),
        in_specs=[
            pl.BlockSpec((BB, 1), lambda d, b, c: (b, 0)),                 # lengths
            pl.BlockSpec((TC, BB, D), lambda d, b, c: (tblk(d, c), b, 0)),  # x
            pl.BlockSpec((1, D, GH), lambda d, b, c: (d, 0, 0)),            # W_ih^T
            pl.BlockSpec((1, H, GH), lambda d, b, c: (d, 0, 0)),            # W_hh^T
            pl.BlockSpec((1, 1, GH), lambda d, b, c: (d, 0, 0)),            # bias
        ],
        out_specs=(
            pl.BlockSpec((TC, BB, H), lambda d, b, c: (tblk(d, c), b, d)),  # y
            pl.BlockSpec((1, BB, H), lambda d, b, c: (d, b, 0)),            # h_n
            pl.BlockSpec((1, BB, H), lambda d, b, c: (d, b, 0)),            # c_n
        ),
        scratch_shapes=[pltpu.VMEM((TC, BB, GH), jnp.float32)],             # gates
        compiler_params=pltpu.CompilerParams(
            dimension_semantics=("parallel", "parallel", "arbitrary"),
            vmem_limit_bytes=vmem_limit_bytes),
    )(lengths_col, x, wih_t, whh_t, bias)


def _pick_time_chunk(B_pad, H_pad, D_pad, stream_bytes, budget_bytes):
    """Largest time-chunk whose per-chunk VMEM residency fits the budget."""
    GH = 4 * H_pad
    for tc in (256, 128, 64, 32, 16, 8):
        resident = (
            2 * tc * B_pad * D_pad * stream_bytes        # x block (double-buffered)
            + 2 * tc * B_pad * H_pad * stream_bytes      # y block (double-buffered)
            + tc * B_pad * GH * 4                        # f32 gate scratch
            + 2 * (D_pad + H_pad + 1) * GH * stream_bytes  # W_ih + W_hh + bias (db)
            + 2 * 2 * B_pad * H_pad * 4                  # resident h/c carries
        )
        if resident <= budget_bytes:
            return tc
    return 8


# ----------------------------------------------------------------------------
# Parameter padding helpers (H -> H_pad, E -> E_pad multiples of 128)
# Zero padding keeps padded hidden cells exactly zero through the recurrence,
# so results match the unpadded math.
# ----------------------------------------------------------------------------
def _pad_gate_cols(w, H, H_pad):
    """Pad last dim from 4*H to 4*H_pad, padding each i,f,g,o block separately
    so gate slices land on lane-tile boundaries."""
    if H_pad == H:
        return w
    parts = jnp.split(w, 4, axis=-1)
    pad = [(0, 0)] * (w.ndim - 1) + [(0, H_pad - H)]
    return jnp.concatenate([jnp.pad(p, pad) for p in parts], axis=-1)


def _pad_hidden_rows(w_t, num_dir, H, H_pad):
    """Input-projection weight whose rows index the previous layer's
    concatenated [fwd|bwd] hidden state: (num_dir*H, G) -> (num_dir*H_pad, G)."""
    if H_pad == H:
        return w_t
    G = w_t.shape[-1]
    out = jnp.zeros((num_dir * H_pad, G), w_t.dtype)
    for d in range(num_dir):
        out = out.at[d * H_pad:d * H_pad + H].set(w_t[d * H:(d + 1) * H])
    return out


def prepare_pallas_params(params, *, num_layers, bidirectional,
                          stream_dtype=jnp.bfloat16):
    num_dir = 2 if bidirectional else 1
    H = params["lstm"][0][0]["w_hh_t"].shape[0]
    H_pad = _round_up(H, 128)
    E = params["embedding"].shape[1]
    E_pad = _round_up(E, 128)          # keep the fused matmul's K lane-aligned
    out = {"embedding": params["embedding"], "H": H, "H_pad": H_pad,
           "E_pad": E_pad, "num_dir": num_dir, "lstm": []}
    for layer in range(num_layers):
        wih, whh, b = [], [], []
        for d in range(num_dir):
            p = params["lstm"][layer][d]
            w_ih_t = p["w_ih_t"]                          # (in_dim, 4H)
            if layer == 0:
                w_ih_t = jnp.pad(w_ih_t, ((0, E_pad - E), (0, 0)))
            else:
                w_ih_t = _pad_hidden_rows(w_ih_t, num_dir, H, H_pad)
            wih.append(_pad_gate_cols(w_ih_t, H, H_pad))
            w_hh_t = p["w_hh_t"]                          # (H, 4H)
            if H_pad != H:
                w_hh_t = jnp.pad(w_hh_t, ((0, H_pad - H), (0, 0)))
            whh.append(_pad_gate_cols(w_hh_t, H, H_pad))
            b.append(_pad_gate_cols(p["b"], H, H_pad))    # (1, 4*H_pad)
        out["lstm"].append({
            "wih_t": jnp.stack(wih).astype(stream_dtype),   # (nd, D_pad, 4H_pad)
            "whh_t": jnp.stack(whh).astype(stream_dtype),   # (nd, H_pad, 4H_pad)
            "b": jnp.stack(b).astype(jnp.float32)})         # (nd, 1, 4H_pad)
    return out


# ----------------------------------------------------------------------------
# RNNEncoder forward (Pallas path)
# ----------------------------------------------------------------------------
def rnn_encoder_forward_pallas(src, lengths, pparams, *, num_layers,
                               bidirectional, stream_dtype=jnp.bfloat16,
                               vmem_budget_bytes=24 << 20,
                               vmem_limit_bytes=32 * 1024 * 1024,
                               batch_block=None, unroll=8):
    num_dir = pparams["num_dir"]
    H, H_pad, E_pad = pparams["H"], pparams["H_pad"], pparams["E_pad"]

    emb = jnp.take(pparams["embedding"], src, axis=0)       # (T, B, E) f32
    T, B, E = emb.shape
    B_pad = _round_up(B, 8)

    # Time-chunk size from a per-chunk VMEM budget (covers v7x 64 MiB physical
    # and v5e's 16 MiB scoped default; limit raised explicitly below).
    stream_bytes = jnp.dtype(stream_dtype).itemsize
    D_max = max(E_pad, num_dir * H_pad)
    TC = _pick_time_chunk(B_pad, H_pad, D_max, stream_bytes, vmem_budget_bytes)
    TC = min(TC, _round_up(T, 8))
    T_pad = _round_up(T, TC)

    x = (jnp.zeros((T_pad, B_pad, E_pad), stream_dtype)
         .at[:T, :B, :E].set(emb.astype(stream_dtype)))
    lengths_col = (jnp.zeros((B_pad, 1), jnp.int32)
                   .at[:B, 0].set(lengths.astype(jnp.int32)))

    hs, cs = [], []
    for layer in range(num_layers):
        lp = pparams["lstm"][layer]
        y, h_n, c_n = lstm_layer_pallas(
            x, lengths_col, lp["wih_t"], lp["whh_t"], lp["b"],
            TC=TC, batch_block=batch_block, unroll=unroll,
            vmem_limit_bytes=vmem_limit_bytes)
        hs.append(h_n)
        cs.append(c_n)
        x = y             # (T_pad, B_pad, num_dir*H_pad) bf16, lane-dense
        # TODO(synk): nn.LSTM inter-layer dropout is train-only; eval (no
        # dropout) semantics implemented here.

    memory_bank = jnp.concatenate(
        [x[:T, :B, d * H_pad:d * H_pad + H] for d in range(num_dir)],
        axis=-1).astype(jnp.float32)
    h_final = jnp.stack(hs, 0)[:, :, :B, :H].reshape(num_layers * num_dir, B, H)
    c_final = jnp.stack(cs, 0)[:, :, :B, :H].reshape(num_layers * num_dir, B, H)
    return (h_final, c_final), memory_bank


# ----------------------------------------------------------------------------
# Pure-JAX f32 reference (same math, unpadded) for correctness check
# ----------------------------------------------------------------------------
def ref_lstm_direction(x, lengths, w_ih_t, w_hh_t, bias, reverse):
    T, B, _ = x.shape
    H = w_hh_t.shape[0]
    ts = jnp.arange(T)
    if reverse:
        ts = ts[::-1]

    def step(carry, t):
        h, c = carry
        gates = x[t] @ w_ih_t + h @ w_hh_t + bias
        i = jax.nn.sigmoid(gates[:, :H])
        f = jax.nn.sigmoid(gates[:, H:2 * H])
        g = jnp.tanh(gates[:, 2 * H:3 * H])
        o = jax.nn.sigmoid(gates[:, 3 * H:])
        c_new = f * c + i * g
        h_new = o * jnp.tanh(c_new)
        mask = (t < lengths)[:, None]
        return ((jnp.where(mask, h_new, h), jnp.where(mask, c_new, c)),
                jnp.where(mask, h_new, 0.0))

    init = (jnp.zeros((B, H), jnp.float32), jnp.zeros((B, H), jnp.float32))
    (h_n, c_n), ys = jax.lax.scan(step, init, ts)
    y = jnp.zeros((T, B, H), jnp.float32).at[ts].set(ys)
    return y, h_n, c_n


def rnn_encoder_forward_ref(src, lengths, params, *, num_layers, bidirectional):
    emb = jnp.take(params["embedding"], src, axis=0)         # (T, B, E)
    lengths = lengths.astype(jnp.int32)

    x = emb
    hs, cs = [], []
    dir_flags = (False, True) if bidirectional else (False,)
    for layer in range(num_layers):
        outs = []
        for d, rev in enumerate(dir_flags):
            p = params["lstm"][layer][d]
            y, h, c = ref_lstm_direction(x, lengths, p["w_ih_t"], p["w_hh_t"],
                                         p["b"], rev)
            outs.append(y)
            hs.append(h)
            cs.append(c)
        x = jnp.concatenate(outs, axis=-1)
    return (jnp.stack(hs, axis=0), jnp.stack(cs, axis=0)), x


# ----------------------------------------------------------------------------
# Deterministic parameter init (shapes follow nn.Embedding + nn.LSTM)
# ----------------------------------------------------------------------------
def init_params(key, vocab, emb_dim, hidden_size, num_layers, bidirectional):
    num_dir = 2 if bidirectional else 1
    H = hidden_size // num_dir                # per-direction hidden
    bound = 1.0 / (H ** 0.5)

    key, k_emb = jax.random.split(key)
    params = {"embedding": 0.1 * jax.random.normal(k_emb, (vocab, emb_dim),
                                                   jnp.float32),
              "lstm": []}
    for layer in range(num_layers):
        in_dim = emb_dim if layer == 0 else H * num_dir
        dirs = []
        for _ in range(num_dir):
            key, k1, k2, k3, k4 = jax.random.split(key, 5)
            w_ih = jax.random.uniform(k1, (4 * H, in_dim), jnp.float32,
                                      -bound, bound)
            w_hh = jax.random.uniform(k2, (4 * H, H), jnp.float32, -bound, bound)
            b_ih = jax.random.uniform(k3, (4 * H,), jnp.float32, -bound, bound)
            b_hh = jax.random.uniform(k4, (4 * H,), jnp.float32, -bound, bound)
            dirs.append({"w_ih_t": w_ih.T,                    # (in_dim, 4H)
                         "w_hh_t": w_hh.T,                    # (H, 4H)
                         "b": (b_ih + b_hh).reshape(1, 4 * H)})
        params["lstm"].append(dirs)
    return params


# ----------------------------------------------------------------------------
if __name__ == "__main__":
    T, B = 8, 4
    vocab, emb_dim = 32, 16
    hidden_size, num_layers, bidirectional = 32, 2, True

    key = jax.random.PRNGKey(0)
    key, k_src = jax.random.split(key)
    src = jax.random.randint(k_src, (T, B), 0, vocab, dtype=jnp.int32)  # (T, B)
    lengths = jnp.array([8, 6, 5, 3], dtype=jnp.int32)  # sorted desc (pack req.)

    params = init_params(key, vocab, emb_dim, hidden_size, num_layers,
                         bidirectional)
    pparams = prepare_pallas_params(params, num_layers=num_layers,
                                    bidirectional=bidirectional)

    (h_n, c_n), memory_bank = rnn_encoder_forward_pallas(
        src, lengths, pparams, num_layers=num_layers,
        bidirectional=bidirectional)
    jax.block_until_ready((h_n, c_n, memory_bank))

    # Correctness check vs pure-JAX f32 reference.  Tolerance reflects the
    # bf16 HBM/MXU streams (state & activation math stay f32 in the kernel).
    (h_ref, c_ref), mb_ref = rnn_encoder_forward_ref(
        src, lengths, params, num_layers=num_layers,
        bidirectional=bidirectional)
    np.testing.assert_allclose(np.asarray(memory_bank), np.asarray(mb_ref),
                               rtol=2e-2, atol=2e-2)
    np.testing.assert_allclose(np.asarray(h_n), np.asarray(h_ref),
                               rtol=2e-2, atol=2e-2)
    np.testing.assert_allclose(np.asarray(c_n), np.asarray(c_ref),
                               rtol=2e-2, atol=2e-2)

    assert memory_bank.shape == (T, B, hidden_size)
    assert h_n.shape == (num_layers * 2, B, hidden_size // 2)
    assert c_n.shape == (num_layers * 2, B, hidden_size // 2)

    print("KERNEL_OK")
</pallas_src>

<mosaic_0001>
module attributes {stable_mosaic.version = 11 : i64} {
  func.func @kernel(%arg0: i32, %arg1: i32, %arg2: i32, %arg3: memref<8x1xi32, #tpu.memory_space<vmem>>, %arg4: memref<8x8x128xbf16, #tpu.memory_space<vmem>>, %arg5: memref<1x128x512xbf16, #tpu.memory_space<vmem>>, %arg6: memref<1x128x512xbf16, #tpu.memory_space<vmem>>, %arg7: memref<1x1x512xf32, #tpu.memory_space<vmem>>, %arg8: memref<8x8x128xbf16, #tpu.memory_space<vmem>>, %arg9: memref<1x8x128xf32, #tpu.memory_space<vmem>>, %arg10: memref<1x8x128xf32, #tpu.memory_space<vmem>>, %arg11: memref<8x8x512xf32, #tpu.memory_space<vmem>>) attributes {dimension_semantics = [#tpu.dimension_semantics<parallel>, #tpu.dimension_semantics<parallel>, #tpu.dimension_semantics<arbitrary>], iteration_bounds = array<i64: 2, 1, 1>, scalar_prefetch = 0 : i64, scratch_operands = 1 : i64, tpu.core_type = #tpu.core_type<tc>, window_params = [{transform_indices = @transform_0, window_bounds = array<i64: 8, 1>}, {transform_indices = @transform_1, window_bounds = array<i64: 8, 8, 128>}, {transform_indices = @transform_2, window_bounds = array<i64: 1, 128, 512>}, {transform_indices = @transform_3, window_bounds = array<i64: 1, 128, 512>}, {transform_indices = @transform_4, window_bounds = array<i64: 1, 1, 512>}, {transform_indices = @transform_5, window_bounds = array<i64: 8, 8, 128>}, {transform_indices = @transform_6, window_bounds = array<i64: 1, 8, 128>}, {transform_indices = @transform_7, window_bounds = array<i64: 1, 8, 128>}]} {
    %c0_i32 = arith.constant 0 : i32
    %0 = arith.cmpi eq, %arg2, %c0_i32 : i32
    %1 = arith.extui %0 : i1 to i32
    %c0_i32_0 = arith.constant 0 : i32
    %2 = arith.cmpi ne, %1, %c0_i32_0 : i32
    scf.if %2 {
      %cst_110 = arith.constant 0.000000e+00 : f32
      %443 = vector.broadcast %cst_110 : f32 to vector<1x8x128xf32>
      %c0_111 = arith.constant 0 : index
      %c0_112 = arith.constant 0 : index
      %c0_113 = arith.constant 0 : index
      %444 = vector.load %arg9[%c0_111, %c0_112, %c0_113] : memref<1x8x128xf32, #tpu.memory_space<vmem>>, vector<1x8x128xf32>
      tpu.vector_store %arg9[%c0_111, %c0_112, %c0_113], %443 {strides = array<i32>} : memref<1x8x128xf32, #tpu.memory_space<vmem>>, vector<1x8x128xf32>,
      %cst_114 = arith.constant 0.000000e+00 : f32
      %445 = vector.broadcast %cst_114 : f32 to vector<1x8x128xf32>
      %c0_115 = arith.constant 0 : index
      %c0_116 = arith.constant 0 : index
      %c0_117 = arith.constant 0 : index
      %446 = vector.load %arg10[%c0_115, %c0_116, %c0_117] : memref<1x8x128xf32, #tpu.memory_space<vmem>>, vector<1x8x128xf32>
      tpu.vector_store %arg10[%c0_115, %c0_116, %c0_117], %445 {strides = array<i32>} : memref<1x8x128xf32, #tpu.memory_space<vmem>>, vector<1x8x128xf32>,
    } else {
    }
    %c0 = arith.constant 0 : index
    %c0_1 = arith.constant 0 : index
    %c0_2 = arith.constant 0 : index
    %3 = vector.load %arg4[%c0, %c0_1, %c0_2] : memref<8x8x128xbf16, #tpu.memory_space<vmem>>, vector<8x8x128xbf16>
    %4 = vector.shape_cast %3 : vector<8x8x128xbf16> to vector<64x128xbf16>
    %c0_3 = arith.constant 0 : index
    %c0_4 = arith.constant 0 : index
    %c0_5 = arith.constant 0 : index
    %5 = vector.load %arg5[%c0_3, %c0_4, %c0_5] : memref<1x128x512xbf16, #tpu.memory_space<vmem>>, vector<1x128x512xbf16>
    %6 = vector.shape_cast %5 : vector<1x128x512xbf16> to vector<128x512xbf16>
    %cst = arith.constant dense<0.000000e+00> : vector<64x512xf32>
    %7 = tpu.matmul %4, %6, %cst {dimension_numbers = #tpu.dot_dimension_numbers<[1], [0], [0], [1], [0, 0, 1, 1], [], []>} : vector<64x128xbf16>, vector<128x512xbf16>, vector<64x512xf32> -> vector<64x512xf32>
    %c0_6 = arith.constant 0 : index
    %c0_7 = arith.constant 0 : index
    %c0_8 = arith.constant 0 : index
    %8 = vector.load %arg7[%c0_6, %c0_7, %c0_8] : memref<1x1x512xf32, #tpu.memory_space<vmem>>, vector<1x1x512xf32>
    %9 = vector.shape_cast %8 : vector<1x1x512xf32> to vector<1x512xf32>
    %10 = vector.broadcast %9 : vector<1x512xf32> to vector<64x512xf32>
    %11 = arith.addf %7, %10 : vector<64x512xf32>
    %12 = vector.shape_cast %11 : vector<64x512xf32> to vector<8x8x512xf32>
    %c0_9 = arith.constant 0 : index
    %c0_10 = arith.constant 0 : index
    %c0_11 = arith.constant 0 : index
    %13 = vector.load %arg11[%c0_9, %c0_10, %c0_11] : memref<8x8x512xf32, #tpu.memory_space<vmem>>, vector<8x8x512xf32>
    tpu.vector_store %arg11[%c0_9, %c0_10, %c0_11], %12 {strides = array<i32>} : memref<8x8x512xf32, #tpu.memory_space<vmem>>, vector<8x8x512xf32>,
    %c0_12 = arith.constant 0 : index
    %c0_13 = arith.constant 0 : index
    %c0_14 = arith.constant 0 : index
    %14 = vector.load %arg6[%c0_12, %c0_13, %c0_14] : memref<1x128x512xbf16, #tpu.memory_space<vmem>>, vector<1x128x512xbf16>
    %15 = vector.shape_cast %14 : vector<1x128x512xbf16> to vector<128x512xbf16>
    %c0_15 = arith.constant 0 : index
    %c0_16 = arith.constant 0 : index
    %16 = vector.load %arg3[%c0_15, %c0_16] : memref<8x1xi32, #tpu.memory_space<vmem>>, vector<8x1xi32>
    %c0_i32_17 = arith.constant 0 : i32
    %17 = arith.cmpi eq, %arg0, %c0_i32_17 : i32
    %c0_i32_18 = arith.constant 0 : i32
    %18 = arith.subi %c0_i32_18, %arg2 : i32
    %19 = arith.select %17, %arg2, %18 : i32
    %c8_i32 = arith.constant 8 : i32
    %20 = arith.muli %19, %c8_i32 : i32
    %c0_i32_19 = arith.constant 0 : i32
    %21 = arith.cmpi eq, %arg0, %c0_i32_19 : i32
    %c0_i32_20 = arith.constant 0 : i32
    %c7_i32 = arith.constant 7 : i32
    %22 = arith.select %21, %c0_i32_20, %c7_i32 : i32
    %c0_i32_21 = arith.constant 0 : i32
    %23 = arith.cmpi eq, %arg0, %c0_i32_21 : i32
    %c1_i32 = arith.constant 1 : i32
    %c-1_i32 = arith.constant -1 : i32
    %24 = arith.select %23, %c1_i32, %c-1_i32 : i32
    %c0_22 = arith.constant 0 : index
    %c0_23 = arith.constant 0 : index
    %c0_24 = arith.constant 0 : index
    %25 = vector.load %arg9[%c0_22, %c0_23, %c0_24] : memref<1x8x128xf32, #tpu.memory_space<vmem>>, vector<1x8x128xf32>
    %26 = vector.shape_cast %25 : vector<1x8x128xf32> to vector<8x128xf32>
    %c0_25 = arith.constant 0 : index
    %c0_26 = arith.constant 0 : index
    %c0_27 = arith.constant 0 : index
    %27 = vector.load %arg10[%c0_25, %c0_26, %c0_27] : memref<1x8x128xf32, #tpu.memory_space<vmem>>, vector<1x8x128xf32>
    %28 = vector.shape_cast %27 : vector<1x8x128xf32> to vector<8x128xf32>
    %c0_i32_28 = arith.constant 0 : i32
    %29 = arith.muli %24, %c0_i32_28 : i32
    %30 = arith.addi %22, %29 : i32
    %31 = arith.addi %20, %30 : i32
    %32 = arith.index_cast %30 : i32 to index
    %c0_29 = arith.constant 0 : index
    %c0_30 = arith.constant 0 : index
    %33 = vector.load %arg11[%32, %c0_29, %c0_30] : memref<8x8x512xf32, #tpu.memory_space<vmem>>, vector<1x8x512xf32>
    %34 = vector.shape_cast %33 : vector<1x8x512xf32> to vector<8x512xf32>
    %35 = arith.truncf %26 : vector<8x128xf32> to vector<8x128xbf16>
    %cst_31 = arith.constant dense<0.000000e+00> : vector<8x512xf32>
    %36 = tpu.matmul %35, %15, %cst_31 {dimension_numbers = #tpu.dot_dimension_numbers<[1], [0], [0], [1], [0, 0, 1, 1], [], []>} : vector<8x128xbf16>, vector<128x512xbf16>, vector<8x512xf32> -> vector<8x512xf32>
    %37 = arith.addf %34, %36 : vector<8x512xf32>
    %38 = vector.extract_strided_slice %37 {offsets = [0, 0], sizes = [8, 128], strides = [1, 1]} : vector<8x512xf32> to vector<8x128xf32>
    %39 = arith.negf %38 : vector<8x128xf32>
    %40 = math.exp %39 : vector<8x128xf32>
    %cst_32 = arith.constant 1.000000e+00 : f32
    %41 = vector.broadcast %cst_32 : f32 to vector<8x128xf32>
    %42 = arith.addf %41, %40 : vector<8x128xf32>
    %43 = arith.divf %41, %42 : vector<8x128xf32>
    %44 = vector.extract_strided_slice %37 {offsets = [0, 128], sizes = [8, 128], strides = [1, 1]} : vector<8x512xf32> to vector<8x128xf32>
    %45 = arith.negf %44 : vector<8x128xf32>
    %46 = math.exp %45 : vector<8x128xf32>
    %cst_33 = arith.constant 1.000000e+00 : f32
    %47 = vector.broadcast %cst_33 : f32 to vector<8x128xf32>
    %48 = arith.addf %47, %46 : vector<8x128xf32>
    %49 = arith.divf %47, %48 : vector<8x128xf32>
    %50 = vector.extract_strided_slice %37 {offsets = [0, 256], sizes = [8, 128], strides = [1, 1]} : vector<8x512xf32> to vector<8x128xf32>
    %51 = math.tanh %50 : vector<8x128xf32>
    %52 = vector.extract_strided_slice %37 {offsets = [0, 384], sizes = [8, 128], strides = [1, 1]} : vector<8x512xf32> to vector<8x128xf32>
    %53 = arith.negf %52 : vector<8x128xf32>
    %54 = math.exp %53 : vector<8x128xf32>
    %cst_34 = arith.constant 1.000000e+00 : f32
    %55 = vector.broadcast %cst_34 : f32 to vector<8x128xf32>
    %56 = arith.addf %55, %54 : vector<8x128xf32>
    %57 = arith.divf %55, %56 : vector<8x128xf32>
    %58 = arith.mulf %49, %28 : vector<8x128xf32>
    %59 = arith.mulf %43, %51 : vector<8x128xf32>
    %60 = arith.addf %58, %59 : vector<8x128xf32>
    %61 = math.tanh %60 : vector<8x128xf32>
    %62 = arith.mulf %57, %61 : vector<8x128xf32>
    %63 = vector.broadcast %31 : i32 to vector<8x1xi32>
    %64 = arith.cmpi slt, %63, %16 : vector<8x1xi32>
    %cst_35 = arith.constant 0.000000e+00 : f32
    %65 = vector.shape_cast %64 : vector<8x1xi1> to vector<8x1xi1>
    %66 = vector.broadcast %65 : vector<8x1xi1> to vector<8x128xi1>
    %67 = vector.broadcast %cst_35 : f32 to vector<8x128xf32>
    %68 = arith.select %66, %62, %67 : vector<8x128xi1>, vector<8x128xf32>
    %69 = arith.truncf %68 : vector<8x128xf32> to vector<8x128xbf16>
    %70 = arith.index_cast %30 : i32 to index
    %c0_36 = arith.constant 0 : index
    %c0_37 = arith.constant 0 : index
    %71 = vector.load %arg8[%70, %c0_36, %c0_37] : memref<8x8x128xbf16, #tpu.memory_space<vmem>>, vector<1x8x128xbf16>
    %72 = vector.shape_cast %71 : vector<1x8x128xbf16> to vector<8x128xbf16>
    %73 = vector.shape_cast %69 : vector<8x128xbf16> to vector<1x8x128xbf16>
    tpu.vector_store %arg8[%70, %c0_36, %c0_37], %73 {strides = array<i32>} : memref<8x8x128xbf16, #tpu.memory_space<vmem>>, vector<1x8x128xbf16>,
    %74 = vector.shape_cast %64 : vector<8x1xi1> to vector<8x1xi1>
    %75 = vector.broadcast %74 : vector<8x1xi1> to vector<8x128xi1>
    %76 = arith.select %75, %62, %26 : vector<8x128xi1>, vector<8x128xf32>
    %77 = vector.shape_cast %64 : vector<8x1xi1> to vector<8x1xi1>
    %78 = vector.broadcast %77 : vector<8x1xi1> to vector<8x128xi1>
    %79 = arith.select %78, %60, %28 : vector<8x128xi1>, vector<8x128xf32>
    %c1_i32_38 = arith.constant 1 : i32
    %80 = arith.muli %24, %c1_i32_38 : i32
    %81 = arith.addi %22, %80 : i32
    %82 = arith.addi %20, %81 : i32
    %83 = arith.index_cast %81 : i32 to index
    %c0_39 = arith.constant 0 : index
    %c0_40 = arith.constant 0 : index
    %84 = vector.load %arg11[%83, %c0_39, %c0_40] : memref<8x8x512xf32, #tpu.memory_space<vmem>>, vector<1x8x512xf32>
    %85 = vector.shape_cast %84 : vector<1x8x512xf32> to vector<8x512xf32>
    %86 = arith.truncf %76 : vector<8x128xf32> to vector<8x128xbf16>
    %cst_41 = arith.constant dense<0.000000e+00> : vector<8x512xf32>
    %87 = tpu.matmul %86, %15, %cst_41 {dimension_numbers = #tpu.dot_dimension_numbers<[1], [0], [0], [1], [0, 0, 1, 1], [], []>} : vector<8x128xbf16>, vector<128x512xbf16>, vector<8x512xf32> -> vector<8x512xf32>
    %88 = arith.addf %85, %87 : vector<8x512xf32>
    %89 = vector.extract_strided_slice %88 {offsets = [0, 0], sizes = [8, 128], strides = [1, 1]} : vector<8x512xf32> to vector<8x128xf32>
    %90 = arith.negf %89 : vector<8x128xf32>
    %91 = math.exp %90 : vector<8x128xf32>
    %cst_42 = arith.constant 1.000000e+00 : f32
    %92 = vector.broadcast %cst_42 : f32 to vector<8x128xf32>
    %93 = arith.addf %92, %91 : vector<8x128xf32>
    %94 = arith.divf %92, %93 : vector<8x128xf32>
    %95 = vector.extract_strided_slice %88 {offsets = [0, 128], sizes = [8, 128], strides = [1, 1]} : vector<8x512xf32> to vector<8x128xf32>
    %96 = arith.negf %95 : vector<8x128xf32>
    %97 = math.exp %96 : vector<8x128xf32>
    %cst_43 = arith.constant 1.000000e+00 : f32
    %98 = vector.broadcast %cst_43 : f32 to vector<8x128xf32>
    %99 = arith.addf %98, %97 : vector<8x128xf32>
    %100 = arith.divf %98, %99 : vector<8x128xf32>
    %101 = vector.extract_strided_slice %88 {offsets = [0, 256], sizes = [8, 128], strides = [1, 1]} : vector<8x512xf32> to vector<8x128xf32>
    %102 = math.tanh %101 : vector<8x128xf32>
    %103 = vector.extract_strided_slice %88 {offsets = [0, 384], sizes = [8, 128], strides = [1, 1]} : vector<8x512xf32> to vector<8x128xf32>
    %104 = arith.negf %103 : vector<8x128xf32>
    %105 = math.exp %104 : vector<8x128xf32>
    %cst_44 = arith.constant 1.000000e+00 : f32
    %106 = vector.broadcast %cst_44 : f32 to vector<8x128xf32>
    %107 = arith.addf %106, %105 : vector<8x128xf32>
    %108 = arith.divf %106, %107 : vector<8x128xf32>
    %109 = arith.mulf %100, %79 : vector<8x128xf32>
    %110 = arith.mulf %94, %102 : vector<8x128xf32>
    %111 = arith.addf %109, %110 : vector<8x128xf32>
    %112 = math.tanh %111 : vector<8x128xf32>
    %113 = arith.mulf %108, %112 : vector<8x128xf32>
    %114 = vector.broadcast %82 : i32 to vector<8x1xi32>
    %115 = arith.cmpi slt, %114, %16 : vector<8x1xi32>
    %cst_45 = arith.constant 0.000000e+00 : f32
    %116 = vector.shape_cast %115 : vector<8x1xi1> to vector<8x1xi1>
    %117 = vector.broadcast %116 : vector<8x1xi1> to vector<8x128xi1>
    %118 = vector.broadcast %cst_45 : f32 to vector<8x128xf32>
    %119 = arith.select %117, %113, %118 : vector<8x128xi1>, vector<8x128xf32>
    %120 = arith.truncf %119 : vector<8x128xf32> to vector<8x128xbf16>
    %121 = arith.index_cast %81 : i32 to index
    %c0_46 = arith.constant 0 : index
    %c0_47 = arith.constant 0 : index
    %122 = vector.load %arg8[%121, %c0_46, %c0_47] : memref<8x8x128xbf16, #tpu.memory_space<vmem>>, vector<1x8x128xbf16>
    %123 = vector.shape_cast %122 : vector<1x8x128xbf16> to vector<8x128xbf16>
    %124 = vector.shape_cast %120 : vector<8x128xbf16> to vector<1x8x128xbf16>
    tpu.vector_store %arg8[%121, %c0_46, %c0_47], %124 {strides = array<i32>} : memref<8x8x128xbf16, #tpu.memory_space<vmem>>, vector<1x8x128xbf16>,
    %125 = vector.shape_cast %115 : vector<8x1xi1> to vector<8x1xi1>
    %126 = vector.broadcast %125 : vector<8x1xi1> to vector<8x128xi1>
    %127 = arith.select %126, %113, %76 : vector<8x128xi1>, vector<8x128xf32>
    %128 = vector.shape_cast %115 : vector<8x1xi1> to vector<8x1xi1>
    %129 = vector.broadcast %128 : vector<8x1xi1> to vector<8x128xi1>
    %130 = arith.select %129, %111, %79 : vector<8x128xi1>, vector<8x128xf32>
    %c2_i32 = arith.constant 2 : i32
    %131 = arith.muli %24, %c2_i32 : i32
    %132 = arith.addi %22, %131 : i32
    %133 = arith.addi %20, %132 : i32
    %134 = arith.index_cast %132 : i32 to index
    %c0_48 = arith.constant 0 : index
    %c0_49 = arith.constant 0 : index
    %135 = vector.load %arg11[%134, %c0_48, %c0_49] : memref<8x8x512xf32, #tpu.memory_space<vmem>>, vector<1x8x512xf32>
    %136 = vector.shape_cast %135 : vector<1x8x512xf32> to vector<8x512xf32>
    %137 = arith.truncf %127 : vector<8x128xf32> to vector<8x128xbf16>
    %cst_50 = arith.constant dense<0.000000e+00> : vector<8x512xf32>
    %138 = tpu.matmul %137, %15, %cst_50 {dimension_numbers = #tpu.dot_dimension_numbers<[1], [0], [0], [1], [0, 0, 1, 1], [], []>} : vector<8x128xbf16>, vector<128x512xbf16>, vector<8x512xf32> -> vector<8x512xf32>
    %139 = arith.addf %136, %138 : vector<8x512xf32>
    %140 = vector.extract_strided_slice %139 {offsets = [0, 0], sizes = [8, 128], strides = [1, 1]} : vector<8x512xf32> to vector<8x128xf32>
    %141 = arith.negf %140 : vector<8x128xf32>
    %142 = math.exp %141 : vector<8x128xf32>
    %cst_51 = arith.constant 1.000000e+00 : f32
    %143 = vector.broadcast %cst_51 : f32 to vector<8x128xf32>
    %144 = arith.addf %143, %142 : vector<8x128xf32>
    %145 = arith.divf %143, %144 : vector<8x128xf32>
    %146 = vector.extract_strided_slice %139 {offsets = [0, 128], sizes = [8, 128], strides = [1, 1]} : vector<8x512xf32> to vector<8x128xf32>
    %147 = arith.negf %146 : vector<8x128xf32>
    %148 = math.exp %147 : vector<8x128xf32>
    %cst_52 = arith.constant 1.000000e+00 : f32
    %149 = vector.broadcast %cst_52 : f32 to vector<8x128xf32>
    %150 = arith.addf %149, %148 : vector<8x128xf32>
    %151 = arith.divf %149, %150 : vector<8x128xf32>
    %152 = vector.extract_strided_slice %139 {offsets = [0, 256], sizes = [8, 128], strides = [1, 1]} : vector<8x512xf32> to vector<8x128xf32>
    %153 = math.tanh %152 : vector<8x128xf32>
    %154 = vector.extract_strided_slice %139 {offsets = [0, 384], sizes = [8, 128], strides = [1, 1]} : vector<8x512xf32> to vector<8x128xf32>
    %155 = arith.negf %154 : vector<8x128xf32>
    %156 = math.exp %155 : vector<8x128xf32>
    %cst_53 = arith.constant 1.000000e+00 : f32
    %157 = vector.broadcast %cst_53 : f32 to vector<8x128xf32>
    %158 = arith.addf %157, %156 : vector<8x128xf32>
    %159 = arith.divf %157, %158 : vector<8x128xf32>
    %160 = arith.mulf %151, %130 : vector<8x128xf32>
    %161 = arith.mulf %145, %153 : vector<8x128xf32>
    %162 = arith.addf %160, %161 : vector<8x128xf32>
    %163 = math.tanh %162 : vector<8x128xf32>
    %164 = arith.mulf %159, %163 : vector<8x128xf32>
    %165 = vector.broadcast %133 : i32 to vector<8x1xi32>
    %166 = arith.cmpi slt, %165, %16 : vector<8x1xi32>
    %cst_54 = arith.constant 0.000000e+00 : f32
    %167 = vector.shape_cast %166 : vector<8x1xi1> to vector<8x1xi1>
    %168 = vector.broadcast %167 : vector<8x1xi1> to vector<8x128xi1>
    %169 = vector.broadcast %cst_54 : f32 to vector<8x128xf32>
    %170 = arith.select %168, %164, %169 : vector<8x128xi1>, vector<8x128xf32>
    %171 = arith.truncf %170 : vector<8x128xf32> to vector<8x128xbf16>
    %172 = arith.index_cast %132 : i32 to index
    %c0_55 = arith.constant 0 : index
    %c0_56 = arith.constant 0 : index
    %173 = vector.load %arg8[%172, %c0_55, %c0_56] : memref<8x8x128xbf16, #tpu.memory_space<vmem>>, vector<1x8x128xbf16>
    %174 = vector.shape_cast %173 : vector<1x8x128xbf16> to vector<8x128xbf16>
    %175 = vector.shape_cast %171 : vector<8x128xbf16> to vector<1x8x128xbf16>
    tpu.vector_store %arg8[%172, %c0_55, %c0_56], %175 {strides = array<i32>} : memref<8x8x128xbf16, #tpu.memory_space<vmem>>, vector<1x8x128xbf16>,
    %176 = vector.shape_cast %166 : vector<8x1xi1> to vector<8x1xi1>
    %177 = vector.broadcast %176 : vector<8x1xi1> to vector<8x128xi1>
    %178 = arith.select %177, %164, %127 : vector<8x128xi1>, vector<8x128xf32>
    %179 = vector.shape_cast %166 : vector<8x1xi1> to vector<8x1xi1>
    %180 = vector.broadcast %179 : vector<8x1xi1> to vector<8x128xi1>
    %181 = arith.select %180, %162, %130 : vector<8x128xi1>, vector<8x128xf32>
    %c3_i32 = arith.constant 3 : i32
    %182 = arith.muli %24, %c3_i32 : i32
    %183 = arith.addi %22, %182 : i32
    %184 = arith.addi %20, %183 : i32
    %185 = arith.index_cast %183 : i32 to index
    %c0_57 = arith.constant 0 : index
    %c0_58 = arith.constant 0 : index
    %186 = vector.load %arg11[%185, %c0_57, %c0_58] : memref<8x8x512xf32, #tpu.memory_space<vmem>>, vector<1x8x512xf32>
    %187 = vector.shape_cast %186 : vector<1x8x512xf32> to vector<8x512xf32>
    %188 = arith.truncf %178 : vector<8x128xf32> to vector<8x128xbf16>
    %cst_59 = arith.constant dense<0.000000e+00> : vector<8x512xf32>
    %189 = tpu.matmul %188, %15, %cst_59 {dimension_numbers = #tpu.dot_dimension_numbers<[1], [0], [0], [1], [0, 0, 1, 1], [], []>} : vector<8x128xbf16>, vector<128x512xbf16>, vector<8x512xf32> -> vector<8x512xf32>
    %190 = arith.addf %187, %189 : vector<8x512xf32>
    %191 = vector.extract_strided_slice %190 {offsets = [0, 0], sizes = [8, 128], strides = [1, 1]} : vector<8x512xf32> to vector<8x128xf32>
    %192 = arith.negf %191 : vector<8x128xf32>
    %193 = math.exp %192 : vector<8x128xf32>
    %cst_60 = arith.constant 1.000000e+00 : f32
    %194 = vector.broadcast %cst_60 : f32 to vector<8x128xf32>
    %195 = arith.addf %194, %193 : vector<8x128xf32>
    %196 = arith.divf %194, %195 : vector<8x128xf32>
    %197 = vector.extract_strided_slice %190 {offsets = [0, 128], sizes = [8, 128], strides = [1, 1]} : vector<8x512xf32> to vector<8x128xf32>
    %198 = arith.negf %197 : vector<8x128xf32>
    %199 = math.exp %198 : vector<8x128xf32>
    %cst_61 = arith.constant 1.000000e+00 : f32
    %200 = vector.broadcast %cst_61 : f32 to vector<8x128xf32>
    %201 = arith.addf %200, %199 : vector<8x128xf32>
    %202 = arith.divf %200, %201 : vector<8x128xf32>
    %203 = vector.extract_strided_slice %190 {offsets = [0, 256], sizes = [8, 128], strides = [1, 1]} : vector<8x512xf32> to vector<8x128xf32>
    %204 = math.tanh %203 : vector<8x128xf32>
    %205 = vector.extract_strided_slice %190 {offsets = [0, 384], sizes = [8, 128], strides = [1, 1]} : vector<8x512xf32> to vector<8x128xf32>
    %206 = arith.negf %205 : vector<8x128xf32>
    %207 = math.exp %206 : vector<8x128xf32>
    %cst_62 = arith.constant 1.000000e+00 : f32
    %208 = vector.broadcast %cst_62 : f32 to vector<8x128xf32>
    %209 = arith.addf %208, %207 : vector<8x128xf32>
    %210 = arith.divf %208, %209 : vector<8x128xf32>
    %211 = arith.mulf %202, %181 : vector<8x128xf32>
    %212 = arith.mulf %196, %204 : vector<8x128xf32>
    %213 = arith.addf %211, %212 : vector<8x128xf32>
    %214 = math.tanh %213 : vector<8x128xf32>
    %215 = arith.mulf %210, %214 : vector<8x128xf32>
    %216 = vector.broadcast %184 : i32 to vector<8x1xi32>
    %217 = arith.cmpi slt, %216, %16 : vector<8x1xi32>
    %cst_63 = arith.constant 0.000000e+00 : f32
    %218 = vector.shape_cast %217 : vector<8x1xi1> to vector<8x1xi1>
    %219 = vector.broadcast %218 : vector<8x1xi1> to vector<8x128xi1>
    %220 = vector.broadcast %cst_63 : f32 to vector<8x128xf32>
    %221 = arith.select %219, %215, %220 : vector<8x128xi1>, vector<8x128xf32>
    %222 = arith.truncf %221 : vector<8x128xf32> to vector<8x128xbf16>
    %223 = arith.index_cast %183 : i32 to index
    %c0_64 = arith.constant 0 : index
    %c0_65 = arith.constant 0 : index
    %224 = vector.load %arg8[%223, %c0_64, %c0_65] : memref<8x8x128xbf16, #tpu.memory_space<vmem>>, vector<1x8x128xbf16>
    %225 = vector.shape_cast %224 : vector<1x8x128xbf16> to vector<8x128xbf16>
    %226 = vector.shape_cast %222 : vector<8x128xbf16> to vector<1x8x128xbf16>
    tpu.vector_store %arg8[%223, %c0_64, %c0_65], %226 {strides = array<i32>} : memref<8x8x128xbf16, #tpu.memory_space<vmem>>, vector<1x8x128xbf16>,
    %227 = vector.shape_cast %217 : vector<8x1xi1> to vector<8x1xi1>
    %228 = vector.broadcast %227 : vector<8x1xi1> to vector<8x128xi1>
    %229 = arith.select %228, %215, %178 : vector<8x128xi1>, vector<8x128xf32>
    %230 = vector.shape_cast %217 : vector<8x1xi1> to vector<8x1xi1>
    %231 = vector.broadcast %230 : vector<8x1xi1> to vector<8x128xi1>
    %232 = arith.select %231, %213, %181 : vector<8x128xi1>, vector<8x128xf32>
    %c4_i32 = arith.constant 4 : i32
    %233 = arith.muli %24, %c4_i32 : i32
    %234 = arith.addi %22, %233 : i32
    %235 = arith.addi %20, %234 : i32
    %236 = arith.index_cast %234 : i32 to index
    %c0_66 = arith.constant 0 : index
    %c0_67 = arith.constant 0 : index
    %237 = vector.load %arg11[%236, %c0_66, %c0_67] : memref<8x8x512xf32, #tpu.memory_space<vmem>>, vector<1x8x512xf32>
    %238 = vector.shape_cast %237 : vector<1x8x512xf32> to vector<8x512xf32>
    %239 = arith.truncf %229 : vector<8x128xf32> to vector<8x128xbf16>
    %cst_68 = arith.constant dense<0.000000e+00> : vector<8x512xf32>
    %240 = tpu.matmul %239, %15, %cst_68 {dimension_numbers = #tpu.dot_dimension_numbers<[1], [0], [0], [1], [0, 0, 1, 1], [], []>} : vector<8x128xbf16>, vector<128x512xbf16>, vector<8x512xf32> -> vector<8x512xf32>
    %241 = arith.addf %238, %240 : vector<8x512xf32>
    %242 = vector.extract_strided_slice %241 {offsets = [0, 0], sizes = [8, 128], strides = [1, 1]} : vector<8x512xf32> to vector<8x128xf32>
    %243 = arith.negf %242 : vector<8x128xf32>
    %244 = math.exp %243 : vector<8x128xf32>
    %cst_69 = arith.constant 1.000000e+00 : f32
    %245 = vector.broadcast %cst_69 : f32 to vector<8x128xf32>
    %246 = arith.addf %245, %244 : vector<8x128xf32>
    %247 = arith.divf %245, %246 : vector<8x128xf32>
    %248 = vector.extract_strided_slice %241 {offsets = [0, 128], sizes = [8, 128], strides = [1, 1]} : vector<8x512xf32> to vector<8x128xf32>
    %249 = arith.negf %248 : vector<8x128xf32>
    %250 = math.exp %249 : vector<8x128xf32>
    %cst_70 = arith.constant 1.000000e+00 : f32
    %251 = vector.broadcast %cst_70 : f32 to vector<8x128xf32>
    %252 = arith.addf %251, %250 : vector<8x128xf32>
    %253 = arith.divf %251, %252 : vector<8x128xf32>
    %254 = vector.extract_strided_slice %241 {offsets = [0, 256], sizes = [8, 128], strides = [1, 1]} : vector<8x512xf32> to vector<8x128xf32>
    %255 = math.tanh %254 : vector<8x128xf32>
    %256 = vector.extract_strided_slice %241 {offsets = [0, 384], sizes = [8, 128], strides = [1, 1]} : vector<8x512xf32> to vector<8x128xf32>
    %257 = arith.negf %256 : vector<8x128xf32>
    %258 = math.exp %257 : vector<8x128xf32>
    %cst_71 = arith.constant 1.000000e+00 : f32
    %259 = vector.broadcast %cst_71 : f32 to vector<8x128xf32>
    %260 = arith.addf %259, %258 : vector<8x128xf32>
    %261 = arith.divf %259, %260 : vector<8x128xf32>
    %262 = arith.mulf %253, %232 : vector<8x128xf32>
    %263 = arith.mulf %247, %255 : vector<8x128xf32>
    %264 = arith.addf %262, %263 : vector<8x128xf32>
    %265 = math.tanh %264 : vector<8x128xf32>
    %266 = arith.mulf %261, %265 : vector<8x128xf32>
    %267 = vector.broadcast %235 : i32 to vector<8x1xi32>
    %268 = arith.cmpi slt, %267, %16 : vector<8x1xi32>
    %cst_72 = arith.constant 0.000000e+00 : f32
    %269 = vector.shape_cast %268 : vector<8x1xi1> to vector<8x1xi1>
    %270 = vector.broadcast %269 : vector<8x1xi1> to vector<8x128xi1>
    %271 = vector.broadcast %cst_72 : f32 to vector<8x128xf32>
    %272 = arith.select %270, %266, %271 : vector<8x128xi1>, vector<8x128xf32>
    %273 = arith.truncf %272 : vector<8x128xf32> to vector<8x128xbf16>
    %274 = arith.index_cast %234 : i32 to index
    %c0_73 = arith.constant 0 : index
    %c0_74 = arith.constant 0 : index
    %275 = vector.load %arg8[%274, %c0_73, %c0_74] : memref<8x8x128xbf16, #tpu.memory_space<vmem>>, vector<1x8x128xbf16>
    %276 = vector.shape_cast %275 : vector<1x8x128xbf16> to vector<8x128xbf16>
    %277 = vector.shape_cast %273 : vector<8x128xbf16> to vector<1x8x128xbf16>
    tpu.vector_store %arg8[%274, %c0_73, %c0_74], %277 {strides = array<i32>} : memref<8x8x128xbf16, #tpu.memory_space<vmem>>, vector<1x8x128xbf16>,
    %278 = vector.shape_cast %268 : vector<8x1xi1> to vector<8x1xi1>
    %279 = vector.broadcast %278 : vector<8x1xi1> to vector<8x128xi1>
    %280 = arith.select %279, %266, %229 : vector<8x128xi1>, vector<8x128xf32>
    %281 = vector.shape_cast %268 : vector<8x1xi1> to vector<8x1xi1>
    %282 = vector.broadcast %281 : vector<8x1xi1> to vector<8x128xi1>
    %283 = arith.select %282, %264, %232 : vector<8x128xi1>, vector<8x128xf32>
    %c5_i32 = arith.constant 5 : i32
    %284 = arith.muli %24, %c5_i32 : i32
    %285 = arith.addi %22, %284 : i32
    %286 = arith.addi %20, %285 : i32
    %287 = arith.index_cast %285 : i32 to index
    %c0_75 = arith.constant 0 : index
    %c0_76 = arith.constant 0 : index
    %288 = vector.load %arg11[%287, %c0_75, %c0_76] : memref<8x8x512xf32, #tpu.memory_space<vmem>>, vector<1x8x512xf32>
    %289 = vector.shape_cast %288 : vector<1x8x512xf32> to vector<8x512xf32>
    %290 = arith.truncf %280 : vector<8x128xf32> to vector<8x128xbf16>
    %cst_77 = arith.constant dense<0.000000e+00> : vector<8x512xf32>
    %291 = tpu.matmul %290, %15, %cst_77 {dimension_numbers = #tpu.dot_dimension_numbers<[1], [0], [0], [1], [0, 0, 1, 1], [], []>} : vector<8x128xbf16>, vector<128x512xbf16>, vector<8x512xf32> -> vector<8x512xf32>
    %292 = arith.addf %289, %291 : vector<8x512xf32>
    %293 = vector.extract_strided_slice %292 {offsets = [0, 0], sizes = [8, 128], strides = [1, 1]} : vector<8x512xf32> to vector<8x128xf32>
    %294 = arith.negf %293 : vector<8x128xf32>
    %295 = math.exp %294 : vector<8x128xf32>
    %cst_78 = arith.constant 1.000000e+00 : f32
    %296 = vector.broadcast %cst_78 : f32 to vector<8x128xf32>
    %297 = arith.addf %296, %295 : vector<8x128xf32>
    %298 = arith.divf %296, %297 : vector<8x128xf32>
    %299 = vector.extract_strided_slice %292 {offsets = [0, 128], sizes = [8, 128], strides = [1, 1]} : vector<8x512xf32> to vector<8x128xf32>
    %300 = arith.negf %299 : vector<8x128xf32>
    %301 = math.exp %300 : vector<8x128xf32>
    %cst_79 = arith.constant 1.000000e+00 : f32
    %302 = vector.broadcast %cst_79 : f32 to vector<8x128xf32>
    %303 = arith.addf %302, %301 : vector<8x128xf32>
    %304 = arith.divf %302, %303 : vector<8x128xf32>
    %305 = vector.extract_strided_slice %292 {offsets = [0, 256], sizes = [8, 128], strides = [1, 1]} : vector<8x512xf32> to vector<8x128xf32>
    %306 = math.tanh %305 : vector<8x128xf32>
    %307 = vector.extract_strided_slice %292 {offsets = [0, 384], sizes = [8, 128], strides = [1, 1]} : vector<8x512xf32> to vector<8x128xf32>
    %308 = arith.negf %307 : vector<8x128xf32>
    %309 = math.exp %308 : vector<8x128xf32>
    %cst_80 = arith.constant 1.000000e+00 : f32
    %310 = vector.broadcast %cst_80 : f32 to vector<8x128xf32>
    %311 = arith.addf %310, %309 : vector<8x128xf32>
    %312 = arith.divf %310, %311 : vector<8x128xf32>
    %313 = arith.mulf %304, %283 : vector<8x128xf32>
    %314 = arith.mulf %298, %306 : vector<8x128xf32>
    %315 = arith.addf %313, %314 : vector<8x128xf32>
    %316 = math.tanh %315 : vector<8x128xf32>
    %317 = arith.mulf %312, %316 : vector<8x128xf32>
    %318 = vector.broadcast %286 : i32 to vector<8x1xi32>
    %319 = arith.cmpi slt, %318, %16 : vector<8x1xi32>
    %cst_81 = arith.constant 0.000000e+00 : f32
    %320 = vector.shape_cast %319 : vector<8x1xi1> to vector<8x1xi1>
    %321 = vector.broadcast %320 : vector<8x1xi1> to vector<8x128xi1>
    %322 = vector.broadcast %cst_81 : f32 to vector<8x128xf32>
    %323 = arith.select %321, %317, %322 : vector<8x128xi1>, vector<8x128xf32>
    %324 = arith.truncf %323 : vector<8x128xf32> to vector<8x128xbf16>
    %325 = arith.index_cast %285 : i32 to index
    %c0_82 = arith.constant 0 : index
    %c0_83 = arith.constant 0 : index
    %326 = vector.load %arg8[%325, %c0_82, %c0_83] : memref<8x8x128xbf16, #tpu.memory_space<vmem>>, vector<1x8x128xbf16>
    %327 = vector.shape_cast %326 : vector<1x8x128xbf16> to vector<8x128xbf16>
    %328 = vector.shape_cast %324 : vector<8x128xbf16> to vector<1x8x128xbf16>
    tpu.vector_store %arg8[%325, %c0_82, %c0_83], %328 {strides = array<i32>} : memref<8x8x128xbf16, #tpu.memory_space<vmem>>, vector<1x8x128xbf16>,
    %329 = vector.shape_cast %319 : vector<8x1xi1> to vector<8x1xi1>
    %330 = vector.broadcast %329 : vector<8x1xi1> to vector<8x128xi1>
    %331 = arith.select %330, %317, %280 : vector<8x128xi1>, vector<8x128xf32>
    %332 = vector.shape_cast %319 : vector<8x1xi1> to vector<8x1xi1>
    %333 = vector.broadcast %332 : vector<8x1xi1> to vector<8x128xi1>
    %334 = arith.select %333, %315, %283 : vector<8x128xi1>, vector<8x128xf32>
    %c6_i32 = arith.constant 6 : i32
    %335 = arith.muli %24, %c6_i32 : i32
    %336 = arith.addi %22, %335 : i32
    %337 = arith.addi %20, %336 : i32
    %338 = arith.index_cast %336 : i32 to index
    %c0_84 = arith.constant 0 : index
    %c0_85 = arith.constant 0 : index
    %339 = vector.load %arg11[%338, %c0_84, %c0_85] : memref<8x8x512xf32, #tpu.memory_space<vmem>>, vector<1x8x512xf32>
    %340 = vector.shape_cast %339 : vector<1x8x512xf32> to vector<8x512xf32>
    %341 = arith.truncf %331 : vector<8x128xf32> to vector<8x128xbf16>
    %cst_86 = arith.constant dense<0.000000e+00> : vector<8x512xf32>
    %342 = tpu.matmul %341, %15, %cst_86 {dimension_numbers = #tpu.dot_dimension_numbers<[1], [0], [0], [1], [0, 0, 1, 1], [], []>} : vector<8x128xbf16>, vector<128x512xbf16>, vector<8x512xf32> -> vector<8x512xf32>
    %343 = arith.addf %340, %342 : vector<8x512xf32>
    %344 = vector.extract_strided_slice %343 {offsets = [0, 0], sizes = [8, 128], strides = [1, 1]} : vector<8x512xf32> to vector<8x128xf32>
    %345 = arith.negf %344 : vector<8x128xf32>
    %346 = math.exp %345 : vector<8x128xf32>
    %cst_87 = arith.constant 1.000000e+00 : f32
    %347 = vector.broadcast %cst_87 : f32 to vector<8x128xf32>
    %348 = arith.addf %347, %346 : vector<8x128xf32>
    %349 = arith.divf %347, %348 : vector<8x128xf32>
    %350 = vector.extract_strided_slice %343 {offsets = [0, 128], sizes = [8, 128], strides = [1, 1]} : vector<8x512xf32> to vector<8x128xf32>
    %351 = arith.negf %350 : vector<8x128xf32>
    %352 = math.exp %351 : vector<8x128xf32>
    %cst_88 = arith.constant 1.000000e+00 : f32
    %353 = vector.broadcast %cst_88 : f32 to vector<8x128xf32>
    %354 = arith.addf %353, %352 : vector<8x128xf32>
    %355 = arith.divf %353, %354 : vector<8x128xf32>
    %356 = vector.extract_strided_slice %343 {offsets = [0, 256], sizes = [8, 128], strides = [1, 1]} : vector<8x512xf32> to vector<8x128xf32>
    %357 = math.tanh %356 : vector<8x128xf32>
    %358 = vector.extract_strided_slice %343 {offsets = [0, 384], sizes = [8, 128], strides = [1, 1]} : vector<8x512xf32> to vector<8x128xf32>
    %359 = arith.negf %358 : vector<8x128xf32>
    %360 = math.exp %359 : vector<8x128xf32>
    %cst_89 = arith.constant 1.000000e+00 : f32
    %361 = vector.broadcast %cst_89 : f32 to vector<8x128xf32>
    %362 = arith.addf %361, %360 : vector<8x128xf32>
    %363 = arith.divf %361, %362 : vector<8x128xf32>
    %364 = arith.mulf %355, %334 : vector<8x128xf32>
    %365 = arith.mulf %349, %357 : vector<8x128xf32>
    %366 = arith.addf %364, %365 : vector<8x128xf32>
    %367 = math.tanh %366 : vector<8x128xf32>
    %368 = arith.mulf %363, %367 : vector<8x128xf32>
    %369 = vector.broadcast %337 : i32 to vector<8x1xi32>
    %370 = arith.cmpi slt, %369, %16 : vector<8x1xi32>
    %cst_90 = arith.constant 0.000000e+00 : f32
    %371 = vector.shape_cast %370 : vector<8x1xi1> to vector<8x1xi1>
    %372 = vector.broadcast %371 : vector<8x1xi1> to vector<8x128xi1>
    %373 = vector.broadcast %cst_90 : f32 to vector<8x128xf32>
    %374 = arith.select %372, %368, %373 : vector<8x128xi1>, vector<8x128xf32>
    %375 = arith.truncf %374 : vector<8x128xf32> to vector<8x128xbf16>
    %376 = arith.index_cast %336 : i32 to index
    %c0_91 = arith.constant 0 : index
    %c0_92 = arith.constant 0 : index
    %377 = vector.load %arg8[%376, %c0_91, %c0_92] : memref<8x8x128xbf16, #tpu.memory_space<vmem>>, vector<1x8x128xbf16>
    %378 = vector.shape_cast %377 : vector<1x8x128xbf16> to vector<8x128xbf16>
    %379 = vector.shape_cast %375 : vector<8x128xbf16> to vector<1x8x128xbf16>
    tpu.vector_store %arg8[%376, %c0_91, %c0_92], %379 {strides = array<i32>} : memref<8x8x128xbf16, #tpu.memory_space<vmem>>, vector<1x8x128xbf16>,
    %380 = vector.shape_cast %370 : vector<8x1xi1> to vector<8x1xi1>
    %381 = vector.broadcast %380 : vector<8x1xi1> to vector<8x128xi1>
    %382 = arith.select %381, %368, %331 : vector<8x128xi1>, vector<8x128xf32>
    %383 = vector.shape_cast %370 : vector<8x1xi1> to vector<8x1xi1>
    %384 = vector.broadcast %383 : vector<8x1xi1> to vector<8x128xi1>
    %385 = arith.select %384, %366, %334 : vector<8x128xi1>, vector<8x128xf32>
    %c7_i32_93 = arith.constant 7 : i32
    %386 = arith.muli %24, %c7_i32_93 : i32
    %387 = arith.addi %22, %386 : i32
    %388 = arith.addi %20, %387 : i32
    %389 = arith.index_cast %387 : i32 to index
    %c0_94 = arith.constant 0 : index
    %c0_95 = arith.constant 0 : index
    %390 = vector.load %arg11[%389, %c0_94, %c0_95] : memref<8x8x512xf32, #tpu.memory_space<vmem>>, vector<1x8x512xf32>
    %391 = vector.shape_cast %390 : vector<1x8x512xf32> to vector<8x512xf32>
    %392 = arith.truncf %382 : vector<8x128xf32> to vector<8x128xbf16>
    %cst_96 = arith.constant dense<0.000000e+00> : vector<8x512xf32>
    %393 = tpu.matmul %392, %15, %cst_96 {dimension_numbers = #tpu.dot_dimension_numbers<[1], [0], [0], [1], [0, 0, 1, 1], [], []>} : vector<8x128xbf16>, vector<128x512xbf16>, vector<8x512xf32> -> vector<8x512xf32>
    %394 = arith.addf %391, %393 : vector<8x512xf32>
    %395 = vector.extract_strided_slice %394 {offsets = [0, 0], sizes = [8, 128], strides = [1, 1]} : vector<8x512xf32> to vector<8x128xf32>
    %396 = arith.negf %395 : vector<8x128xf32>
    %397 = math.exp %396 : vector<8x128xf32>
    %cst_97 = arith.constant 1.000000e+00 : f32
    %398 = vector.broadcast %cst_97 : f32 to vector<8x128xf32>
    %399 = arith.addf %398, %397 : vector<8x128xf32>
    %400 = arith.divf %398, %399 : vector<8x128xf32>
    %401 = vector.extract_strided_slice %394 {offsets = [0, 128], sizes = [8, 128], strides = [1, 1]} : vector<8x512xf32> to vector<8x128xf32>
    %402 = arith.negf %401 : vector<8x128xf32>
    %403 = math.exp %402 : vector<8x128xf32>
    %cst_98 = arith.constant 1.000000e+00 : f32
    %404 = vector.broadcast %cst_98 : f32 to vector<8x128xf32>
    %405 = arith.addf %404, %403 : vector<8x128xf32>
    %406 = arith.divf %404, %405 : vector<8x128xf32>
    %407 = vector.extract_strided_slice %394 {offsets = [0, 256], sizes = [8, 128], strides = [1, 1]} : vector<8x512xf32> to vector<8x128xf32>
    %408 = math.tanh %407 : vector<8x128xf32>
    %409 = vector.extract_strided_slice %394 {offsets = [0, 384], sizes = [8, 128], strides = [1, 1]} : vector<8x512xf32> to vector<8x128xf32>
    %410 = arith.negf %409 : vector<8x128xf32>
    %411 = math.exp %410 : vector<8x128xf32>
    %cst_99 = arith.constant 1.000000e+00 : f32
    %412 = vector.broadcast %cst_99 : f32 to vector<8x128xf32>
    %413 = arith.addf %412, %411 : vector<8x128xf32>
    %414 = arith.divf %412, %413 : vector<8x128xf32>
    %415 = arith.mulf %406, %385 : vector<8x128xf32>
    %416 = arith.mulf %400, %408 : vector<8x128xf32>
    %417 = arith.addf %415, %416 : vector<8x128xf32>
    %418 = math.tanh %417 : vector<8x128xf32>
    %419 = arith.mulf %414, %418 : vector<8x128xf32>
    %420 = vector.broadcast %388 : i32 to vector<8x1xi32>
    %421 = arith.cmpi slt, %420, %16 : vector<8x1xi32>
    %cst_100 = arith.constant 0.000000e+00 : f32
    %422 = vector.shape_cast %421 : vector<8x1xi1> to vector<8x1xi1>
    %423 = vector.broadcast %422 : vector<8x1xi1> to vector<8x128xi1>
    %424 = vector.broadcast %cst_100 : f32 to vector<8x128xf32>
    %425 = arith.select %423, %419, %424 : vector<8x128xi1>, vector<8x128xf32>
    %426 = arith.truncf %425 : vector<8x128xf32> to vector<8x128xbf16>
    %427 = arith.index_cast %387 : i32 to index
    %c0_101 = arith.constant 0 : index
    %c0_102 = arith.constant 0 : index
    %428 = vector.load %arg8[%427, %c0_101, %c0_102] : memref<8x8x128xbf16, #tpu.memory_space<vmem>>, vector<1x8x128xbf16>
    %429 = vector.shape_cast %428 : vector<1x8x128xbf16> to vector<8x128xbf16>
    %430 = vector.shape_cast %426 : vector<8x128xbf16> to vector<1x8x128xbf16>
    tpu.vector_store %arg8[%427, %c0_101, %c0_102], %430 {strides = array<i32>} : memref<8x8x128xbf16, #tpu.memory_space<vmem>>, vector<1x8x128xbf16>,
    %431 = vector.shape_cast %421 : vector<8x1xi1> to vector<8x1xi1>
    %432 = vector.broadcast %431 : vector<8x1xi1> to vector<8x128xi1>
    %433 = arith.select %432, %419, %382 : vector<8x128xi1>, vector<8x128xf32>
    %434 = vector.shape_cast %421 : vector<8x1xi1> to vector<8x1xi1>
    %435 = vector.broadcast %434 : vector<8x1xi1> to vector<8x128xi1>
    %436 = arith.select %435, %417, %385 : vector<8x128xi1>, vector<8x128xf32>
    %c8_i32_103 = arith.constant 8 : i32
    %c0_104 = arith.constant 0 : index
    %c0_105 = arith.constant 0 : index
    %c0_106 = arith.constant 0 : index
    %437 = vector.load %arg9[%c0_104, %c0_105, %c0_106] : memref<1x8x128xf32, #tpu.memory_space<vmem>>, vector<1x8x128xf32>
    %438 = vector.shape_cast %437 : vector<1x8x128xf32> to vector<8x128xf32>
    %439 = vector.shape_cast %433 : vector<8x128xf32> to vector<1x8x128xf32>
    tpu.vector_store %arg9[%c0_104, %c0_105, %c0_106], %439 {strides = array<i32>} : memref<1x8x128xf32, #tpu.memory_space<vmem>>, vector<1x8x128xf32>,
    %c0_107 = arith.constant 0 : index
    %c0_108 = arith.constant 0 : index
    %c0_109 = arith.constant 0 : index
    %440 = vector.load %arg10[%c0_107, %c0_108, %c0_109] : memref<1x8x128xf32, #tpu.memory_space<vmem>>, vector<1x8x128xf32>
    %441 = vector.shape_cast %440 : vector<1x8x128xf32> to vector<8x128xf32>
    %442 = vector.shape_cast %436 : vector<8x128xf32> to vector<1x8x128xf32>
    tpu.vector_store %arg10[%c0_107, %c0_108, %c0_109], %442 {strides = array<i32>} : memref<1x8x128xf32, #tpu.memory_space<vmem>>, vector<1x8x128xf32>,
    return
  }
  func.func @transform_0(%arg0: i32, %arg1: i32, %arg2: i32) -> (i32, i32) {
    %c0_i32 = arith.constant 0 : i32
    %c0_i32_0 = arith.constant 0 : i32
    return %arg1, %c0_i32 : i32, i32
  }
  func.func @transform_1(%arg0: i32, %arg1: i32, %arg2: i32) -> (i32, i32, i32) {
    %c2_i32 = arith.constant 2 : i32
    %0 = arith.muli %c2_i32, %arg2 : i32
    %c0_i32 = arith.constant 0 : i32
    %1 = arith.subi %c0_i32, %0 : i32
    %2 = arith.muli %arg0, %1 : i32
    %3 = arith.addi %arg2, %2 : i32
    %c0_i32_0 = arith.constant 0 : i32
    %c0_i32_1 = arith.constant 0 : i32
    return %3, %arg1, %c0_i32_0 : i32, i32, i32
  }
  func.func @transform_2(%arg0: i32, %arg1: i32, %arg2: i32) -> (i32, i32, i32) {
    %c0_i32 = arith.constant 0 : i32
    %c0_i32_0 = arith.constant 0 : i32
    %c0_i32_1 = arith.constant 0 : i32
    return %arg0, %c0_i32, %c0_i32_0 : i32, i32, i32
  }
  func.func @transform_3(%arg0: i32, %arg1: i32, %arg2: i32) -> (i32, i32, i32) {
    %c0_i32 = arith.constant 0 : i32
    %c0_i32_0 = arith.constant 0 : i32
    %c0_i32_1 = arith.constant 0 : i32
    return %arg0, %c0_i32, %c0_i32_0 : i32, i32, i32
  }
  func.func @transform_4(%arg0: i32, %arg1: i32, %arg2: i32) -> (i32, i32, i32) {
    %c0_i32 = arith.constant 0 : i32
    %c0_i32_0 = arith.constant 0 : i32
    %c0_i32_1 = arith.constant 0 : i32
    return %arg0, %c0_i32, %c0_i32_0 : i32, i32, i32
  }
  func.func @transform_5(%arg0: i32, %arg1: i32, %arg2: i32) -> (i32, i32, i32) {
    %c2_i32 = arith.constant 2 : i32
    %0 = arith.muli %c2_i32, %arg2 : i32
    %c0_i32 = arith.constant 0 : i32
    %1 = arith.subi %c0_i32, %0 : i32
    %2 = arith.muli %arg0, %1 : i32
    %3 = arith.addi %arg2, %2 : i32
    %c0_i32_0 = arith.constant 0 : i32
    return %3, %arg1, %arg0 : i32, i32, i32
  }
  func.func @transform_6(%arg0: i32, %arg1: i32, %arg2: i32) -> (i32, i32, i32) {
    %c0_i32 = arith.constant 0 : i32
    %c0_i32_0 = arith.constant 0 : i32
    return %arg0, %arg1, %c0_i32 : i32, i32, i32
  }
  func.func @transform_7(%arg0: i32, %arg1: i32, %arg2: i32) -> (i32, i32, i32) {
    %c0_i32 = arith.constant 0 : i32
    %c0_i32_0 = arith.constant 0 : i32
    return %arg0, %arg1, %c0_i32 : i32, i32, i32
  }
}

</mosaic_0001>

<llo_original>
// kernel: tpu_custom_call.1
$region0: #{tpu_custom_call.1}
  #allocation0 [shape = 'u32[]', space=smem, size = 0x4, offset = 0x4, fixed_abs, tag = 'smem constant byte address 0x4 - core index']
  #allocation1 [shape = 'u32[144,128]{1,0:T(1,128)}', space=vmem, size = 0x12000, scoped, tag = 'internal scratch']
  #allocation2 [shape = 'f32[8,8,512]{2,1,0:T(8,128)}', space=vmem, size = 0x20000, scoped, tag = 'scratch operand']
  %s0 = inlined_call_operand.vmem [shape: s32[8,1], index: 0, kind: input, shape index: {}]
  %s1 = inlined_call_operand.hbm [shape: bf16[8,8,128], index: 1, kind: input, shape index: {}]
  %s2 = inlined_call_operand.hbm [shape: bf16[2,128,512], index: 2, kind: input, shape index: {}]
  %s3 = inlined_call_operand.hbm [shape: bf16[2,128,512], index: 3, kind: input, shape index: {}]
  %s4 = inlined_call_operand.vmem [shape: f32[2,1,512], index: 4, kind: input, shape index: {}]
  %s5 = inlined_call_operand.hbm [shape: bf16[8,8,256], index: 5, kind: output, shape index: {0}]
  %s6 = inlined_call_operand.hbm [shape: f32[2,8,128], index: 6, kind: output, shape index: {1}]
  %s7 = inlined_call_operand.hbm [shape: f32[2,8,128], index: 7, kind: output, shape index: {2}]
  %8 = xla_tuple %s5, %s6, %s7
  %s9 = sld [smem:[#allocation0]]
  $region85: #{tpu_custom_call.1} parent=0
    _
  %s11 = ssub.s32 1, %s9
  %s12 = scalar_select 0, %s11, %s9
  $region1: #{tpu_custom_call.1} parent=0
    #allocation3 [shape = 'u8[32768]{0}', space=vmem, size = 0x8000, scoped, tag = 'input window, operand 1']
    #allocation4 [shape = 's32[2]{0}', space=sflag, size = 0x8, scoped, tag = 'scoped memory for tpu_custom_call.1']
    #allocation5 [shape = 's32[2]{0}', space=sflag, size = 0x8, scoped, tag = 'scoped memory for tpu_custom_call.1']
    #allocation6 [shape = 'u8[262144]{0}', space=vmem, size = 0x40000, scoped, tag = 'input window, operand 2']
    #allocation7 [shape = 's32[2]{0}', space=sflag, size = 0x8, scoped, tag = 'scoped memory for tpu_custom_call.1']
    #allocation8 [shape = 'u8[262144]{0}', space=vmem, size = 0x40000, scoped, tag = 'input window, operand 3']
    #allocation9 [shape = 'u8[32768]{0}', space=vmem, size = 0x8000, scoped, tag = 'output window, operand 0']
    #allocation10 [shape = 'u8[8192]{0}', space=vmem, size = 0x2000, scoped, tag = 'output window, operand 1']
    #allocation11 [shape = 's32[2]{0}', space=sflag, size = 0x8, scoped, tag = 'scoped memory for tpu_custom_call.1']
    #allocation12 [shape = 'u8[8192]{0}', space=vmem, size = 0x2000, scoped, tag = 'output window, operand 2']
    %13 = vsyncpa [#allocation4], 0
    %s14 = scalar_lea.sflag [#allocation4], 1
    %15 = vsyncpa %s14, 0
    %16 = vsyncpa [#allocation7], 0
    %s17 = scalar_lea.sflag [#allocation7], 1
    %18 = vsyncpa %s17, 0
    %19 = vsyncpa [#allocation5], 0
    %s20 = scalar_lea.sflag [#allocation5], 1
    %21 = vsyncpa %s20, 0
    %22 = vsyncpa [#allocation11], 0
    %s23 = scalar_lea.sflag [#allocation11], 1
    %24 = vsyncpa %s23, 0
    loop: start=0, step=1, limit=4
    $region2: #{tpu_custom_call.1} parent=1 // loop_pre_header
      _
    $region3: #{tpu_custom_call.1} parent=1 // loop_header
      %s26 = sphi 0, %s30
      %p27 = scmp.ge.s32.totalorder %s26, 4
      %s33 = sphi 0, %s52
      %s34 = sphi 0, %s48
      %s35 = sphi 0, %s44
      %s36 = sphi 0, %s33
      %s37 = sphi 0, %s34
      %s38 = sphi 0, %s35
      %s39 = sphi 0, %s36
      %s40 = sphi 0, %s37
      %s41 = sphi 0, %s38
      %s55 = sphi 0, %s57
      %s58 = sphi 0, %s55
      %s59 = sphi 0, %s58
      %s75 = sphi 0, %s59
      %s91 = sphi 0, %s93
      %s94 = sphi 0, %s91
      %s95 = sphi 0, %s94
      %s111 = sphi 0, %s95
      %s117 = sphi 0, %s119
      %s120 = sphi 0, %s117
      %s121 = sphi 0, %s120
      %s137 = sphi 0, %s121
      %s143 = sphi 0, %s145
      %s146 = sphi 0, %s143
      %s147 = sphi 0, %s146
      %s163 = sphi 0, %s147
      %s169 = sphi 0, %s171
      %s172 = sphi 0, %s169
      %s173 = sphi 0, %s172
      %s189 = sphi 0, %s173
      %s207 = sphi 0, %s209
      %s210 = sphi 0, %s207
      %s211 = sphi 0, %s210
      %s227 = sphi 0, %s211
      %s235 = sphi 0, %s237
      %s238 = sphi 0, %s235
      %s239 = sphi 0, %s238
      %s255 = sphi 0, %s239
      %s263 = sphi 0, %s265
      %s266 = sphi 0, %s263
      %s267 = sphi 0, %s266
      %s283 = sphi 0, %s267
    $region4: #{tpu_custom_call.1} parent=1 // loop_header_branch
      %29 = sbr.rel (%p27) target = $region8
    $region5: #{tpu_custom_call.1} parent=1 // loop_body
      %s31 = ssub.s32 %s26, 1
      %s32 = ssub.s32 %s26, 2
      %s42 = sadd.s32 1, %s35
      %p43 = scmp.ge.s32.totalorder %s42, 1
      %s44 = scalar_select %p43, 0, %s42
      %s45 = sadd.s32 1, %s34
      %s46 = scalar_select %p43, %s45, %s34
      %p47 = scmp.ge.s32.totalorder %s46, 1
      %s48 = scalar_select %p47, 0, %s46
      %s49 = sadd.s32 1, %s33
      %s50 = scalar_select %p47, %s49, %s33
      %p51 = scmp.ge.s32.totalorder %s50, 2
      %s52 = scalar_select %p51, 0, %s50
      %s53 = ssub.s32 %s34, %s48
      %p54 = scmp.eq.s32.totalorder %s53, 0
      %s56 = sadd.s32 %s55, 1
      %s57 = scalar_select %p54, %s55, %s56
      %p60 = pneg %p54
      %p61 = scmp.eq.s32.totalorder %s26, 1
      %p62 = por %p60, %p61
      %p63 = scmp.ne.s32.totalorder %s55, %s58
      %p64 = scmp.eq.s32.totalorder %s26, 0
      %p65 = por %p63, %p64
      %p66 = scmp.ne.s32.totalorder %s55, %s58
      %p67 = scmp.eq.s32.totalorder %s31, 1
      %p68 = por %p66, %p67
      %p69 = scmp.ne.s32.totalorder %s58, %s59
      %p70 = scmp.eq.s32.totalorder %s31, 0
      %p71 = por %p69, %p70
      %p72 = scmp.ne.s32.totalorder %s58, %s59
      %p73 = scmp.eq.s32.totalorder %s32, 1
      %p74 = por %p72, %p73
      %p76 = scmp.ne.s32.totalorder %s59, %s75
      %p77 = scmp.eq.s32.totalorder %s32, 0
      %p78 = por %p76, %p77
      %s79 = smul.u32 %s35, 2
      %s80 = ssub.s32 0, %s79
      %s81 = smul.u32 %s33, %s80
      %s82 = sadd.s32 %s35, %s81
      %s83 = smul.u32 %s44, 2
      %s84 = ssub.s32 0, %s83
      %s85 = smul.u32 %s52, %s84
      %s86 = sadd.s32 %s44, %s85
      %s87 = ssub.s32 %s82, %s86
      %s88 = ssub.s32 %s34, %s48
      %s89 = sor.u32 %s87, %s88
      %p90 = scmp.eq.s32.totalorder %s89, 0
      %s92 = sadd.s32 %s91, 1
      %s93 = scalar_select %p90, %s91, %s92
      %p96 = pneg %p90
      %p97 = scmp.eq.s32.totalorder %s26, 1
      %p98 = por %p96, %p97
      %p99 = scmp.ne.s32.totalorder %s91, %s94
      %p100 = scmp.eq.s32.totalorder %s26, 0
      %p101 = por %p99, %p100
      %p102 = scmp.ne.s32.totalorder %s91, %s94
      %p103 = scmp.eq.s32.totalorder %s31, 1
      %p104 = por %p102, %p103
      %p105 = scmp.ne.s32.totalorder %s94, %s95
      %p106 = scmp.eq.s32.totalorder %s31, 0
      %p107 = por %p105, %p106
      %p108 = scmp.ne.s32.totalorder %s94, %s95
      %p109 = scmp.eq.s32.totalorder %s32, 1
      %p110 = por %p108, %p109
      %p112 = scmp.ne.s32.totalorder %s95, %s111
      %p113 = scmp.eq.s32.totalorder %s32, 0
      %p114 = por %p112, %p113
      %s115 = ssub.s32 %s33, %s52
      %p116 = scmp.eq.s32.totalorder %s115, 0
      %s118 = sadd.s32 %s117, 1
      %s119 = scalar_select %p116, %s117, %s118
      %p122 = pneg %p116
      %p123 = scmp.eq.s32.totalorder %s26, 1
      %p124 = por %p122, %p123
      %p125 = scmp.ne.s32.totalorder %s117, %s120
      %p126 = scmp.eq.s32.totalorder %s26, 0
      %p127 = por %p125, %p126
      %p128 = scmp.ne.s32.totalorder %s117, %s120
      %p129 = scmp.eq.s32.totalorder %s31, 1
      %p130 = por %p128, %p129
      %p131 = scmp.ne.s32.totalorder %s120, %s121
      %p132 = scmp.eq.s32.totalorder %s31, 0
      %p133 = por %p131, %p132
      %p134 = scmp.ne.s32.totalorder %s120, %s121
      %p135 = scmp.eq.s32.totalorder %s32, 1
      %p136 = por %p134, %p135
      %p138 = scmp.ne.s32.totalorder %s121, %s137
      %p139 = scmp.eq.s32.totalorder %s32, 0
      %p140 = por %p138, %p139
      %s141 = ssub.s32 %s33, %s52
      %p142 = scmp.eq.s32.totalorder %s141, 0
      %s144 = sadd.s32 %s143, 1
      %s145 = scalar_select %p142, %s143, %s144
      %p148 = pneg %p142
      %p149 = scmp.eq.s32.totalorder %s26, 1
      %p150 = por %p148, %p149
      %p151 = scmp.ne.s32.totalorder %s143, %s146
      %p152 = scmp.eq.s32.totalorder %s26, 0
      %p153 = por %p151, %p152
      %p154 = scmp.ne.s32.totalorder %s143, %s146
      %p155 = scmp.eq.s32.totalorder %s31, 1
      %p156 = por %p154, %p155
      %p157 = scmp.ne.s32.totalorder %s146, %s147
      %p158 = scmp.eq.s32.totalorder %s31, 0
      %p159 = por %p157, %p158
      %p160 = scmp.ne.s32.totalorder %s146, %s147
      %p161 = scmp.eq.s32.totalorder %s32, 1
      %p162 = por %p160, %p161
      %p164 = scmp.ne.s32.totalorder %s147, %s163
      %p165 = scmp.eq.s32.totalorder %s32, 0
      %p166 = por %p164, %p165
      %s167 = ssub.s32 %s33, %s52
      %p168 = scmp.eq.s32.totalorder %s167, 0
      %s170 = sadd.s32 %s169, 1
      %s171 = scalar_select %p168, %s169, %s170
      %p174 = pneg %p168
      %p175 = scmp.eq.s32.totalorder %s26, 1
      %p176 = por %p174, %p175
      %p177 = scmp.ne.s32.totalorder %s169, %s172
      %p178 = scmp.eq.s32.totalorder %s26, 0
      %p179 = por %p177, %p178
      %p180 = scmp.ne.s32.totalorder %s169, %s172
      %p181 = scmp.eq.s32.totalorder %s31, 1
      %p182 = por %p180, %p181
      %p183 = scmp.ne.s32.totalorder %s172, %s173
      %p184 = scmp.eq.s32.totalorder %s31, 0
      %p185 = por %p183, %p184
      %p186 = scmp.ne.s32.totalorder %s172, %s173
      %p187 = scmp.eq.s32.totalorder %s32, 1
      %p188 = por %p186, %p187
      %p190 = scmp.ne.s32.totalorder %s173, %s189
      %p191 = scmp.eq.s32.totalorder %s32, 0
      %p192 = por %p190, %p191
      %s193 = smul.u32 %s35, 2
      %s194 = ssub.s32 0, %s193
      %s195 = smul.u32 %s33, %s194
      %s196 = sadd.s32 %s35, %s195
      %s197 = smul.u32 %s44, 2
      %s198 = ssub.s32 0, %s197
      %s199 = smul.u32 %s52, %s198
      %s200 = sadd.s32 %s44, %s199
      %s201 = ssub.s32 %s196, %s200
      %s202 = ssub.s32 %s34, %s48
      %s203 = sor.u32 %s201, %s202
      %s204 = ssub.s32 %s33, %s52
      %s205 = sor.u32 %s203, %s204
      %p206 = scmp.eq.s32.totalorder %s205, 0
      %s208 = sadd.s32 %s207, 1
      %s209 = scalar_select %p206, %s207, %s208
      %p212 = pneg %p206
      %p213 = scmp.eq.s32.totalorder %s26, 1
      %p214 = por %p212, %p213
      %p215 = scmp.ne.s32.totalorder %s207, %s210
      %p216 = scmp.eq.s32.totalorder %s26, 0
      %p217 = por %p215, %p216
      %p218 = scmp.ne.s32.totalorder %s207, %s210
      %p219 = scmp.eq.s32.totalorder %s31, 1
      %p220 = por %p218, %p219
      %p221 = scmp.ne.s32.totalorder %s210, %s211
      %p222 = scmp.eq.s32.totalorder %s31, 0
      %p223 = por %p221, %p222
      %p224 = scmp.ne.s32.totalorder %s210, %s211
      %p225 = scmp.eq.s32.totalorder %s32, 1
      %p226 = por %p224, %p225
      %p228 = scmp.ne.s32.totalorder %s211, %s227
      %p229 = scmp.eq.s32.totalorder %s32, 0
      %p230 = por %p228, %p229
      %s231 = ssub.s32 %s33, %s52
      %s232 = ssub.s32 %s34, %s48
      %s233 = sor.u32 %s231, %s232
      %p234 = scmp.eq.s32.totalorder %s233, 0
      %s236 = sadd.s32 %s235, 1
      %s237 = scalar_select %p234, %s235, %s236
      %p240 = pneg %p234
      %p241 = scmp.eq.s32.totalorder %s26, 1
      %p242 = por %p240, %p241
      %p243 = scmp.ne.s32.totalorder %s235, %s238
      %p244 = scmp.eq.s32.totalorder %s26, 0
      %p245 = por %p243, %p244
      %p246 = scmp.ne.s32.totalorder %s235, %s238
      %p247 = scmp.eq.s32.totalorder %s31, 1
      %p248 = por %p246, %p247
      %p249 = scmp.ne.s32.totalorder %s238, %s239
      %p250 = scmp.eq.s32.totalorder %s31, 0
      %p251 = por %p249, %p250
      %p252 = scmp.ne.s32.totalorder %s238, %s239
      %p253 = scmp.eq.s32.totalorder %s32, 1
      %p254 = por %p252, %p253
      %p256 = scmp.ne.s32.totalorder %s239, %s255
      %p257 = scmp.eq.s32.totalorder %s32, 0
      %p258 = por %p256, %p257
      %s259 = ssub.s32 %s33, %s52
      %s260 = ssub.s32 %s34, %s48
      %s261 = sor.u32 %s259, %s260
      %p262 = scmp.eq.s32.totalorder %s261, 0
      %s264 = sadd.s32 %s263, 1
      %s265 = scalar_select %p262, %s263, %s264
      %p268 = pneg %p262
      %p269 = scmp.eq.s32.totalorder %s26, 1
      %p270 = por %p268, %p269
      %p271 = scmp.ne.s32.totalorder %s263, %s266
      %p272 = scmp.eq.s32.totalorder %s26, 0
      %p273 = por %p271, %p272
      %p274 = scmp.ne.s32.totalorder %s263, %s266
      %p275 = scmp.eq.s32.totalorder %s31, 1
      %p276 = por %p274, %p275
      %p277 = scmp.ne.s32.totalorder %s266, %s267
      %p278 = scmp.eq.s32.totalorder %s31, 0
      %p279 = por %p277, %p278
      %p280 = scmp.ne.s32.totalorder %s266, %s267
      %p281 = scmp.eq.s32.totalorder %s32, 1
      %p282 = por %p280, %p281
      %p284 = scmp.ne.s32.totalorder %s267, %s283
      %p285 = scmp.eq.s32.totalorder %s32, 0
      %p286 = por %p284, %p285
      %p287 = scmp.le.s32.totalorder 1, %s26
      %p288 = scmp.lt.s32.totalorder %s26, 3
      %p289 = pnand %p287, %p288
      %p290 = pneg %p289
      // Predicated region
      $region9: #{tpu_custom_call.1} parent=5 // pred_check
        _
      $region10: #{tpu_custom_call.1} parent=5 // pred_check_branch
        %292 = sbr.rel (%p289) target = $region12
      $region11: #{tpu_custom_call.1} parent=5 // pred_region
        %s293 = ssub.s32 %s26, 1
        // Predicated region
        $region13: #{tpu_custom_call.1} parent=11 // pred_check
          %p294 = pneg %p71
        $region14: #{tpu_custom_call.1} parent=11 // pred_check_branch
          %296 = sbr.rel (%p294) target = $region16
        $region15: #{tpu_custom_call.1} parent=11 // pred_region
          %p297 = scmp.lt.s32.totalorder %s37, 0
          %s298 = scalar_select %p297, %s37, 0
          %s299 = smul.addr %s298, 8
          %s300 = scalar_lea.vmem %s0, %s299
        $region16: #{tpu_custom_call.1} parent=11 // pred_fallthru
          _
      $region12: #{tpu_custom_call.1} parent=5 // pred_fallthru
        _
      %p301 = scmp.lt.s32.totalorder %s26, 2
      // Predicated region
      $region17: #{tpu_custom_call.1} parent=5 // pred_check
        %p302 = pneg %p301
      $region18: #{tpu_custom_call.1} parent=5 // pred_check_branch
        %304 = sbr.rel (%p302) target = $region20
      $region19: #{tpu_custom_call.1} parent=5 // pred_region
        // Predicated region
        $region21: #{tpu_custom_call.1} parent=19 // pred_check
          %p305 = pneg %p101
        $region22: #{tpu_custom_call.1} parent=19 // pred_check_branch
          %307 = sbr.rel (%p305) target = $region24
        $region23: #{tpu_custom_call.1} parent=19 // pred_region
          %s308 = sand.u32 %s91, 1
          %s309 = scalar_lea.sflag [#allocation4], %s308
          %s310 = sand.u32 %s91, 1
          %s311 = smul.addr %s310, 32
          %s312 = scalar_lea.vmem [#allocation3], %s311
          %s313 = smul.u32 %s35, 2
          %s314 = ssub.s32 0, %s313
          %s315 = smul.u32 %s33, %s314
          %s316 = sadd.s32 %s35, %s315
          %s317 = smul.u32 8, %s316
          %s319 = ssub.s32 512, 512
          %320 = vsyncadd %s309, %s319
          %s321 = sadd.s32 %s34, %s317
          %s322 = smul.addr %s321, 64
          %s323 = scalar_lea.hbm %s1, %s322
          %s324 = sshll.u32 %s312, 4
          %s325 = int_to_ptr.vmem [resolvable:$true] %s324
          %330 = dma.hbm_to_vmem [thread:$0]  %s323, 512, %s325, %s309, 64, 64, 4
        $region24: #{tpu_custom_call.1} parent=19 // pred_fallthru
          _
        // Predicated region
        $region25: #{tpu_custom_call.1} parent=19 // pred_check
          %p331 = pneg %p127
        $region26: #{tpu_custom_call.1} parent=19 // pred_check_branch
          %333 = sbr.rel (%p331) target = $region28
        $region27: #{tpu_custom_call.1} parent=19 // pred_region
          %s334 = sand.u32 %s26, 1
          %s335 = scalar_lea.sflag [#allocation7], %s334
          %s336 = sand.u32 %s117, 1
          %s337 = smul.addr %s336, 256
          %s338 = scalar_lea.vmem [#allocation6], %s337
          %s340 = ssub.s32 4096, 4096
          %341 = vsyncadd %s335, %s340
          %s342 = smul.addr %s33, 64
          %s343 = smul.addr %s342, 64
          %s344 = scalar_lea.hbm %s2, %s343
          %s345 = sshll.u32 %s338, 4
          %s346 = int_to_ptr.vmem [resolvable:$true] %s345
          %351 = dma.hbm_to_vmem [thread:$0]  %s344, 4096, %s346, %s335, 256, 256, 16
        $region28: #{tpu_custom_call.1} parent=19 // pred_fallthru
          _
        // Predicated region
        $region29: #{tpu_custom_call.1} parent=19 // pred_check
          %p352 = pneg %p153
        $region30: #{tpu_custom_call.1} parent=19 // pred_check_branch
          %354 = sbr.rel (%p352) target = $region32
        $region31: #{tpu_custom_call.1} parent=19 // pred_region
          %s355 = sand.u32 %s26, 1
          %s356 = scalar_lea.sflag [#allocation7], %s355
          %s357 = sand.u32 %s143, 1
          %s358 = smul.addr %s357, 256
          %s359 = scalar_lea.vmem [#allocation8], %s358
          %s361 = ssub.s32 4096, 4096
          %362 = vsyncadd %s356, %s361
          %s363 = smul.addr %s33, 64
          %s364 = smul.addr %s363, 64
          %s365 = scalar_lea.hbm %s3, %s364
          %s366 = sshll.u32 %s359, 4
          %s367 = int_to_ptr.vmem [resolvable:$true] %s366
          %372 = dma.hbm_to_vmem [thread:$0]  %s365, 4096, %s367, %s356, 256, 256, 16
        $region32: #{tpu_custom_call.1} parent=19 // pred_fallthru
          _
        // Predicated region
        $region33: #{tpu_custom_call.1} parent=19 // pred_check
          %p373 = pneg %p179
        $region34: #{tpu_custom_call.1} parent=19 // pred_check_branch
          %375 = sbr.rel (%p373) target = $region36
        $region35: #{tpu_custom_call.1} parent=19 // pred_region
          %p376 = scmp.lt.s32.totalorder %s33, 1
          %s377 = scalar_select %p376, %s33, 1
          %s378 = smul.addr %s377, 4
          %s379 = scalar_lea.vmem %s4, %s378
        $region36: #{tpu_custom_call.1} parent=19 // pred_fallthru
          _
      $region20: #{tpu_custom_call.1} parent=5 // pred_fallthru
        _
      %p380 = scmp.le.s32.totalorder 1, %s26
      %p381 = scmp.lt.s32.totalorder %s26, 3
      %p382 = pnand %p380, %p381
      %p383 = pneg %p382
      // Predicated region
      $region37: #{tpu_custom_call.1} parent=5 // pred_check
        _
      $region38: #{tpu_custom_call.1} parent=5 // pred_check_branch
        %385 = sbr.rel (%p382) target = $region40
      $region39: #{tpu_custom_call.1} parent=5 // pred_region
        %s386 = ssub.s32 %s26, 1
        %s387 = sand.u32 %s94, 1
        %s388 = scalar_lea.sflag [#allocation4], %s387
        %s389 = sand.u32 %s94, 1
        %s390 = smul.addr %s389, 32
        %s391 = scalar_lea.vmem [#allocation3], %s390
        // Predicated region
        $region41: #{tpu_custom_call.1} parent=39 // pred_check
          %p392 = pneg %p107
        $region42: #{tpu_custom_call.1} parent=39 // pred_check_branch
          %394 = sbr.rel (%p392) target = $region44
        $region43: #{tpu_custom_call.1} parent=39 // pred_region
          %395 = dma.done %s388, 512
        $region44: #{tpu_custom_call.1} parent=39 // pred_fallthru
          _
        %s396 = sand.u32 %s31, 1
        %s397 = scalar_lea.sflag [#allocation7], %s396
        %s398 = sand.u32 %s120, 1
        %s399 = smul.addr %s398, 256
        %s400 = scalar_lea.vmem [#allocation6], %s399
        // Predicated region
        $region45: #{tpu_custom_call.1} parent=39 // pred_check
          %p401 = pneg %p133
        $region46: #{tpu_custom_call.1} parent=39 // pred_check_branch
          %403 = sbr.rel (%p401) target = $region48
        $region47: #{tpu_custom_call.1} parent=39 // pred_region
          %404 = dma.done %s397, 4096
        $region48: #{tpu_custom_call.1} parent=39 // pred_fallthru
          _
        %s405 = sand.u32 %s31, 1
        %s406 = scalar_lea.sflag [#allocation7], %s405
        %s407 = sand.u32 %s146, 1
        %s408 = smul.addr %s407, 256
        %s409 = scalar_lea.vmem [#allocation8], %s408
        // Predicated region
        $region49: #{tpu_custom_call.1} parent=39 // pred_check
          %p410 = pneg %p159
        $region50: #{tpu_custom_call.1} parent=39 // pred_check_branch
          %412 = sbr.rel (%p410) target = $region52
        $region51: #{tpu_custom_call.1} parent=39 // pred_region
          %413 = dma.done %s406, 4096
        $region52: #{tpu_custom_call.1} parent=39 // pred_fallthru
          _
        %p414 = scmp.lt.s32.totalorder %s37, 0
        %s415 = scalar_select %p414, %s37, 0
        %s416 = smul.addr %s415, 8
        %s417 = scalar_lea.vmem %s0, %s416
        %p418 = pneg %p71
        %p419 = pneg %p68
        %s420 = sand.u32 %s94, 1
        %s421 = scalar_lea.sflag [#allocation4], %s420
        %s422 = sand.u32 %s94, 1
        %s423 = smul.addr %s422, 32
        %s424 = scalar_lea.vmem [#allocation3], %s423
        %p425 = pneg %p107
        %p426 = pneg %p104
        %s427 = sand.u32 %s31, 1
        %s428 = scalar_lea.sflag [#allocation7], %s427
        %s429 = sand.u32 %s120, 1
        %s430 = smul.addr %s429, 256
        %s431 = scalar_lea.vmem [#allocation6], %s430
        %p432 = pneg %p133
        %p433 = pneg %p130
        %s434 = sand.u32 %s31, 1
        %s435 = scalar_lea.sflag [#allocation7], %s434
        %s436 = sand.u32 %s146, 1
        %s437 = smul.addr %s436, 256
        %s438 = scalar_lea.vmem [#allocation8], %s437
        %p439 = pneg %p159
        %p440 = pneg %p156
        %p441 = scmp.lt.s32.totalorder %s36, 1
        %s442 = scalar_select %p441, %s36, 1
        %s443 = smul.addr %s442, 4
        %s444 = scalar_lea.vmem %s4, %s443
        %p445 = pneg %p185
        %p446 = pneg %p182
        %p447 = pneg %p223
        %p448 = pneg %p220
        %s449 = sand.u32 %s210, 1
        %s450 = scalar_lea.sflag [#allocation5], %s449
        %s451 = sand.u32 %s210, 1
        %s452 = smul.addr %s451, 32
        %s453 = scalar_lea.vmem [#allocation9], %s452
        %p454 = pneg %p251
        %p455 = pneg %p248
        %s456 = sand.u32 %s31, 1
        %s457 = scalar_lea.sflag [#allocation11], %s456
        %s458 = sand.u32 %s238, 1
        %s459 = smul.addr %s458, 8
        %s460 = scalar_lea.vmem [#allocation10], %s459
        %p461 = pneg %p279
        %p462 = pneg %p276
        %s463 = sand.u32 %s31, 1
        %s464 = scalar_lea.sflag [#allocation11], %s463
        %s465 = sand.u32 %s266, 1
        %s466 = smul.addr %s465, 8
        %s467 = scalar_lea.vmem [#allocation12], %s466
        %p468 = scmp.lt.s32.totalorder %s37, 0
        %s469 = scalar_select %p468, %s37, 0
        %s470 = smul.addr %s469, 8
        %s471 = scalar_lea.vmem %s0, %s470
        %s472 = smul.u32 %s38, 2
        %s473 = ssub.s32 0, %s472
        %s474 = smul.u32 %s36, %s473
        %s475 = sadd.s32 %s38, %s474
        %s476 = smul.u32 8, %s475
        %p477 = scmp.lt.s32.totalorder %s36, 1
        %s478 = scalar_select %p477, %s36, 1
        %s479 = smul.addr %s478, 4
        %s480 = scalar_lea.vmem %s4, %s479
        %s481 = smul.u32 %s38, 2
        %s482 = ssub.s32 0, %s481
        %s483 = smul.u32 %s36, %s482
        %s484 = sadd.s32 %s38, %s483
        %s485 = smul.u32 8, %s484
        %p487 = scmp.eq.s32.totalorder %s38, 0
        // Predicated region
        $region53: #{tpu_custom_call.1} parent=39 // pred_check
          %p488 = pneg %p487
        $region54: #{tpu_custom_call.1} parent=39 // pred_check_branch
          %490 = sbr.rel (%p488) target = $region56
        $region55: #{tpu_custom_call.1} parent=39 // pred_region
          %491 = vst [vmem:[%s460] sm:$0xff] 0.0
          %492 = vst [vmem:[%s467] sm:$0xff] 0.0
        $region56: #{tpu_custom_call.1} parent=39 // pred_fallthru
          _
        %v493 = vld [vmem:[%s391] sm:$0xf]
        %v494 = vld [vmem:[%s391 + $0x4] sm:$0xf]
        %v495 = vld [vmem:[%s391 + $0x8] sm:$0xf]
        %v496 = vld [vmem:[%s391 + $0xc] sm:$0xf]
        %v497 = vld [vmem:[%s391 + $0x10] sm:$0xf]
        %v498 = vld [vmem:[%s391 + $0x14] sm:$0xf]
        %v499 = vld [vmem:[%s391 + $0x18] sm:$0xf]
        %v500 = vld [vmem:[%s391 + $0x1c] sm:$0xf]
        %v501 = vld [vmem:[%s400] sm:$0xff]
        %v502 = vld [vmem:[%s400 + $0x8] sm:$0xff]
        %v503 = vld [vmem:[%s400 + $0x10] sm:$0xff]
        %v504 = vld [vmem:[%s400 + $0x18] sm:$0xff]
        %v505 = vld [vmem:[%s400 + $0x20] sm:$0xff]
        %v506 = vld [vmem:[%s400 + $0x28] sm:$0xff]
        %v507 = vld [vmem:[%s400 + $0x30] sm:$0xff]
        %v508 = vld [vmem:[%s400 + $0x38] sm:$0xff]
        %v509 = vld [vmem:[%s400 + $0x40] sm:$0xff]
        %v510 = vld [vmem:[%s400 + $0x48] sm:$0xff]
        %v511 = vld [vmem:[%s400 + $0x50] sm:$0xff]
        %v512 = vld [vmem:[%s400 + $0x58] sm:$0xff]
        %v513 = vld [vmem:[%s400 + $0x60] sm:$0xff]
        %v514 = vld [vmem:[%s400 + $0x68] sm:$0xff]
        %v515 = vld [vmem:[%s400 + $0x70] sm:$0xff]
        %v516 = vld [vmem:[%s400 + $0x78] sm:$0xff]
        %v517 = vld [vmem:[%s400 + $0x80] sm:$0xff]
        %v518 = vld [vmem:[%s400 + $0x88] sm:$0xff]
        %v519 = vld [vmem:[%s400 + $0x90] sm:$0xff]
        %v520 = vld [vmem:[%s400 + $0x98] sm:$0xff]
        %v521 = vld [vmem:[%s400 + $0xa0] sm:$0xff]
        %v522 = vld [vmem:[%s400 + $0xa8] sm:$0xff]
        %v523 = vld [vmem:[%s400 + $0xb0] sm:$0xff]
        %v524 = vld [vmem:[%s400 + $0xb8] sm:$0xff]
        %v525 = vld [vmem:[%s400 + $0xc0] sm:$0xff]
        %v526 = vld [vmem:[%s400 + $0xc8] sm:$0xff]
        %v527 = vld [vmem:[%s400 + $0xd0] sm:$0xff]
        %v528 = vld [vmem:[%s400 + $0xd8] sm:$0xff]
        %v529 = vld [vmem:[%s400 + $0xe0] sm:$0xff]
        %v530 = vld [vmem:[%s400 + $0xe8] sm:$0xff]
        %v531 = vld [vmem:[%s400 + $0xf0] sm:$0xff]
        %v532 = vld [vmem:[%s400 + $0xf8] sm:$0xff]
        %v533 = vld [vmem:[%s480] sm:$0xf]
        %v535 = vlaneseq
        %v536 = vshrl.u32 %v535, 7
        %v537 = vsub.s32 0, %v536
        %v538 = vrot.slane %v533, %v537
        %v539 = vlaneseq
        %v540 = vshrl.u32 %v539, 7
        %v541 = vsub.s32 1, %v540
        %v542 = vrot.slane %v533, %v541
        %v543 = vlaneseq
        %v544 = vshrl.u32 %v543, 7
        %v545 = vsub.s32 2, %v544
        %v546 = vrot.slane %v533, %v545
        %v547 = vlaneseq
        %v548 = vshrl.u32 %v547, 7
        %v549 = vsub.s32 3, %v548
        %v550 = vrot.slane %v533, %v549
        %v563 = vunpack.c.l.b16 %v493
        %v564 = vunpack.c.l.b16 %v494
        %v565 = vunpack.c.l.b16 %v495
        %v566 = vunpack.c.l.b16 %v496
        %v567 = vunpack.c.l.b16 %v497
        %v568 = vunpack.c.l.b16 %v498
        %v569 = vunpack.c.l.b16 %v499
        %v570 = vunpack.c.l.b16 %v500
        %v571 = vpack.c.b16 %v564, %v563
        %v572 = vpack.c.b16 %v566, %v565
        %v573 = vpack.c.b16 %v568, %v567
        %v574 = vpack.c.b16 %v570, %v569
        %v611 = vunpack.c.l.b16 %v501
        %v612 = vunpack.c.h.b16 %v501
        %v613 = vunpack.c.l.b16 %v502
        %v614 = vunpack.c.h.b16 %v502
        %v615 = vunpack.c.l.b16 %v503
        %v616 = vunpack.c.h.b16 %v503
        %v617 = vunpack.c.l.b16 %v504
        %v618 = vunpack.c.h.b16 %v504
        %v619 = vunpack.c.l.b16 %v505
        %v620 = vunpack.c.h.b16 %v505
        %v621 = vunpack.c.l.b16 %v506
        %v622 = vunpack.c.h.b16 %v506
        %v623 = vunpack.c.l.b16 %v507
        %v624 = vunpack.c.h.b16 %v507
        %v625 = vunpack.c.l.b16 %v508
        %v626 = vunpack.c.h.b16 %v508
        %v627 = vunpack.c.l.b16 %v509
        %v628 = vunpack.c.h.b16 %v509
        %v629 = vunpack.c.l.b16 %v510
        %v630 = vunpack.c.h.b16 %v510
        %v631 = vunpack.c.l.b16 %v511
        %v632 = vunpack.c.h.b16 %v511
        %v633 = vunpack.c.l.b16 %v512
        %v634 = vunpack.c.h.b16 %v512
        %v635 = vunpack.c.l.b16 %v513
        %v636 = vunpack.c.h.b16 %v513
        %v637 = vunpack.c.l.b16 %v514
        %v638 = vunpack.c.h.b16 %v514
        %v639 = vunpack.c.l.b16 %v515
        %v640 = vunpack.c.h.b16 %v515
        %v641 = vunpack.c.l.b16 %v516
        %v642 = vunpack.c.h.b16 %v516
        %v643 = vunpack.c.l.b16 %v517
        %v644 = vunpack.c.h.b16 %v517
        %v645 = vunpack.c.l.b16 %v518
        %v646 = vunpack.c.h.b16 %v518
        %v647 = vunpack.c.l.b16 %v519
        %v648 = vunpack.c.h.b16 %v519
        %v649 = vunpack.c.l.b16 %v520
        %v650 = vunpack.c.h.b16 %v520
        %v651 = vunpack.c.l.b16 %v521
        %v652 = vunpack.c.h.b16 %v521
        %v653 = vunpack.c.l.b16 %v522
        %v654 = vunpack.c.h.b16 %v522
        %v655 = vunpack.c.l.b16 %v523
        %v656 = vunpack.c.h.b16 %v523
        %v657 = vunpack.c.l.b16 %v524
        %v658 = vunpack.c.h.b16 %v524
        %v659 = vunpack.c.l.b16 %v525
        %v660 = vunpack.c.h.b16 %v525
        %v661 = vunpack.c.l.b16 %v526
        %v662 = vunpack.c.h.b16 %v526
        %v663 = vunpack.c.l.b16 %v527
        %v664 = vunpack.c.h.b16 %v527
        %v665 = vunpack.c.l.b16 %v528
        %v666 = vunpack.c.h.b16 %v528
        %v667 = vunpack.c.l.b16 %v529
        %v668 = vunpack.c.h.b16 %v529
        %v669 = vunpack.c.l.b16 %v530
        %v670 = vunpack.c.h.b16 %v530
        %v671 = vunpack.c.l.b16 %v531
        %v672 = vunpack.c.h.b16 %v531
        %v673 = vunpack.c.l.b16 %v532
        %v674 = vunpack.c.h.b16 %v532
        %v675 = vpack.c.b16 %v615, %v611
        %v676 = vpack.c.b16 %v616, %v612
        %v677 = vpack.c.b16 %v617, %v613
        %v678 = vpack.c.b16 %v618, %v614
        %v679 = vpack.c.b16 %v623, %v619
        %v680 = vpack.c.b16 %v624, %v620
        %v681 = vpack.c.b16 %v625, %v621
        %v682 = vpack.c.b16 %v626, %v622
        %v683 = vpack.c.b16 %v631, %v627
        %v684 = vpack.c.b16 %v632, %v628
        %v685 = vpack.c.b16 %v633, %v629
        %v686 = vpack.c.b16 %v634, %v630
        %v687 = vpack.c.b16 %v639, %v635
        %v688 = vpack.c.b16 %v640, %v636
        %v689 = vpack.c.b16 %v641, %v637
        %v690 = vpack.c.b16 %v642, %v638
        %v691 = vpack.c.b16 %v647, %v643
        %v692 = vpack.c.b16 %v648, %v644
        %v693 = vpack.c.b16 %v649, %v645
        %v694 = vpack.c.b16 %v650, %v646
        %v695 = vpack.c.b16 %v655, %v651
        %v696 = vpack.c.b16 %v656, %v652
        %v697 = vpack.c.b16 %v657, %v653
        %v698 = vpack.c.b16 %v658, %v654
        %v699 = vpack.c.b16 %v663, %v659
        %v700 = vpack.c.b16 %v664, %v660
        %v701 = vpack.c.b16 %v665, %v661
        %v702 = vpack.c.b16 %v666, %v662
        %v703 = vpack.c.b16 %v671, %v667
        %v704 = vpack.c.b16 %v672, %v668
        %v705 = vpack.c.b16 %v673, %v669
        %v706 = vpack.c.b16 %v674, %v670
        %739 = vmatprep.subr.bf16.mxu0 %v704
        %740 = vmatpush1.bf16.msra.mxu0 %v703
        %741 = vmatprep.subr.bf16.mxu0 %v700
        %742 = vmatpush1.bf16.msra.mxu0 %v699
        %743 = vmatprep.subr.bf16.mxu0 %v696
        %744 = vmatpush1.bf16.msra.mxu0 %v695
        %745 = vmatprep.subr.bf16.mxu0 %v692
        %746 = vmatpush1.bf16.msra.mxu0 %v691
        %747 = vmatprep.subr.bf16.mxu0 %v688
        %748 = vmatpush1.bf16.msra.mxu0 %v687
        %749 = vmatprep.subr.bf16.mxu0 %v684
        %750 = vmatpush1.bf16.msra.mxu0 %v683
        %751 = vmatprep.subr.bf16.mxu0 %v680
        %752 = vmatpush1.bf16.msra.mxu0 %v679
        %753 = vmatprep.subr.bf16.mxu0 %v676
        %754 = vmatpush1.bf16.msra.mxu0 %v675
        %755 = vmatprep.subr.bf16.mxu0 0
        %756 = vmatpush2.bf16.msra.mxu0 0
        %757 = vmatprep.subr.bf16.mxu0 0
        %758 = vmatpush2.bf16.msra.mxu0 0
        %759 = vmatprep.subr.bf16.mxu0 0
        %760 = vmatpush2.bf16.msra.mxu0 0
        %761 = vmatprep.subr.bf16.mxu0 0
        %762 = vmatpush2.bf16.msra.mxu0 0
        %763 = vmatprep.subr.bf16.mxu0 0
        %764 = vmatpush2.bf16.msra.mxu0 0
        %765 = vmatprep.subr.bf16.mxu0 0
        %766 = vmatpush2.bf16.msra.mxu0 0
        %767 = vmatprep.subr.bf16.mxu0 0
        %768 = vmatpush2.bf16.msra.mxu0 0
        %769 = vmatprep.subr.bf16.mxu0 0
        %770 = vmatpush2.bf16.msra.mxu0 0
        %771 = vmatprep.mubr.bf16.mxu0 0
        %772 = vmatmul.mubr.bf16.gmra.mxu0 %v571
        %v773 = vpop.f32.mrf.mxu0
        %v774 = vadd.f32 %v538, %v773
        %v775 = vpop.f32.mrf.mxu0
        %v776 = vadd.f32 %v542, %v775
        %v777 = vpop.f32.mrf.mxu0
        %v778 = vadd.f32 %v538, %v777
        %v779 = vpop.f32.mrf.mxu0
        %v780 = vadd.f32 %v542, %v779
        %781 = vmatprep.mubr.bf16.mxu0 0
        %782 = vmatmul.mubr.bf16.gmra.mxu0 %v572
        %v783 = vpop.f32.mrf.mxu0
        %v784 = vadd.f32 %v538, %v783
        %v785 = vpop.f32.mrf.mxu0
        %v786 = vadd.f32 %v542, %v785
        %v787 = vpop.f32.mrf.mxu0
        %v788 = vadd.f32 %v538, %v787
        %v789 = vpop.f32.mrf.mxu0
        %v790 = vadd.f32 %v542, %v789
        %791 = vmatprep.mubr.bf16.mxu0 0
        %792 = vmatmul.mubr.bf16.gmra.mxu0 %v573
        %v793 = vpop.f32.mrf.mxu0
        %v794 = vadd.f32 %v538, %v793
        %v795 = vpop.f32.mrf.mxu0
        %v796 = vadd.f32 %v542, %v795
        %v797 = vpop.f32.mrf.mxu0
        %v798 = vadd.f32 %v538, %v797
        %v799 = vpop.f32.mrf.mxu0
        %v800 = vadd.f32 %v542, %v799
        %801 = vmatprep.mubr.bf16.mxu0 0
        %802 = vmatmul.mubr.bf16.gmra.mxu0 %v574
        %v803 = vpop.f32.mrf.mxu0
        %v804 = vadd.f32 %v538, %v803
        %v805 = vpop.f32.mrf.mxu0
        %v806 = vadd.f32 %v542, %v805
        %v807 = vpop.f32.mrf.mxu0
        %v808 = vadd.f32 %v538, %v807
        %v809 = vpop.f32.mrf.mxu0
        %v810 = vadd.f32 %v542, %v809
        %811 = vdwg.mxu0
        %812 = vmatprep.subr.bf16.mxu0 %v706
        %813 = vmatpush1.bf16.msra.mxu0 %v705
        %814 = vmatprep.subr.bf16.mxu0 %v702
        %815 = vmatpush1.bf16.msra.mxu0 %v701
        %816 = vmatprep.subr.bf16.mxu0 %v698
        %817 = vmatpush1.bf16.msra.mxu0 %v697
        %818 = vmatprep.subr.bf16.mxu0 %v694
        %819 = vmatpush1.bf16.msra.mxu0 %v693
        %820 = vmatprep.subr.bf16.mxu0 %v690
        %821 = vmatpush1.bf16.msra.mxu0 %v689
        %822 = vmatprep.subr.bf16.mxu0 %v686
        %823 = vmatpush1.bf16.msra.mxu0 %v685
        %824 = vmatprep.subr.bf16.mxu0 %v682
        %825 = vmatpush1.bf16.msra.mxu0 %v681
        %826 = vmatprep.subr.bf16.mxu0 %v678
        %827 = vmatpush1.bf16.msra.mxu0 %v677
        %828 = vmatprep.subr.bf16.mxu0 0
        %829 = vmatpush2.bf16.msra.mxu0 0
        %830 = vmatprep.subr.bf16.mxu0 0
        %831 = vmatpush2.bf16.msra.mxu0 0
        %832 = vmatprep.subr.bf16.mxu0 0
        %833 = vmatpush2.bf16.msra.mxu0 0
        %834 = vmatprep.subr.bf16.mxu0 0
        %835 = vmatpush2.bf16.msra.mxu0 0
        %836 = vmatprep.subr.bf16.mxu0 0
        %837 = vmatpush2.bf16.msra.mxu0 0
        %838 = vmatprep.subr.bf16.mxu0 0
        %839 = vmatpush2.bf16.msra.mxu0 0
        %840 = vmatprep.subr.bf16.mxu0 0
        %841 = vmatpush2.bf16.msra.mxu0 0
        %842 = vmatprep.subr.bf16.mxu0 0
        %843 = vmatpush2.bf16.msra.mxu0 0
        %844 = vmatprep.mubr.bf16.mxu0 0
        %845 = vmatmul.mubr.bf16.gmra.mxu0 %v571
        %v846 = vpop.f32.mrf.mxu0
        %v847 = vadd.f32 %v546, %v846
        %v848 = vpop.f32.mrf.mxu0
        %v849 = vadd.f32 %v550, %v848
        %v850 = vpop.f32.mrf.mxu0
        %v851 = vadd.f32 %v546, %v850
        %v852 = vpop.f32.mrf.mxu0
        %v853 = vadd.f32 %v550, %v852
        %854 = vmatprep.mubr.bf16.mxu0 0
        %855 = vmatmul.mubr.bf16.gmra.mxu0 %v572
        %v856 = vpop.f32.mrf.mxu0
        %v857 = vadd.f32 %v546, %v856
        %v858 = vpop.f32.mrf.mxu0
        %v859 = vadd.f32 %v550, %v858
        %v860 = vpop.f32.mrf.mxu0
        %v861 = vadd.f32 %v546, %v860
        %v862 = vpop.f32.mrf.mxu0
        %v863 = vadd.f32 %v550, %v862
        %864 = vmatprep.mubr.bf16.mxu0 0
        %865 = vmatmul.mubr.bf16.gmra.mxu0 %v573
        %v866 = vpop.f32.mrf.mxu0
        %v867 = vadd.f32 %v546, %v866
        %v868 = vpop.f32.mrf.mxu0
        %v869 = vadd.f32 %v550, %v868
        %v870 = vpop.f32.mrf.mxu0
        %v871 = vadd.f32 %v546, %v870
        %v872 = vpop.f32.mrf.mxu0
        %v873 = vadd.f32 %v550, %v872
        %874 = vmatprep.mubr.bf16.mxu0 0
        %875 = vmatmul.mubr.bf16.gmra.mxu0 %v574
        %v876 = vpop.f32.mrf.mxu0
        %v877 = vadd.f32 %v546, %v876
        %v878 = vpop.f32.mrf.mxu0
        %v879 = vadd.f32 %v550, %v878
        %v880 = vpop.f32.mrf.mxu0
        %v881 = vadd.f32 %v546, %v880
        %v882 = vpop.f32.mrf.mxu0
        %v883 = vadd.f32 %v550, %v882
        %884 = vdwg.mxu0
        %885 = vst [vmem:[#allocation2] sm:$0xff] %v774
        %886 = vst [vmem:[#allocation2 + $0x8] sm:$0xff] %v776
        %887 = vst [vmem:[#allocation2 + $0x10] sm:$0xff] %v847
        %888 = vst [vmem:[#allocation2 + $0x18] sm:$0xff] %v849
        %889 = vst [vmem:[#allocation2 + $0x20] sm:$0xff] %v778
        %890 = vst [vmem:[#allocation2 + $0x28] sm:$0xff] %v780
        %891 = vst [vmem:[#allocation2 + $0x30] sm:$0xff] %v851
        %892 = vst [vmem:[#allocation2 + $0x38] sm:$0xff] %v853
        %893 = vst [vmem:[#allocation2 + $0x40] sm:$0xff] %v784
        %894 = vst [vmem:[#allocation2 + $0x48] sm:$0xff] %v786
        %895 = vst [vmem:[#allocation2 + $0x50] sm:$0xff] %v857
        %896 = vst [vmem:[#allocation2 + $0x58] sm:$0xff] %v859
        %897 = vst [vmem:[#allocation2 + $0x60] sm:$0xff] %v788
        %898 = vst [vmem:[#allocation2 + $0x68] sm:$0xff] %v790
        %899 = vst [vmem:[#allocation2 + $0x70] sm:$0xff] %v861
        %900 = vst [vmem:[#allocation2 + $0x78] sm:$0xff] %v863
        %901 = vst [vmem:[#allocation2 + $0x80] sm:$0xff] %v794
        %902 = vst [vmem:[#allocation2 + $0x88] sm:$0xff] %v796
        %903 = vst [vmem:[#allocation2 + $0x90] sm:$0xff] %v867
        %904 = vst [vmem:[#allocation2 + $0x98] sm:$0xff] %v869
        %905 = vst [vmem:[#allocation2 + $0xa0] sm:$0xff] %v798
        %906 = vst [vmem:[#allocation2 + $0xa8] sm:$0xff] %v800
        %907 = vst [vmem:[#allocation2 + $0xb0] sm:$0xff] %v871
        %908 = vst [vmem:[#allocation2 + $0xb8] sm:$0xff] %v873
        %909 = vst [vmem:[#allocation2 + $0xc0] sm:$0xff] %v804
        %910 = vst [vmem:[#allocation2 + $0xc8] sm:$0xff] %v806
        %911 = vst [vmem:[#allocation2 + $0xd0] sm:$0xff] %v877
        %912 = vst [vmem:[#allocation2 + $0xd8] sm:$0xff] %v879
        %913 = vst [vmem:[#allocation2 + $0xe0] sm:$0xff] %v808
        %914 = vst [vmem:[#allocation2 + $0xe8] sm:$0xff] %v810
        %915 = vst [vmem:[#allocation2 + $0xf0] sm:$0xff] %v881
        %916 = vst [vmem:[#allocation2 + $0xf8] sm:$0xff] %v883
        %v917 = vld [vmem:[%s409] sm:$0xff]
        %v918 = vld [vmem:[%s409 + $0x8] sm:$0xff]
        %v919 = vld [vmem:[%s409 + $0x10] sm:$0xff]
        %v920 = vld [vmem:[%s409 + $0x18] sm:$0xff]
        %v921 = vld [vmem:[%s409 + $0x20] sm:$0xff]
        %v922 = vld [vmem:[%s409 + $0x28] sm:$0xff]
        %v923 = vld [vmem:[%s409 + $0x30] sm:$0xff]
        %v924 = vld [vmem:[%s409 + $0x38] sm:$0xff]
        %v925 = vld [vmem:[%s409 + $0x40] sm:$0xff]
        %v926 = vld [vmem:[%s409 + $0x48] sm:$0xff]
        %v927 = vld [vmem:[%s409 + $0x50] sm:$0xff]
        %v928 = vld [vmem:[%s409 + $0x58] sm:$0xff]
        %v929 = vld [vmem:[%s409 + $0x60] sm:$0xff]
        %v930 = vld [vmem:[%s409 + $0x68] sm:$0xff]
        %v931 = vld [vmem:[%s409 + $0x70] sm:$0xff]
        %v932 = vld [vmem:[%s409 + $0x78] sm:$0xff]
        %v933 = vld [vmem:[%s409 + $0x80] sm:$0xff]
        %v934 = vld [vmem:[%s409 + $0x88] sm:$0xff]
        %v935 = vld [vmem:[%s409 + $0x90] sm:$0xff]
        %v936 = vld [vmem:[%s409 + $0x98] sm:$0xff]
        %v937 = vld [vmem:[%s409 + $0xa0] sm:$0xff]
        %v938 = vld [vmem:[%s409 + $0xa8] sm:$0xff]
        %v939 = vld [vmem:[%s409 + $0xb0] sm:$0xff]
        %v940 = vld [vmem:[%s409 + $0xb8] sm:$0xff]
        %v941 = vld [vmem:[%s409 + $0xc0] sm:$0xff]
        %v942 = vld [vmem:[%s409 + $0xc8] sm:$0xff]
        %v943 = vld [vmem:[%s409 + $0xd0] sm:$0xff]
        %v944 = vld [vmem:[%s409 + $0xd8] sm:$0xff]
        %v945 = vld [vmem:[%s409 + $0xe0] sm:$0xff]
        %v946 = vld [vmem:[%s409 + $0xe8] sm:$0xff]
        %v947 = vld [vmem:[%s409 + $0xf0] sm:$0xff]
        %v948 = vld [vmem:[%s409 + $0xf8] sm:$0xff]
        %v949 = vld [vmem:[%s471] sm:$0xff]
        %p950 = scmp.eq.s32.totalorder %s36, 0
        %s951 = ssub.s32 0, %s38
        %s952 = scalar_select %p950, %s38, %s951
        %s953 = smul.u32 %s952, 8
        %s954 = scalar_select %p950, 0, 7
        %s955 = scalar_select %p950, 1, 4294967295
        %v956 = vld [vmem:[%s460] sm:$0xff]
        %v957 = vld [vmem:[%s467] sm:$0xff]
        %s958 = sadd.s32 %s953, %s954
        %s959 = smul.u32 %s954, 4
        %s960 = smul.addr %s959, 8
        %s961 = scalar_lea.vmem [#allocation2], %s960
        %v962 = vld [vmem:[%s961] sm:$0xff]
        %v963 = vld [vmem:[%s961 + $0x8] sm:$0xff]
        %v964 = vld [vmem:[%s961 + $0x10] sm:$0xff]
        %v965 = vld [vmem:[%s961 + $0x18] sm:$0xff]
        %v966 = vpack.c.bf16 %v956, %v956
        %v999 = vunpack.c.l.b16 %v917
        %v1000 = vunpack.c.h.b16 %v917
        %v1001 = vunpack.c.l.b16 %v918
        %v1002 = vunpack.c.h.b16 %v918
        %v1003 = vunpack.c.l.b16 %v919
        %v1004 = vunpack.c.h.b16 %v919
        %v1005 = vunpack.c.l.b16 %v920
        %v1006 = vunpack.c.h.b16 %v920
        %v1007 = vunpack.c.l.b16 %v921
        %v1008 = vunpack.c.h.b16 %v921
        %v1009 = vunpack.c.l.b16 %v922
        %v1010 = vunpack.c.h.b16 %v922
        %v1011 = vunpack.c.l.b16 %v923
        %v1012 = vunpack.c.h.b16 %v923
        %v1013 = vunpack.c.l.b16 %v924
        %v1014 = vunpack.c.h.b16 %v924
        %v1015 = vunpack.c.l.b16 %v925
        %v1016 = vunpack.c.h.b16 %v925
        %v1017 = vunpack.c.l.b16 %v926
        %v1018 = vunpack.c.h.b16 %v926
        %v1019 = vunpack.c.l.b16 %v927
        %v1020 = vunpack.c.h.b16 %v927
        %v1021 = vunpack.c.l.b16 %v928
        %v1022 = vunpack.c.h.b16 %v928
        %v1023 = vunpack.c.l.b16 %v929
        %v1024 = vunpack.c.h.b16 %v929
        %v1025 = vunpack.c.l.b16 %v930
        %v1026 = vunpack.c.h.b16 %v930
        %v1027 = vunpack.c.l.b16 %v931
        %v1028 = vunpack.c.h.b16 %v931
        %v1029 = vunpack.c.l.b16 %v932
        %v1030 = vunpack.c.h.b16 %v932
        %v1031 = vunpack.c.l.b16 %v933
        %v1032 = vunpack.c.h.b16 %v933
        %v1033 = vunpack.c.l.b16 %v934
        %v1034 = vunpack.c.h.b16 %v934
        %v1035 = vunpack.c.l.b16 %v935
        %v1036 = vunpack.c.h.b16 %v935
        %v1037 = vunpack.c.l.b16 %v936
        %v1038 = vunpack.c.h.b16 %v936
        %v1039 = vunpack.c.l.b16 %v937
        %v1040 = vunpack.c.h.b16 %v937
        %v1041 = vunpack.c.l.b16 %v938
        %v1042 = vunpack.c.h.b16 %v938
        %v1043 = vunpack.c.l.b16 %v939
        %v1044 = vunpack.c.h.b16 %v939
        %v1045 = vunpack.c.l.b16 %v940
        %v1046 = vunpack.c.h.b16 %v940
        %v1047 = vunpack.c.l.b16 %v941
        %v1048 = vunpack.c.h.b16 %v941
        %v1049 = vunpack.c.l.b16 %v942
        %v1050 = vunpack.c.h.b16 %v942
        %v1051 = vunpack.c.l.b16 %v943
        %v1052 = vunpack.c.h.b16 %v943
        %v1053 = vunpack.c.l.b16 %v944
        %v1054 = vunpack.c.h.b16 %v944
        %v1055 = vunpack.c.l.b16 %v945
        %v1056 = vunpack.c.h.b16 %v945
        %v1057 = vunpack.c.l.b16 %v946
        %v1058 = vunpack.c.h.b16 %v946
        %v1059 = vunpack.c.l.b16 %v947
        %v1060 = vunpack.c.h.b16 %v947
        %v1061 = vunpack.c.l.b16 %v948
        %v1062 = vunpack.c.h.b16 %v948
        %v1063 = vpack.c.b16 %v1003, %v999
        %v1064 = vpack.c.b16 %v1004, %v1000
        %v1065 = vpack.c.b16 %v1005, %v1001
        %v1066 = vpack.c.b16 %v1006, %v1002
        %v1067 = vpack.c.b16 %v1011, %v1007
        %v1068 = vpack.c.b16 %v1012, %v1008
        %v1069 = vpack.c.b16 %v1013, %v1009
        %v1070 = vpack.c.b16 %v1014, %v1010
        %v1071 = vpack.c.b16 %v1019, %v1015
        %v1072 = vpack.c.b16 %v1020, %v1016
        %v1073 = vpack.c.b16 %v1021, %v1017
        %v1074 = vpack.c.b16 %v1022, %v1018
        %v1075 = vpack.c.b16 %v1027, %v1023
        %v1076 = vpack.c.b16 %v1028, %v1024
        %v1077 = vpack.c.b16 %v1029, %v1025
        %v1078 = vpack.c.b16 %v1030, %v1026
        %v1079 = vpack.c.b16 %v1035, %v1031
        %v1080 = vpack.c.b16 %v1036, %v1032
        %v1081 = vpack.c.b16 %v1037, %v1033
        %v1082 = vpack.c.b16 %v1038, %v1034
        %v1083 = vpack.c.b16 %v1043, %v1039
        %v1084 = vpack.c.b16 %v1044, %v1040
        %v1085 = vpack.c.b16 %v1045, %v1041
        %v1086 = vpack.c.b16 %v1046, %v1042
        %v1087 = vpack.c.b16 %v1051, %v1047
        %v1088 = vpack.c.b16 %v1052, %v1048
        %v1089 = vpack.c.b16 %v1053, %v1049
        %v1090 = vpack.c.b16 %v1054, %v1050
        %v1091 = vpack.c.b16 %v1059, %v1055
        %v1092 = vpack.c.b16 %v1060, %v1056
        %v1093 = vpack.c.b16 %v1061, %v1057
        %v1094 = vpack.c.b16 %v1062, %v1058
        %1127 = vmatprep.subr.bf16.mxu0 %v1092
        %1128 = vmatpush1.bf16.msra.mxu0 %v1091
        %1129 = vmatprep.subr.bf16.mxu0 %v1088
        %1130 = vmatpush1.bf16.msra.mxu0 %v1087
        %1131 = vmatprep.subr.bf16.mxu0 %v1084
        %1132 = vmatpush1.bf16.msra.mxu0 %v1083
        %1133 = vmatprep.subr.bf16.mxu0 %v1080
        %1134 = vmatpush1.bf16.msra.mxu0 %v1079
        %1135 = vmatprep.subr.bf16.mxu0 %v1076
        %1136 = vmatpush1.bf16.msra.mxu0 %v1075
        %1137 = vmatprep.subr.bf16.mxu0 %v1072
        %1138 = vmatpush1.bf16.msra.mxu0 %v1071
        %1139 = vmatprep.subr.bf16.mxu0 %v1068
        %1140 = vmatpush1.bf16.msra.mxu0 %v1067
        %1141 = vmatprep.subr.bf16.mxu0 %v1064
        %1142 = vmatpush1.bf16.msra.mxu0 %v1063
        %1143 = vmatprep.subr.bf16.mxu0 0
        %1144 = vmatpush2.bf16.msra.mxu0 0
        %1145 = vmatprep.subr.bf16.mxu0 0
        %1146 = vmatpush2.bf16.msra.mxu0 0
        %1147 = vmatprep.subr.bf16.mxu0 0
        %1148 = vmatpush2.bf16.msra.mxu0 0
        %1149 = vmatprep.subr.bf16.mxu0 0
        %1150 = vmatpush2.bf16.msra.mxu0 0
        %1151 = vmatprep.subr.bf16.mxu0 0
        %1152 = vmatpush2.bf16.msra.mxu0 0
        %1153 = vmatprep.subr.bf16.mxu0 0
        %1154 = vmatpush2.bf16.msra.mxu0 0
        %1155 = vmatprep.subr.bf16.mxu0 0
        %1156 = vmatpush2.bf16.msra.mxu0 0
        %1157 = vmatprep.subr.bf16.mxu0 0
        %1158 = vmatpush2.bf16.msra.mxu0 0
        %1159 = vmatprep.mubr.bf16.mxu0 0
        %1160 = vmatmul.mubr.bf16.gmra.mxu0 %v966
        %v1161 = vpop.f32.mrf.mxu0
        %v1162 = vadd.f32 0.0, %v1161
        %v1163 = vpop.f32.mrf.mxu0
        %v1164 = vadd.f32 0.0, %v1163
        %v1165 = vpop.f32.mrf.mxu0
        %v1166 = vpop.f32.mrf.mxu0
        %1167 = vdwg.mxu0
        %1168 = vmatprep.subr.bf16.mxu0 %v1094
        %1169 = vmatpush1.bf16.msra.mxu0 %v1093
        %1170 = vmatprep.subr.bf16.mxu0 %v1090
        %1171 = vmatpush1.bf16.msra.mxu0 %v1089
        %1172 = vmatprep.subr.bf16.mxu0 %v1086
        %1173 = vmatpush1.bf16.msra.mxu0 %v1085
        %1174 = vmatprep.subr.bf16.mxu0 %v1082
        %1175 = vmatpush1.bf16.msra.mxu0 %v1081
        %1176 = vmatprep.subr.bf16.mxu0 %v1078
        %1177 = vmatpush1.bf16.msra.mxu0 %v1077
        %1178 = vmatprep.subr.bf16.mxu0 %v1074
        %1179 = vmatpush1.bf16.msra.mxu0 %v1073
        %1180 = vmatprep.subr.bf16.mxu0 %v1070
        %1181 = vmatpush1.bf16.msra.mxu0 %v1069
        %1182 = vmatprep.subr.bf16.mxu0 %v1066
        %1183 = vmatpush1.bf16.msra.mxu0 %v1065
        %1184 = vmatprep.subr.bf16.mxu0 0
        %1185 = vmatpush2.bf16.msra.mxu0 0
        %1186 = vmatprep.subr.bf16.mxu0 0
        %1187 = vmatpush2.bf16.msra.mxu0 0
        %1188 = vmatprep.subr.bf16.mxu0 0
        %1189 = vmatpush2.bf16.msra.mxu0 0
        %1190 = vmatprep.subr.bf16.mxu0 0
        %1191 = vmatpush2.bf16.msra.mxu0 0
        %1192 = vmatprep.subr.bf16.mxu0 0
        %1193 = vmatpush2.bf16.msra.mxu0 0
        %1194 = vmatprep.subr.bf16.mxu0 0
        %1195 = vmatpush2.bf16.msra.mxu0 0
        %1196 = vmatprep.subr.bf16.mxu0 0
        %1197 = vmatpush2.bf16.msra.mxu0 0
        %1198 = vmatprep.subr.bf16.mxu0 0
        %1199 = vmatpush2.bf16.msra.mxu0 0
        %1200 = vmatprep.mubr.bf16.mxu0 0
        %1201 = vmatmul.mubr.bf16.gmra.mxu0 %v966
        %v1202 = vpop.f32.mrf.mxu0
        %v1203 = vadd.f32 0.0, %v1202
        %v1204 = vpop.f32.mrf.mxu0
        %v1205 = vadd.f32 0.0, %v1204
        %v1206 = vpop.f32.mrf.mxu0
        %v1207 = vpop.f32.mrf.mxu0
        %1208 = vdwg.mxu0
        %v1209 = vadd.f32 %v962, %v1162
        %v1210 = vadd.f32 %v963, %v1164
        %v1211 = vadd.f32 %v964, %v1203
        %v1212 = vadd.f32 %v965, %v1205
        %v1213 = vxor.u32 %v1209, 2147483648
        %v1214 = vmul.f32 %v1213, 1.442695
        %v1215 = vpow.pop %v1214
        %v1216 = vadd.f32 %v1215, 1.0
        %v1217 = vrcp.pop %v1216
        %v1218 = vmul.f32 1.0, %v1217
        %v1219 = vxor.u32 %v1210, 2147483648
        %v1220 = vmul.f32 %v1219, 1.442695
        %v1221 = vpow.pop %v1220
        %v1222 = vadd.f32 %v1221, 1.0
        %v1223 = vrcp.pop %v1222
        %v1224 = vmul.f32 1.0, %v1223
        %v1225 = vtanh.pop %v1211
        %v1226 = vxor.u32 %v1212, 2147483648
        %v1227 = vmul.f32 %v1226, 1.442695
        %v1228 = vpow.pop %v1227
        %v1229 = vadd.f32 %v1228, 1.0
        %v1230 = vrcp.pop %v1229
        %v1231 = vmul.f32 1.0, %v1230
        %v1232 = vmul.f32 %v1224, %v957
        %v1233 = vmul.f32 %v1218, %v1225
        %v1234 = vadd.f32 %v1232, %v1233
        %v1235 = vtanh.pop %v1234
        %v1236 = vmul.f32 %v1231, %v1235
        %v1237 = vstv %s958
        %vm1238 = vcmp.lt.s32.totalorder %v1237, %v949
        %v1239 = vsel %vm1238, 1, 0
        %1240 = vset.pattern.permute.xlu0 0
        %1241 = vperm.xlu0 %1240, %v1239
        %v1242 = vpop.permute.xlu0 %1241
        %vm1243 = vcmp.eq.s32.totalorder %v1242, 1
        %v1244 = vsel %vm1243, %v1236, 0.0
        %v1245 = vpack.c.bf16 %v1244, %v1244
        %s1246 = smul.addr %s954, 4
        %s1247 = scalar_lea.vmem %s453, %s1246 [#allocation9]
        %1248 = vst [vmem:[%s1247] sm:$0xf] %v1245
        %v1249 = vsel %vm1243, %v1236, %v956
        %v1250 = vsel %vm1243, %v1234, %v957
        %s1251 = sadd.s32 %s954, %s955
        %s1252 = sadd.s32 %s953, %s1251
        %s1253 = smul.u32 %s1251, 4
        %s1254 = smul.addr %s1253, 8
        %s1255 = scalar_lea.vmem [#allocation2], %s1254
        %v1256 = vld [vmem:[%s1255] sm:$0xff]
        %v1257 = vld [vmem:[%s1255 + $0x8] sm:$0xff]
        %v1258 = vld [vmem:[%s1255 + $0x10] sm:$0xff]
        %v1259 = vld [vmem:[%s1255 + $0x18] sm:$0xff]
        %v1260 = vpack.c.bf16 %v1249, %v1249
        %1261 = vmatprep.subr.bf16.mxu0 %v1092
        %1262 = vmatpush1.bf16.msra.mxu0 %v1091
        %1263 = vmatprep.subr.bf16.mxu0 %v1088
        %1264 = vmatpush1.bf16.msra.mxu0 %v1087
        %1265 = vmatprep.subr.bf16.mxu0 %v1084
        %1266 = vmatpush1.bf16.msra.mxu0 %v1083
        %1267 = vmatprep.subr.bf16.mxu0 %v1080
        %1268 = vmatpush1.bf16.msra.mxu0 %v1079
        %1269 = vmatprep.subr.bf16.mxu0 %v1076
        %1270 = vmatpush1.bf16.msra.mxu0 %v1075
        %1271 = vmatprep.subr.bf16.mxu0 %v1072
        %1272 = vmatpush1.bf16.msra.mxu0 %v1071
        %1273 = vmatprep.subr.bf16.mxu0 %v1068
        %1274 = vmatpush1.bf16.msra.mxu0 %v1067
        %1275 = vmatprep.subr.bf16.mxu0 %v1064
        %1276 = vmatpush1.bf16.msra.mxu0 %v1063
        %1277 = vmatprep.subr.bf16.mxu0 0
        %1278 = vmatpush2.bf16.msra.mxu0 0
        %1279 = vmatprep.subr.bf16.mxu0 0
        %1280 = vmatpush2.bf16.msra.mxu0 0
        %1281 = vmatprep.subr.bf16.mxu0 0
        %1282 = vmatpush2.bf16.msra.mxu0 0
        %1283 = vmatprep.subr.bf16.mxu0 0
        %1284 = vmatpush2.bf16.msra.mxu0 0
        %1285 = vmatprep.subr.bf16.mxu0 0
        %1286 = vmatpush2.bf16.msra.mxu0 0
        %1287 = vmatprep.subr.bf16.mxu0 0
        %1288 = vmatpush2.bf16.msra.mxu0 0
        %1289 = vmatprep.subr.bf16.mxu0 0
        %1290 = vmatpush2.bf16.msra.mxu0 0
        %1291 = vmatprep.subr.bf16.mxu0 0
        %1292 = vmatpush2.bf16.msra.mxu0 0
        %1293 = vmatprep.mubr.bf16.mxu0 0
        %1294 = vmatmul.mubr.bf16.gmra.mxu0 %v1260
        %v1295 = vpop.f32.mrf.mxu0
        %v1296 = vadd.f32 0.0, %v1295
        %v1297 = vpop.f32.mrf.mxu0
        %v1298 = vadd.f32 0.0, %v1297
        %v1299 = vpop.f32.mrf.mxu0
        %v1300 = vpop.f32.mrf.mxu0
        %1301 = vdwg.mxu0
        %1302 = vmatprep.subr.bf16.mxu0 %v1094
        %1303 = vmatpush1.bf16.msra.mxu0 %v1093
        %1304 = vmatprep.subr.bf16.mxu0 %v1090
        %1305 = vmatpush1.bf16.msra.mxu0 %v1089
        %1306 = vmatprep.subr.bf16.mxu0 %v1086
        %1307 = vmatpush1.bf16.msra.mxu0 %v1085
        %1308 = vmatprep.subr.bf16.mxu0 %v1082
        %1309 = vmatpush1.bf16.msra.mxu0 %v1081
        %1310 = vmatprep.subr.bf16.mxu0 %v1078
        %1311 = vmatpush1.bf16.msra.mxu0 %v1077
        %1312 = vmatprep.subr.bf16.mxu0 %v1074
        %1313 = vmatpush1.bf16.msra.mxu0 %v1073
        %1314 = vmatprep.subr.bf16.mxu0 %v1070
        %1315 = vmatpush1.bf16.msra.mxu0 %v1069
        %1316 = vmatprep.subr.bf16.mxu0 %v1066
        %1317 = vmatpush1.bf16.msra.mxu0 %v1065
        %1318 = vmatprep.subr.bf16.mxu0 0
        %1319 = vmatpush2.bf16.msra.mxu0 0
        %1320 = vmatprep.subr.bf16.mxu0 0
        %1321 = vmatpush2.bf16.msra.mxu0 0
        %1322 = vmatprep.subr.bf16.mxu0 0
        %1323 = vmatpush2.bf16.msra.mxu0 0
        %1324 = vmatprep.subr.bf16.mxu0 0
        %1325 = vmatpush2.bf16.msra.mxu0 0
        %1326 = vmatprep.subr.bf16.mxu0 0
        %1327 = vmatpush2.bf16.msra.mxu0 0
        %1328 = vmatprep.subr.bf16.mxu0 0
        %1329 = vmatpush2.bf16.msra.mxu0 0
        %1330 = vmatprep.subr.bf16.mxu0 0
        %1331 = vmatpush2.bf16.msra.mxu0 0
        %1332 = vmatprep.subr.bf16.mxu0 0
        %1333 = vmatpush2.bf16.msra.mxu0 0
        %1334 = vmatprep.mubr.bf16.mxu0 0
        %1335 = vmatmul.mubr.bf16.gmra.mxu0 %v1260
        %v1336 = vpop.f32.mrf.mxu0
        %v1337 = vadd.f32 0.0, %v1336
        %v1338 = vpop.f32.mrf.mxu0
        %v1339 = vadd.f32 0.0, %v1338
        %v1340 = vpop.f32.mrf.mxu0
        %v1341 = vpop.f32.mrf.mxu0
        %1342 = vdwg.mxu0
        %v1343 = vadd.f32 %v1256, %v1296
        %v1344 = vadd.f32 %v1257, %v1298
        %v1345 = vadd.f32 %v1258, %v1337
        %v1346 = vadd.f32 %v1259, %v1339
        %v1347 = vxor.u32 %v1343, 2147483648
        %v1348 = vmul.f32 %v1347, 1.442695
        %v1349 = vpow.pop %v1348
        %v1350 = vadd.f32 %v1349, 1.0
        %v1351 = vrcp.pop %v1350
        %v1352 = vmul.f32 1.0, %v1351
        %v1353 = vxor.u32 %v1344, 2147483648
        %v1354 = vmul.f32 %v1353, 1.442695
        %v1355 = vpow.pop %v1354
        %v1356 = vadd.f32 %v1355, 1.0
        %v1357 = vrcp.pop %v1356
        %v1358 = vmul.f32 1.0, %v1357
        %v1359 = vtanh.pop %v1345
        %v1360 = vxor.u32 %v1346, 2147483648
        %v1361 = vmul.f32 %v1360, 1.442695
        %v1362 = vpow.pop %v1361
        %v1363 = vadd.f32 %v1362, 1.0
        %v1364 = vrcp.pop %v1363
        %v1365 = vmul.f32 1.0, %v1364
        %v1366 = vmul.f32 %v1358, %v1250
        %v1367 = vmul.f32 %v1352, %v1359
        %v1368 = vadd.f32 %v1366, %v1367
        %v1369 = vtanh.pop %v1368
        %v1370 = vmul.f32 %v1365, %v1369
        %v1371 = vstv %s1252
        %vm1372 = vcmp.lt.s32.totalorder %v1371, %v949
        %v1373 = vsel %vm1372, 1, 0
        %1374 = vset.pattern.permute.xlu0 0
        %1375 = vperm.xlu0 %1374, %v1373
        %v1376 = vpop.permute.xlu0 %1375
        %vm1377 = vcmp.eq.s32.totalorder %v1376, 1
        %v1378 = vsel %vm1377, %v1370, 0.0
        %v1379 = vpack.c.bf16 %v1378, %v1378
        %s1380 = smul.addr %s1251, 4
        %s1381 = scalar_lea.vmem %s453, %s1380 [#allocation9]
        %1382 = vst [vmem:[%s1381] sm:$0xf] %v1379
        %v1383 = vsel %vm1377, %v1370, %v1249
        %v1384 = vsel %vm1377, %v1368, %v1250
        %s1385 = smul.u32 %s955, 2
        %s1386 = sadd.s32 %s954, %s1385
        %s1387 = sadd.s32 %s953, %s1386
        %s1388 = smul.u32 %s1386, 4
        %s1389 = smul.addr %s1388, 8
        %s1390 = scalar_lea.vmem [#allocation2], %s1389
        %v1391 = vld [vmem:[%s1390] sm:$0xff]
        %v1392 = vld [vmem:[%s1390 + $0x8] sm:$0xff]
        %v1393 = vld [vmem:[%s1390 + $0x10] sm:$0xff]
        %v1394 = vld [vmem:[%s1390 + $0x18] sm:$0xff]
        %v1395 = vpack.c.bf16 %v1383, %v1383
        %1396 = vmatprep.subr.bf16.mxu0 %v1092
        %1397 = vmatpush1.bf16.msra.mxu0 %v1091
        %1398 = vmatprep.subr.bf16.mxu0 %v1088
        %1399 = vmatpush1.bf16.msra.mxu0 %v1087
        %1400 = vmatprep.subr.bf16.mxu0 %v1084
        %1401 = vmatpush1.bf16.msra.mxu0 %v1083
        %1402 = vmatprep.subr.bf16.mxu0 %v1080
        %1403 = vmatpush1.bf16.msra.mxu0 %v1079
        %1404 = vmatprep.subr.bf16.mxu0 %v1076
        %1405 = vmatpush1.bf16.msra.mxu0 %v1075
        %1406 = vmatprep.subr.bf16.mxu0 %v1072
        %1407 = vmatpush1.bf16.msra.mxu0 %v1071
        %1408 = vmatprep.subr.bf16.mxu0 %v1068
        %1409 = vmatpush1.bf16.msra.mxu0 %v1067
        %1410 = vmatprep.subr.bf16.mxu0 %v1064
        %1411 = vmatpush1.bf16.msra.mxu0 %v1063
        %1412 = vmatprep.subr.bf16.mxu0 0
        %1413 = vmatpush2.bf16.msra.mxu0 0
        %1414 = vmatprep.subr.bf16.mxu0 0
        %1415 = vmatpush2.bf16.msra.mxu0 0
        %1416 = vmatprep.subr.bf16.mxu0 0
        %1417 = vmatpush2.bf16.msra.mxu0 0
        %1418 = vmatprep.subr.bf16.mxu0 0
        %1419 = vmatpush2.bf16.msra.mxu0 0
        %1420 = vmatprep.subr.bf16.mxu0 0
        %1421 = vmatpush2.bf16.msra.mxu0 0
        %1422 = vmatprep.subr.bf16.mxu0 0
        %1423 = vmatpush2.bf16.msra.mxu0 0
        %1424 = vmatprep.subr.bf16.mxu0 0
        %1425 = vmatpush2.bf16.msra.mxu0 0
        %1426 = vmatprep.subr.bf16.mxu0 0
        %1427 = vmatpush2.bf16.msra.mxu0 0
        %1428 = vmatprep.mubr.bf16.mxu0 0
        %1429 = vmatmul.mubr.bf16.gmra.mxu0 %v1395
        %v1430 = vpop.f32.mrf.mxu0
        %v1431 = vadd.f32 0.0, %v1430
        %v1432 = vpop.f32.mrf.mxu0
        %v1433 = vadd.f32 0.0, %v1432
        %v1434 = vpop.f32.mrf.mxu0
        %v1435 = vpop.f32.mrf.mxu0
        %1436 = vdwg.mxu0
        %1437 = vmatprep.subr.bf16.mxu0 %v1094
        %1438 = vmatpush1.bf16.msra.mxu0 %v1093
        %1439 = vmatprep.subr.bf16.mxu0 %v1090
        %1440 = vmatpush1.bf16.msra.mxu0 %v1089
        %1441 = vmatprep.subr.bf16.mxu0 %v1086
        %1442 = vmatpush1.bf16.msra.mxu0 %v1085
        %1443 = vmatprep.subr.bf16.mxu0 %v1082
        %1444 = vmatpush1.bf16.msra.mxu0 %v1081
        %1445 = vmatprep.subr.bf16.mxu0 %v1078
        %1446 = vmatpush1.bf16.msra.mxu0 %v1077
        %1447 = vmatprep.subr.bf16.mxu0 %v1074
        %1448 = vmatpush1.bf16.msra.mxu0 %v1073
        %1449 = vmatprep.subr.bf16.mxu0 %v1070
        %1450 = vmatpush1.bf16.msra.mxu0 %v1069
        %1451 = vmatprep.subr.bf16.mxu0 %v1066
        %1452 = vmatpush1.bf16.msra.mxu0 %v1065
        %1453 = vmatprep.subr.bf16.mxu0 0
        %1454 = vmatpush2.bf16.msra.mxu0 0
        %1455 = vmatprep.subr.bf16.mxu0 0
        %1456 = vmatpush2.bf16.msra.mxu0 0
        %1457 = vmatprep.subr.bf16.mxu0 0
        %1458 = vmatpush2.bf16.msra.mxu0 0
        %1459 = vmatprep.subr.bf16.mxu0 0
        %1460 = vmatpush2.bf16.msra.mxu0 0
        %1461 = vmatprep.subr.bf16.mxu0 0
        %1462 = vmatpush2.bf16.msra.mxu0 0
        %1463 = vmatprep.subr.bf16.mxu0 0
        %1464 = vmatpush2.bf16.msra.mxu0 0
        %1465 = vmatprep.subr.bf16.mxu0 0
        %1466 = vmatpush2.bf16.msra.mxu0 0
        %1467 = vmatprep.subr.bf16.mxu0 0
        %1468 = vmatpush2.bf16.msra.mxu0 0
        %1469 = vmatprep.mubr.bf16.mxu0 0
        %1470 = vmatmul.mubr.bf16.gmra.mxu0 %v1395
        %v1471 = vpop.f32.mrf.mxu0
        %v1472 = vadd.f32 0.0, %v1471
        %v1473 = vpop.f32.mrf.mxu0
        %v1474 = vadd.f32 0.0, %v1473
        %v1475 = vpop.f32.mrf.mxu0
        %v1476 = vpop.f32.mrf.mxu0
        %1477 = vdwg.mxu0
        %v1478 = vadd.f32 %v1391, %v1431
        %v1479 = vadd.f32 %v1392, %v1433
        %v1480 = vadd.f32 %v1393, %v1472
        %v1481 = vadd.f32 %v1394, %v1474
        %v1482 = vxor.u32 %v1478, 2147483648
        %v1483 = vmul.f32 %v1482, 1.442695
        %v1484 = vpow.pop %v1483
        %v1485 = vadd.f32 %v1484, 1.0
        %v1486 = vrcp.pop %v1485
        %v1487 = vmul.f32 1.0, %v1486
        %v1488 = vxor.u32 %v1479, 2147483648
        %v1489 = vmul.f32 %v1488, 1.442695
        %v1490 = vpow.pop %v1489
        %v1491 = vadd.f32 %v1490, 1.0
        %v1492 = vrcp.pop %v1491
        %v1493 = vmul.f32 1.0, %v1492
        %v1494 = vtanh.pop %v1480
        %v1495 = vxor.u32 %v1481, 2147483648
        %v1496 = vmul.f32 %v1495, 1.442695
        %v1497 = vpow.pop %v1496
        %v1498 = vadd.f32 %v1497, 1.0
        %v1499 = vrcp.pop %v1498
        %v1500 = vmul.f32 1.0, %v1499
        %v1501 = vmul.f32 %v1493, %v1384
        %v1502 = vmul.f32 %v1487, %v1494
        %v1503 = vadd.f32 %v1501, %v1502
        %v1504 = vtanh.pop %v1503
        %v1505 = vmul.f32 %v1500, %v1504
        %v1506 = vstv %s1387
        %vm1507 = vcmp.lt.s32.totalorder %v1506, %v949
        %v1508 = vsel %vm1507, 1, 0
        %1509 = vset.pattern.permute.xlu0 0
        %1510 = vperm.xlu0 %1509, %v1508
        %v1511 = vpop.permute.xlu0 %1510
        %vm1512 = vcmp.eq.s32.totalorder %v1511, 1
        %v1513 = vsel %vm1512, %v1505, 0.0
        %v1514 = vpack.c.bf16 %v1513, %v1513
        %s1515 = smul.addr %s1386, 4
        %s1516 = scalar_lea.vmem %s453, %s1515 [#allocation9]
        %1517 = vst [vmem:[%s1516] sm:$0xf] %v1514
        %v1518 = vsel %vm1512, %v1505, %v1383
        %v1519 = vsel %vm1512, %v1503, %v1384
        %s1520 = smul.u32 %s955, 3
        %s1521 = sadd.s32 %s954, %s1520
        %s1522 = sadd.s32 %s953, %s1521
        %s1523 = smul.u32 %s1521, 4
        %s1524 = smul.addr %s1523, 8
        %s1525 = scalar_lea.vmem [#allocation2], %s1524
        %v1526 = vld [vmem:[%s1525] sm:$0xff]
        %v1527 = vld [vmem:[%s1525 + $0x8] sm:$0xff]
        %v1528 = vld [vmem:[%s1525 + $0x10] sm:$0xff]
        %v1529 = vld [vmem:[%s1525 + $0x18] sm:$0xff]
        %v1530 = vpack.c.bf16 %v1518, %v1518
        %1531 = vmatprep.subr.bf16.mxu0 %v1092
        %1532 = vmatpush1.bf16.msra.mxu0 %v1091
        %1533 = vmatprep.subr.bf16.mxu0 %v1088
        %1534 = vmatpush1.bf16.msra.mxu0 %v1087
        %1535 = vmatprep.subr.bf16.mxu0 %v1084
        %1536 = vmatpush1.bf16.msra.mxu0 %v1083
        %1537 = vmatprep.subr.bf16.mxu0 %v1080
        %1538 = vmatpush1.bf16.msra.mxu0 %v1079
        %1539 = vmatprep.subr.bf16.mxu0 %v1076
        %1540 = vmatpush1.bf16.msra.mxu0 %v1075
        %1541 = vmatprep.subr.bf16.mxu0 %v1072
        %1542 = vmatpush1.bf16.msra.mxu0 %v1071
        %1543 = vmatprep.subr.bf16.mxu0 %v1068
        %1544 = vmatpush1.bf16.msra.mxu0 %v1067
        %1545 = vmatprep.subr.bf16.mxu0 %v1064
        %1546 = vmatpush1.bf16.msra.mxu0 %v1063
        %1547 = vmatprep.subr.bf16.mxu0 0
        %1548 = vmatpush2.bf16.msra.mxu0 0
        %1549 = vmatprep.subr.bf16.mxu0 0
        %1550 = vmatpush2.bf16.msra.mxu0 0
        %1551 = vmatprep.subr.bf16.mxu0 0
        %1552 = vmatpush2.bf16.msra.mxu0 0
        %1553 = vmatprep.subr.bf16.mxu0 0
        %1554 = vmatpush2.bf16.msra.mxu0 0
        %1555 = vmatprep.subr.bf16.mxu0 0
        %1556 = vmatpush2.bf16.msra.mxu0 0
        %1557 = vmatprep.subr.bf16.mxu0 0
        %1558 = vmatpush2.bf16.msra.mxu0 0
        %1559 = vmatprep.subr.bf16.mxu0 0
        %1560 = vmatpush2.bf16.msra.mxu0 0
        %1561 = vmatprep.subr.bf16.mxu0 0
        %1562 = vmatpush2.bf16.msra.mxu0 0
        %1563 = vmatprep.mubr.bf16.mxu0 0
        %1564 = vmatmul.mubr.bf16.gmra.mxu0 %v1530
        %v1565 = vpop.f32.mrf.mxu0
        %v1566 = vadd.f32 0.0, %v1565
        %v1567 = vpop.f32.mrf.mxu0
        %v1568 = vadd.f32 0.0, %v1567
        %v1569 = vpop.f32.mrf.mxu0
        %v1570 = vpop.f32.mrf.mxu0
        %1571 = vdwg.mxu0
        %1572 = vmatprep.subr.bf16.mxu0 %v1094
        %1573 = vmatpush1.bf16.msra.mxu0 %v1093
        %1574 = vmatprep.subr.bf16.mxu0 %v1090
        %1575 = vmatpush1.bf16.msra.mxu0 %v1089
        %1576 = vmatprep.subr.bf16.mxu0 %v1086
        %1577 = vmatpush1.bf16.msra.mxu0 %v1085
        %1578 = vmatprep.subr.bf16.mxu0 %v1082
        %1579 = vmatpush1.bf16.msra.mxu0 %v1081
        %1580 = vmatprep.subr.bf16.mxu0 %v1078
        %1581 = vmatpush1.bf16.msra.mxu0 %v1077
        %1582 = vmatprep.subr.bf16.mxu0 %v1074
        %1583 = vmatpush1.bf16.msra.mxu0 %v1073
        %1584 = vmatprep.subr.bf16.mxu0 %v1070
        %1585 = vmatpush1.bf16.msra.mxu0 %v1069
        %1586 = vmatprep.subr.bf16.mxu0 %v1066
        %1587 = vmatpush1.bf16.msra.mxu0 %v1065
        %1588 = vmatprep.subr.bf16.mxu0 0
        %1589 = vmatpush2.bf16.msra.mxu0 0
        %1590 = vmatprep.subr.bf16.mxu0 0
        %1591 = vmatpush2.bf16.msra.mxu0 0
        %1592 = vmatprep.subr.bf16.mxu0 0
        %1593 = vmatpush2.bf16.msra.mxu0 0
        %1594 = vmatprep.subr.bf16.mxu0 0
        %1595 = vmatpush2.bf16.msra.mxu0 0
        %1596 = vmatprep.subr.bf16.mxu0 0
        %1597 = vmatpush2.bf16.msra.mxu0 0
        %1598 = vmatprep.subr.bf16.mxu0 0
        %1599 = vmatpush2.bf16.msra.mxu0 0
        %1600 = vmatprep.subr.bf16.mxu0 0
        %1601 = vmatpush2.bf16.msra.mxu0 0
        %1602 = vmatprep.subr.bf16.mxu0 0
        %1603 = vmatpush2.bf16.msra.mxu0 0
        %1604 = vmatprep.mubr.bf16.mxu0 0
        %1605 = vmatmul.mubr.bf16.gmra.mxu0 %v1530
        %v1606 = vpop.f32.mrf.mxu0
        %v1607 = vadd.f32 0.0, %v1606
        %v1608 = vpop.f32.mrf.mxu0
        %v1609 = vadd.f32 0.0, %v1608
        %v1610 = vpop.f32.mrf.mxu0
        %v1611 = vpop.f32.mrf.mxu0
        %1612 = vdwg.mxu0
        %v1613 = vadd.f32 %v1526, %v1566
        %v1614 = vadd.f32 %v1527, %v1568
        %v1615 = vadd.f32 %v1528, %v1607
        %v1616 = vadd.f32 %v1529, %v1609
        %v1617 = vxor.u32 %v1613, 2147483648
        %v1618 = vmul.f32 %v1617, 1.442695
        %v1619 = vpow.pop %v1618
        %v1620 = vadd.f32 %v1619, 1.0
        %v1621 = vrcp.pop %v1620
        %v1622 = vmul.f32 1.0, %v1621
        %v1623 = vxor.u32 %v1614, 2147483648
        %v1624 = vmul.f32 %v1623, 1.442695
        %v1625 = vpow.pop %v1624
        %v1626 = vadd.f32 %v1625, 1.0
        %v1627 = vrcp.pop %v1626
        %v1628 = vmul.f32 1.0, %v1627
        %v1629 = vtanh.pop %v1615
        %v1630 = vxor.u32 %v1616, 2147483648
        %v1631 = vmul.f32 %v1630, 1.442695
        %v1632 = vpow.pop %v1631
        %v1633 = vadd.f32 %v1632, 1.0
        %v1634 = vrcp.pop %v1633
        %v1635 = vmul.f32 1.0, %v1634
        %v1636 = vmul.f32 %v1628, %v1519
        %v1637 = vmul.f32 %v1622, %v1629
        %v1638 = vadd.f32 %v1636, %v1637
        %v1639 = vtanh.pop %v1638
        %v1640 = vmul.f32 %v1635, %v1639
        %v1641 = vstv %s1522
        %vm1642 = vcmp.lt.s32.totalorder %v1641, %v949
        %v1643 = vsel %vm1642, 1, 0
        %1644 = vset.pattern.permute.xlu0 0
        %1645 = vperm.xlu0 %1644, %v1643
        %v1646 = vpop.permute.xlu0 %1645
        %vm1647 = vcmp.eq.s32.totalorder %v1646, 1
        %v1648 = vsel %vm1647, %v1640, 0.0
        %v1649 = vpack.c.bf16 %v1648, %v1648
        %s1650 = smul.addr %s1521, 4
        %s1651 = scalar_lea.vmem %s453, %s1650 [#allocation9]
        %1652 = vst [vmem:[%s1651] sm:$0xf] %v1649
        %v1653 = vsel %vm1647, %v1640, %v1518
        %v1654 = vsel %vm1647, %v1638, %v1519
        %s1655 = smul.u32 %s955, 4
        %s1656 = sadd.s32 %s954, %s1655
        %s1657 = sadd.s32 %s953, %s1656
        %s1658 = smul.u32 %s1656, 4
        %s1659 = smul.addr %s1658, 8
        %s1660 = scalar_lea.vmem [#allocation2], %s1659
        %v1661 = vld [vmem:[%s1660] sm:$0xff]
        %v1662 = vld [vmem:[%s1660 + $0x8] sm:$0xff]
        %v1663 = vld [vmem:[%s1660 + $0x10] sm:$0xff]
        %v1664 = vld [vmem:[%s1660 + $0x18] sm:$0xff]
        %v1665 = vpack.c.bf16 %v1653, %v1653
        %1666 = vmatprep.subr.bf16.mxu0 %v1092
        %1667 = vmatpush1.bf16.msra.mxu0 %v1091
        %1668 = vmatprep.subr.bf16.mxu0 %v1088
        %1669 = vmatpush1.bf16.msra.mxu0 %v1087
        %1670 = vmatprep.subr.bf16.mxu0 %v1084
        %1671 = vmatpush1.bf16.msra.mxu0 %v1083
        %1672 = vmatprep.subr.bf16.mxu0 %v1080
        %1673 = vmatpush1.bf16.msra.mxu0 %v1079
        %1674 = vmatprep.subr.bf16.mxu0 %v1076
        %1675 = vmatpush1.bf16.msra.mxu0 %v1075
        %1676 = vmatprep.subr.bf16.mxu0 %v1072
        %1677 = vmatpush1.bf16.msra.mxu0 %v1071
        %1678 = vmatprep.subr.bf16.mxu0 %v1068
        %1679 = vmatpush1.bf16.msra.mxu0 %v1067
        %1680 = vmatprep.subr.bf16.mxu0 %v1064
        %1681 = vmatpush1.bf16.msra.mxu0 %v1063
        %1682 = vmatprep.subr.bf16.mxu0 0
        %1683 = vmatpush2.bf16.msra.mxu0 0
        %1684 = vmatprep.subr.bf16.mxu0 0
        %1685 = vmatpush2.bf16.msra.mxu0 0
        %1686 = vmatprep.subr.bf16.mxu0 0
        %1687 = vmatpush2.bf16.msra.mxu0 0
        %1688 = vmatprep.subr.bf16.mxu0 0
        %1689 = vmatpush2.bf16.msra.mxu0 0
        %1690 = vmatprep.subr.bf16.mxu0 0
        %1691 = vmatpush2.bf16.msra.mxu0 0
        %1692 = vmatprep.subr.bf16.mxu0 0
        %1693 = vmatpush2.bf16.msra.mxu0 0
        %1694 = vmatprep.subr.bf16.mxu0 0
        %1695 = vmatpush2.bf16.msra.mxu0 0
        %1696 = vmatprep.subr.bf16.mxu0 0
        %1697 = vmatpush2.bf16.msra.mxu0 0
        %1698 = vmatprep.mubr.bf16.mxu0 0
        %1699 = vmatmul.mubr.bf16.gmra.mxu0 %v1665
        %v1700 = vpop.f32.mrf.mxu0
        %v1701 = vadd.f32 0.0, %v1700
        %v1702 = vpop.f32.mrf.mxu0
        %v1703 = vadd.f32 0.0, %v1702
        %v1704 = vpop.f32.mrf.mxu0
        %v1705 = vpop.f32.mrf.mxu0
        %1706 = vdwg.mxu0
        %1707 = vmatprep.subr.bf16.mxu0 %v1094
        %1708 = vmatpush1.bf16.msra.mxu0 %v1093
        %1709 = vmatprep.subr.bf16.mxu0 %v1090
        %1710 = vmatpush1.bf16.msra.mxu0 %v1089
        %1711 = vmatprep.subr.bf16.mxu0 %v1086
        %1712 = vmatpush1.bf16.msra.mxu0 %v1085
        %1713 = vmatprep.subr.bf16.mxu0 %v1082
        %1714 = vmatpush1.bf16.msra.mxu0 %v1081
        %1715 = vmatprep.subr.bf16.mxu0 %v1078
        %1716 = vmatpush1.bf16.msra.mxu0 %v1077
        %1717 = vmatprep.subr.bf16.mxu0 %v1074
        %1718 = vmatpush1.bf16.msra.mxu0 %v1073
        %1719 = vmatprep.subr.bf16.mxu0 %v1070
        %1720 = vmatpush1.bf16.msra.mxu0 %v1069
        %1721 = vmatprep.subr.bf16.mxu0 %v1066
        %1722 = vmatpush1.bf16.msra.mxu0 %v1065
        %1723 = vmatprep.subr.bf16.mxu0 0
        %1724 = vmatpush2.bf16.msra.mxu0 0
        %1725 = vmatprep.subr.bf16.mxu0 0
        %1726 = vmatpush2.bf16.msra.mxu0 0
        %1727 = vmatprep.subr.bf16.mxu0 0
        %1728 = vmatpush2.bf16.msra.mxu0 0
        %1729 = vmatprep.subr.bf16.mxu0 0
        %1730 = vmatpush2.bf16.msra.mxu0 0
        %1731 = vmatprep.subr.bf16.mxu0 0
        %1732 = vmatpush2.bf16.msra.mxu0 0
        %1733 = vmatprep.subr.bf16.mxu0 0
        %1734 = vmatpush2.bf16.msra.mxu0 0
        %1735 = vmatprep.subr.bf16.mxu0 0
        %1736 = vmatpush2.bf16.msra.mxu0 0
        %1737 = vmatprep.subr.bf16.mxu0 0
        %1738 = vmatpush2.bf16.msra.mxu0 0
        %1739 = vmatprep.mubr.bf16.mxu0 0
        %1740 = vmatmul.mubr.bf16.gmra.mxu0 %v1665
        %v1741 = vpop.f32.mrf.mxu0
        %v1742 = vadd.f32 0.0, %v1741
        %v1743 = vpop.f32.mrf.mxu0
        %v1744 = vadd.f32 0.0, %v1743
        %v1745 = vpop.f32.mrf.mxu0
        %v1746 = vpop.f32.mrf.mxu0
        %1747 = vdwg.mxu0
        %v1748 = vadd.f32 %v1661, %v1701
        %v1749 = vadd.f32 %v1662, %v1703
        %v1750 = vadd.f32 %v1663, %v1742
        %v1751 = vadd.f32 %v1664, %v1744
        %v1752 = vxor.u32 %v1748, 2147483648
        %v1753 = vmul.f32 %v1752, 1.442695
        %v1754 = vpow.pop %v1753
        %v1755 = vadd.f32 %v1754, 1.0
        %v1756 = vrcp.pop %v1755
        %v1757 = vmul.f32 1.0, %v1756
        %v1758 = vxor.u32 %v1749, 2147483648
        %v1759 = vmul.f32 %v1758, 1.442695
        %v1760 = vpow.pop %v1759
        %v1761 = vadd.f32 %v1760, 1.0
        %v1762 = vrcp.pop %v1761
        %v1763 = vmul.f32 1.0, %v1762
        %v1764 = vtanh.pop %v1750
        %v1765 = vxor.u32 %v1751, 2147483648
        %v1766 = vmul.f32 %v1765, 1.442695
        %v1767 = vpow.pop %v1766
        %v1768 = vadd.f32 %v1767, 1.0
        %v1769 = vrcp.pop %v1768
        %v1770 = vmul.f32 1.0, %v1769
        %v1771 = vmul.f32 %v1763, %v1654
        %v1772 = vmul.f32 %v1757, %v1764
        %v1773 = vadd.f32 %v1771, %v1772
        %v1774 = vtanh.pop %v1773
        %v1775 = vmul.f32 %v1770, %v1774
        %v1776 = vstv %s1657
        %vm1777 = vcmp.lt.s32.totalorder %v1776, %v949
        %v1778 = vsel %vm1777, 1, 0
        %1779 = vset.pattern.permute.xlu0 0
        %1780 = vperm.xlu0 %1779, %v1778
        %v1781 = vpop.permute.xlu0 %1780
        %vm1782 = vcmp.eq.s32.totalorder %v1781, 1
        %v1783 = vsel %vm1782, %v1775, 0.0
        %v1784 = vpack.c.bf16 %v1783, %v1783
        %s1785 = smul.addr %s1656, 4
        %s1786 = scalar_lea.vmem %s453, %s1785 [#allocation9]
        %1787 = vst [vmem:[%s1786] sm:$0xf] %v1784
        %v1788 = vsel %vm1782, %v1775, %v1653
        %v1789 = vsel %vm1782, %v1773, %v1654
        %s1790 = smul.u32 %s955, 5
        %s1791 = sadd.s32 %s954, %s1790
        %s1792 = sadd.s32 %s953, %s1791
        %s1793 = smul.u32 %s1791, 4
        %s1794 = smul.addr %s1793, 8
        %s1795 = scalar_lea.vmem [#allocation2], %s1794
        %v1796 = vld [vmem:[%s1795] sm:$0xff]
        %v1797 = vld [vmem:[%s1795 + $0x8] sm:$0xff]
        %v1798 = vld [vmem:[%s1795 + $0x10] sm:$0xff]
        %v1799 = vld [vmem:[%s1795 + $0x18] sm:$0xff]
        %v1800 = vpack.c.bf16 %v1788, %v1788
        %1801 = vmatprep.subr.bf16.mxu0 %v1092
        %1802 = vmatpush1.bf16.msra.mxu0 %v1091
        %1803 = vmatprep.subr.bf16.mxu0 %v1088
        %1804 = vmatpush1.bf16.msra.mxu0 %v1087
        %1805 = vmatprep.subr.bf16.mxu0 %v1084
        %1806 = vmatpush1.bf16.msra.mxu0 %v1083
        %1807 = vmatprep.subr.bf16.mxu0 %v1080
        %1808 = vmatpush1.bf16.msra.mxu0 %v1079
        %1809 = vmatprep.subr.bf16.mxu0 %v1076
        %1810 = vmatpush1.bf16.msra.mxu0 %v1075
        %1811 = vmatprep.subr.bf16.mxu0 %v1072
        %1812 = vmatpush1.bf16.msra.mxu0 %v1071
        %1813 = vmatprep.subr.bf16.mxu0 %v1068
        %1814 = vmatpush1.bf16.msra.mxu0 %v1067
        %1815 = vmatprep.subr.bf16.mxu0 %v1064
        %1816 = vmatpush1.bf16.msra.mxu0 %v1063
        %1817 = vmatprep.subr.bf16.mxu0 0
        %1818 = vmatpush2.bf16.msra.mxu0 0
        %1819 = vmatprep.subr.bf16.mxu0 0
        %1820 = vmatpush2.bf16.msra.mxu0 0
        %1821 = vmatprep.subr.bf16.mxu0 0
        %1822 = vmatpush2.bf16.msra.mxu0 0
        %1823 = vmatprep.subr.bf16.mxu0 0
        %1824 = vmatpush2.bf16.msra.mxu0 0
        %1825 = vmatprep.subr.bf16.mxu0 0
        %1826 = vmatpush2.bf16.msra.mxu0 0
        %1827 = vmatprep.subr.bf16.mxu0 0
        %1828 = vmatpush2.bf16.msra.mxu0 0
        %1829 = vmatprep.subr.bf16.mxu0 0
        %1830 = vmatpush2.bf16.msra.mxu0 0
        %1831 = vmatprep.subr.bf16.mxu0 0
        %1832 = vmatpush2.bf16.msra.mxu0 0
        %1833 = vmatprep.mubr.bf16.mxu0 0
        %1834 = vmatmul.mubr.bf16.gmra.mxu0 %v1800
        %v1835 = vpop.f32.mrf.mxu0
        %v1836 = vadd.f32 0.0, %v1835
        %v1837 = vpop.f32.mrf.mxu0
        %v1838 = vadd.f32 0.0, %v1837
        %v1839 = vpop.f32.mrf.mxu0
        %v1840 = vpop.f32.mrf.mxu0
        %1841 = vdwg.mxu0
        %1842 = vmatprep.subr.bf16.mxu0 %v1094
        %1843 = vmatpush1.bf16.msra.mxu0 %v1093
        %1844 = vmatprep.subr.bf16.mxu0 %v1090
        %1845 = vmatpush1.bf16.msra.mxu0 %v1089
        %1846 = vmatprep.subr.bf16.mxu0 %v1086
        %1847 = vmatpush1.bf16.msra.mxu0 %v1085
        %1848 = vmatprep.subr.bf16.mxu0 %v1082
        %1849 = vmatpush1.bf16.msra.mxu0 %v1081
        %1850 = vmatprep.subr.bf16.mxu0 %v1078
        %1851 = vmatpush1.bf16.msra.mxu0 %v1077
        %1852 = vmatprep.subr.bf16.mxu0 %v1074
        %1853 = vmatpush1.bf16.msra.mxu0 %v1073
        %1854 = vmatprep.subr.bf16.mxu0 %v1070
        %1855 = vmatpush1.bf16.msra.mxu0 %v1069
        %1856 = vmatprep.subr.bf16.mxu0 %v1066
        %1857 = vmatpush1.bf16.msra.mxu0 %v1065
        %1858 = vmatprep.subr.bf16.mxu0 0
        %1859 = vmatpush2.bf16.msra.mxu0 0
        %1860 = vmatprep.subr.bf16.mxu0 0
        %1861 = vmatpush2.bf16.msra.mxu0 0
        %1862 = vmatprep.subr.bf16.mxu0 0
        %1863 = vmatpush2.bf16.msra.mxu0 0
        %1864 = vmatprep.subr.bf16.mxu0 0
        %1865 = vmatpush2.bf16.msra.mxu0 0
        %1866 = vmatprep.subr.bf16.mxu0 0
        %1867 = vmatpush2.bf16.msra.mxu0 0
        %1868 = vmatprep.subr.bf16.mxu0 0
        %1869 = vmatpush2.bf16.msra.mxu0 0
        %1870 = vmatprep.subr.bf16.mxu0 0
        %1871 = vmatpush2.bf16.msra.mxu0 0
        %1872 = vmatprep.subr.bf16.mxu0 0
        %1873 = vmatpush2.bf16.msra.mxu0 0
        %1874 = vmatprep.mubr.bf16.mxu0 0
        %1875 = vmatmul.mubr.bf16.gmra.mxu0 %v1800
        %v1876 = vpop.f32.mrf.mxu0
        %v1877 = vadd.f32 0.0, %v1876
        %v1878 = vpop.f32.mrf.mxu0
        %v1879 = vadd.f32 0.0, %v1878
        %v1880 = vpop.f32.mrf.mxu0
        %v1881 = vpop.f32.mrf.mxu0
        %1882 = vdwg.mxu0
        %v1883 = vadd.f32 %v1796, %v1836
        %v1884 = vadd.f32 %v1797, %v1838
        %v1885 = vadd.f32 %v1798, %v1877
        %v1886 = vadd.f32 %v1799, %v1879
        %v1887 = vxor.u32 %v1883, 2147483648
        %v1888 = vmul.f32 %v1887, 1.442695
        %v1889 = vpow.pop %v1888
        %v1890 = vadd.f32 %v1889, 1.0
        %v1891 = vrcp.pop %v1890
        %v1892 = vmul.f32 1.0, %v1891
        %v1893 = vxor.u32 %v1884, 2147483648
        %v1894 = vmul.f32 %v1893, 1.442695
        %v1895 = vpow.pop %v1894
        %v1896 = vadd.f32 %v1895, 1.0
        %v1897 = vrcp.pop %v1896
        %v1898 = vmul.f32 1.0, %v1897
        %v1899 = vtanh.pop %v1885
        %v1900 = vxor.u32 %v1886, 2147483648
        %v1901 = vmul.f32 %v1900, 1.442695
        %v1902 = vpow.pop %v1901
        %v1903 = vadd.f32 %v1902, 1.0
        %v1904 = vrcp.pop %v1903
        %v1905 = vmul.f32 1.0, %v1904
        %v1906 = vmul.f32 %v1898, %v1789
        %v1907 = vmul.f32 %v1892, %v1899
        %v1908 = vadd.f32 %v1906, %v1907
        %v1909 = vtanh.pop %v1908
        %v1910 = vmul.f32 %v1905, %v1909
        %v1911 = vstv %s1792
        %vm1912 = vcmp.lt.s32.totalorder %v1911, %v949
        %v1913 = vsel %vm1912, 1, 0
        %1914 = vset.pattern.permute.xlu0 0
        %1915 = vperm.xlu0 %1914, %v1913
        %v1916 = vpop.permute.xlu0 %1915
        %vm1917 = vcmp.eq.s32.totalorder %v1916, 1
        %v1918 = vsel %vm1917, %v1910, 0.0
        %v1919 = vpack.c.bf16 %v1918, %v1918
        %s1920 = smul.addr %s1791, 4
        %s1921 = scalar_lea.vmem %s453, %s1920 [#allocation9]
        %1922 = vst [vmem:[%s1921] sm:$0xf] %v1919
        %v1923 = vsel %vm1917, %v1910, %v1788
        %v1924 = vsel %vm1917, %v1908, %v1789
        %s1925 = smul.u32 %s955, 6
        %s1926 = sadd.s32 %s954, %s1925
        %s1927 = sadd.s32 %s953, %s1926
        %s1928 = smul.u32 %s1926, 4
        %s1929 = smul.addr %s1928, 8
        %s1930 = scalar_lea.vmem [#allocation2], %s1929
        %v1931 = vld [vmem:[%s1930] sm:$0xff]
        %v1932 = vld [vmem:[%s1930 + $0x8] sm:$0xff]
        %v1933 = vld [vmem:[%s1930 + $0x10] sm:$0xff]
        %v1934 = vld [vmem:[%s1930 + $0x18] sm:$0xff]
        %v1935 = vpack.c.bf16 %v1923, %v1923
        %1936 = vmatprep.subr.bf16.mxu0 %v1092
        %1937 = vmatpush1.bf16.msra.mxu0 %v1091
        %1938 = vmatprep.subr.bf16.mxu0 %v1088
        %1939 = vmatpush1.bf16.msra.mxu0 %v1087
        %1940 = vmatprep.subr.bf16.mxu0 %v1084
        %1941 = vmatpush1.bf16.msra.mxu0 %v1083
        %1942 = vmatprep.subr.bf16.mxu0 %v1080
        %1943 = vmatpush1.bf16.msra.mxu0 %v1079
        %1944 = vmatprep.subr.bf16.mxu0 %v1076
        %1945 = vmatpush1.bf16.msra.mxu0 %v1075
        %1946 = vmatprep.subr.bf16.mxu0 %v1072
        %1947 = vmatpush1.bf16.msra.mxu0 %v1071
        %1948 = vmatprep.subr.bf16.mxu0 %v1068
        %1949 = vmatpush1.bf16.msra.mxu0 %v1067
        %1950 = vmatprep.subr.bf16.mxu0 %v1064
        %1951 = vmatpush1.bf16.msra.mxu0 %v1063
        %1952 = vmatprep.subr.bf16.mxu0 0
        %1953 = vmatpush2.bf16.msra.mxu0 0
        %1954 = vmatprep.subr.bf16.mxu0 0
        %1955 = vmatpush2.bf16.msra.mxu0 0
        %1956 = vmatprep.subr.bf16.mxu0 0
        %1957 = vmatpush2.bf16.msra.mxu0 0
        %1958 = vmatprep.subr.bf16.mxu0 0
        %1959 = vmatpush2.bf16.msra.mxu0 0
        %1960 = vmatprep.subr.bf16.mxu0 0
        %1961 = vmatpush2.bf16.msra.mxu0 0
        %1962 = vmatprep.subr.bf16.mxu0 0
        %1963 = vmatpush2.bf16.msra.mxu0 0
        %1964 = vmatprep.subr.bf16.mxu0 0
        %1965 = vmatpush2.bf16.msra.mxu0 0
        %1966 = vmatprep.subr.bf16.mxu0 0
        %1967 = vmatpush2.bf16.msra.mxu0 0
        %1968 = vmatprep.mubr.bf16.mxu0 0
        %1969 = vmatmul.mubr.bf16.gmra.mxu0 %v1935
        %v1970 = vpop.f32.mrf.mxu0
        %v1971 = vadd.f32 0.0, %v1970
        %v1972 = vpop.f32.mrf.mxu0
        %v1973 = vadd.f32 0.0, %v1972
        %v1974 = vpop.f32.mrf.mxu0
        %v1975 = vpop.f32.mrf.mxu0
        %1976 = vdwg.mxu0
        %1977 = vmatprep.subr.bf16.mxu0 %v1094
        %1978 = vmatpush1.bf16.msra.mxu0 %v1093
        %1979 = vmatprep.subr.bf16.mxu0 %v1090
        %1980 = vmatpush1.bf16.msra.mxu0 %v1089
        %1981 = vmatprep.subr.bf16.mxu0 %v1086
        %1982 = vmatpush1.bf16.msra.mxu0 %v1085
        %1983 = vmatprep.subr.bf16.mxu0 %v1082
        %1984 = vmatpush1.bf16.msra.mxu0 %v1081
        %1985 = vmatprep.subr.bf16.mxu0 %v1078
        %1986 = vmatpush1.bf16.msra.mxu0 %v1077
        %1987 = vmatprep.subr.bf16.mxu0 %v1074
        %1988 = vmatpush1.bf16.msra.mxu0 %v1073
        %1989 = vmatprep.subr.bf16.mxu0 %v1070
        %1990 = vmatpush1.bf16.msra.mxu0 %v1069
        %1991 = vmatprep.subr.bf16.mxu0 %v1066
        %1992 = vmatpush1.bf16.msra.mxu0 %v1065
        %1993 = vmatprep.subr.bf16.mxu0 0
        %1994 = vmatpush2.bf16.msra.mxu0 0
        %1995 = vmatprep.subr.bf16.mxu0 0
        %1996 = vmatpush2.bf16.msra.mxu0 0
        %1997 = vmatprep.subr.bf16.mxu0 0
        %1998 = vmatpush2.bf16.msra.mxu0 0
        %1999 = vmatprep.subr.bf16.mxu0 0
        %2000 = vmatpush2.bf16.msra.mxu0 0
        %2001 = vmatprep.subr.bf16.mxu0 0
        %2002 = vmatpush2.bf16.msra.mxu0 0
        %2003 = vmatprep.subr.bf16.mxu0 0
        %2004 = vmatpush2.bf16.msra.mxu0 0
        %2005 = vmatprep.subr.bf16.mxu0 0
        %2006 = vmatpush2.bf16.msra.mxu0 0
        %2007 = vmatprep.subr.bf16.mxu0 0
        %2008 = vmatpush2.bf16.msra.mxu0 0
        %2009 = vmatprep.mubr.bf16.mxu0 0
        %2010 = vmatmul.mubr.bf16.gmra.mxu0 %v1935
        %v2011 = vpop.f32.mrf.mxu0
        %v2012 = vadd.f32 0.0, %v2011
        %v2013 = vpop.f32.mrf.mxu0
        %v2014 = vadd.f32 0.0, %v2013
        %v2015 = vpop.f32.mrf.mxu0
        %v2016 = vpop.f32.mrf.mxu0
        %2017 = vdwg.mxu0
        %v2018 = vadd.f32 %v1931, %v1971
        %v2019 = vadd.f32 %v1932, %v1973
        %v2020 = vadd.f32 %v1933, %v2012
        %v2021 = vadd.f32 %v1934, %v2014
        %v2022 = vxor.u32 %v2018, 2147483648
        %v2023 = vmul.f32 %v2022, 1.442695
        %v2024 = vpow.pop %v2023
        %v2025 = vadd.f32 %v2024, 1.0
        %v2026 = vrcp.pop %v2025
        %v2027 = vmul.f32 1.0, %v2026
        %v2028 = vxor.u32 %v2019, 2147483648
        %v2029 = vmul.f32 %v2028, 1.442695
        %v2030 = vpow.pop %v2029
        %v2031 = vadd.f32 %v2030, 1.0
        %v2032 = vrcp.pop %v2031
        %v2033 = vmul.f32 1.0, %v2032
        %v2034 = vtanh.pop %v2020
        %v2035 = vxor.u32 %v2021, 2147483648
        %v2036 = vmul.f32 %v2035, 1.442695
        %v2037 = vpow.pop %v2036
        %v2038 = vadd.f32 %v2037, 1.0
        %v2039 = vrcp.pop %v2038
        %v2040 = vmul.f32 1.0, %v2039
        %v2041 = vmul.f32 %v2033, %v1924
        %v2042 = vmul.f32 %v2027, %v2034
        %v2043 = vadd.f32 %v2041, %v2042
        %v2044 = vtanh.pop %v2043
        %v2045 = vmul.f32 %v2040, %v2044
        %v2046 = vstv %s1927
        %vm2047 = vcmp.lt.s32.totalorder %v2046, %v949
        %v2048 = vsel %vm2047, 1, 0
        %2049 = vset.pattern.permute.xlu0 0
        %2050 = vperm.xlu0 %2049, %v2048
        %v2051 = vpop.permute.xlu0 %2050
        %vm2052 = vcmp.eq.s32.totalorder %v2051, 1
        %v2053 = vsel %vm2052, %v2045, 0.0
        %v2054 = vpack.c.bf16 %v2053, %v2053
        %s2055 = smul.addr %s1926, 4
        %s2056 = scalar_lea.vmem %s453, %s2055 [#allocation9]
        %2057 = vst [vmem:[%s2056] sm:$0xf] %v2054
        %v2058 = vsel %vm2052, %v2045, %v1923
        %v2059 = vsel %vm2052, %v2043, %v1924
        %s2060 = smul.u32 %s955, 7
        %s2061 = sadd.s32 %s954, %s2060
        %s2062 = sadd.s32 %s953, %s2061
        %s2063 = smul.u32 %s2061, 4
        %s2064 = smul.addr %s2063, 8
        %s2065 = scalar_lea.vmem [#allocation2], %s2064
        %v2066 = vld [vmem:[%s2065] sm:$0xff]
        %v2067 = vld [vmem:[%s2065 + $0x8] sm:$0xff]
        %v2068 = vld [vmem:[%s2065 + $0x10] sm:$0xff]
        %v2069 = vld [vmem:[%s2065 + $0x18] sm:$0xff]
        %v2070 = vpack.c.bf16 %v2058, %v2058
        %2071 = vmatprep.subr.bf16.mxu0 %v1092
        %2072 = vmatpush1.bf16.msra.mxu0 %v1091
        %2073 = vmatprep.subr.bf16.mxu0 %v1088
        %2074 = vmatpush1.bf16.msra.mxu0 %v1087
        %2075 = vmatprep.subr.bf16.mxu0 %v1084
        %2076 = vmatpush1.bf16.msra.mxu0 %v1083
        %2077 = vmatprep.subr.bf16.mxu0 %v1080
        %2078 = vmatpush1.bf16.msra.mxu0 %v1079
        %2079 = vmatprep.subr.bf16.mxu0 %v1076
        %2080 = vmatpush1.bf16.msra.mxu0 %v1075
        %2081 = vmatprep.subr.bf16.mxu0 %v1072
        %2082 = vmatpush1.bf16.msra.mxu0 %v1071
        %2083 = vmatprep.subr.bf16.mxu0 %v1068
        %2084 = vmatpush1.bf16.msra.mxu0 %v1067
        %2085 = vmatprep.subr.bf16.mxu0 %v1064
        %2086 = vmatpush1.bf16.msra.mxu0 %v1063
        %2087 = vmatprep.subr.bf16.mxu0 0
        %2088 = vmatpush2.bf16.msra.mxu0 0
        %2089 = vmatprep.subr.bf16.mxu0 0
        %2090 = vmatpush2.bf16.msra.mxu0 0
        %2091 = vmatprep.subr.bf16.mxu0 0
        %2092 = vmatpush2.bf16.msra.mxu0 0
        %2093 = vmatprep.subr.bf16.mxu0 0
        %2094 = vmatpush2.bf16.msra.mxu0 0
        %2095 = vmatprep.subr.bf16.mxu0 0
        %2096 = vmatpush2.bf16.msra.mxu0 0
        %2097 = vmatprep.subr.bf16.mxu0 0
        %2098 = vmatpush2.bf16.msra.mxu0 0
        %2099 = vmatprep.subr.bf16.mxu0 0
        %2100 = vmatpush2.bf16.msra.mxu0 0
        %2101 = vmatprep.subr.bf16.mxu0 0
        %2102 = vmatpush2.bf16.msra.mxu0 0
        %2103 = vmatprep.mubr.bf16.mxu0 0
        %2104 = vmatmul.mubr.bf16.gmra.mxu0 %v2070
        %v2105 = vpop.f32.mrf.mxu0
        %v2106 = vadd.f32 0.0, %v2105
        %v2107 = vpop.f32.mrf.mxu0
        %v2108 = vadd.f32 0.0, %v2107
        %v2109 = vpop.f32.mrf.mxu0
        %v2110 = vpop.f32.mrf.mxu0
        %2111 = vdwg.mxu0
        %2112 = vmatprep.subr.bf16.mxu0 %v1094
        %2113 = vmatpush1.bf16.msra.mxu0 %v1093
        %2114 = vmatprep.subr.bf16.mxu0 %v1090
        %2115 = vmatpush1.bf16.msra.mxu0 %v1089
        %2116 = vmatprep.subr.bf16.mxu0 %v1086
        %2117 = vmatpush1.bf16.msra.mxu0 %v1085
        %2118 = vmatprep.subr.bf16.mxu0 %v1082
        %2119 = vmatpush1.bf16.msra.mxu0 %v1081
        %2120 = vmatprep.subr.bf16.mxu0 %v1078
        %2121 = vmatpush1.bf16.msra.mxu0 %v1077
        %2122 = vmatprep.subr.bf16.mxu0 %v1074
        %2123 = vmatpush1.bf16.msra.mxu0 %v1073
        %2124 = vmatprep.subr.bf16.mxu0 %v1070
        %2125 = vmatpush1.bf16.msra.mxu0 %v1069
        %2126 = vmatprep.subr.bf16.mxu0 %v1066
        %2127 = vmatpush1.bf16.msra.mxu0 %v1065
        %2128 = vmatprep.subr.bf16.mxu0 0
        %2129 = vmatpush2.bf16.msra.mxu0 0
        %2130 = vmatprep.subr.bf16.mxu0 0
        %2131 = vmatpush2.bf16.msra.mxu0 0
        %2132 = vmatprep.subr.bf16.mxu0 0
        %2133 = vmatpush2.bf16.msra.mxu0 0
        %2134 = vmatprep.subr.bf16.mxu0 0
        %2135 = vmatpush2.bf16.msra.mxu0 0
        %2136 = vmatprep.subr.bf16.mxu0 0
        %2137 = vmatpush2.bf16.msra.mxu0 0
        %2138 = vmatprep.subr.bf16.mxu0 0
        %2139 = vmatpush2.bf16.msra.mxu0 0
        %2140 = vmatprep.subr.bf16.mxu0 0
        %2141 = vmatpush2.bf16.msra.mxu0 0
        %2142 = vmatprep.subr.bf16.mxu0 0
        %2143 = vmatpush2.bf16.msra.mxu0 0
        %2144 = vmatprep.mubr.bf16.mxu0 0
        %2145 = vmatmul.mubr.bf16.gmra.mxu0 %v2070
        %v2146 = vpop.f32.mrf.mxu0
        %v2147 = vadd.f32 0.0, %v2146
        %v2148 = vpop.f32.mrf.mxu0
        %v2149 = vadd.f32 0.0, %v2148
        %v2150 = vpop.f32.mrf.mxu0
        %v2151 = vpop.f32.mrf.mxu0
        %2152 = vdwg.mxu0
        %v2153 = vadd.f32 %v2066, %v2106
        %v2154 = vadd.f32 %v2067, %v2108
        %v2155 = vadd.f32 %v2068, %v2147
        %v2156 = vadd.f32 %v2069, %v2149
        %v2157 = vxor.u32 %v2153, 2147483648
        %v2158 = vmul.f32 %v2157, 1.442695
        %v2159 = vpow.pop %v2158
        %v2160 = vadd.f32 %v2159, 1.0
        %v2161 = vrcp.pop %v2160
        %v2162 = vmul.f32 1.0, %v2161
        %v2163 = vxor.u32 %v2154, 2147483648
        %v2164 = vmul.f32 %v2163, 1.442695
        %v2165 = vpow.pop %v2164
        %v2166 = vadd.f32 %v2165, 1.0
        %v2167 = vrcp.pop %v2166
        %v2168 = vmul.f32 1.0, %v2167
        %v2169 = vtanh.pop %v2155
        %v2170 = vxor.u32 %v2156, 2147483648
        %v2171 = vmul.f32 %v2170, 1.442695
        %v2172 = vpow.pop %v2171
        %v2173 = vadd.f32 %v2172, 1.0
        %v2174 = vrcp.pop %v2173
        %v2175 = vmul.f32 1.0, %v2174
        %v2176 = vmul.f32 %v2168, %v2059
        %v2177 = vmul.f32 %v2162, %v2169
        %v2178 = vadd.f32 %v2176, %v2177
        %v2179 = vtanh.pop %v2178
        %v2180 = vmul.f32 %v2175, %v2179
        %v2181 = vstv %s2062
        %vm2182 = vcmp.lt.s32.totalorder %v2181, %v949
        %v2183 = vsel %vm2182, 1, 0
        %2184 = vset.pattern.permute.xlu0 0
        %2185 = vperm.xlu0 %2184, %v2183
        %v2186 = vpop.permute.xlu0 %2185
        %vm2187 = vcmp.eq.s32.totalorder %v2186, 1
        %v2188 = vsel %vm2187, %v2180, 0.0
        %v2189 = vpack.c.bf16 %v2188, %v2188
        %s2190 = smul.addr %s2061, 4
        %s2191 = scalar_lea.vmem %s453, %s2190 [#allocation9]
        %2192 = vst [vmem:[%s2191] sm:$0xf] %v2189
        %v2193 = vsel %vm2187, %v2180, %v2058
        %v2194 = vsel %vm2187, %v2178, %v2059
        %2195 = vst [vmem:[%s460] sm:$0xff] %v2193
        %2196 = vst [vmem:[%s467] sm:$0xff] %v2194
        %s2197 = sand.u32 %s210, 1
        %s2198 = scalar_lea.sflag [#allocation5], %s2197
        %s2199 = sand.u32 %s210, 1
        %s2200 = smul.addr %s2199, 32
        %s2201 = scalar_lea.vmem [#allocation9], %s2200
        %s2202 = sand.u32 %s31, 1
        %s2203 = scalar_lea.sflag [#allocation11], %s2202
        %s2204 = sand.u32 %s238, 1
        %s2205 = smul.addr %s2204, 8
        %s2206 = scalar_lea.vmem [#allocation10], %s2205
        %s2207 = sand.u32 %s31, 1
        %s2208 = scalar_lea.sflag [#allocation11], %s2207
        %s2209 = sand.u32 %s266, 1
        %s2210 = smul.addr %s2209, 8
        %s2211 = scalar_lea.vmem [#allocation12], %s2210
        // Predicated region
        $region57: #{tpu_custom_call.1} parent=39 // pred_check
          %p2212 = pneg %p220
        $region58: #{tpu_custom_call.1} parent=39 // pred_check_branch
          %2214 = sbr.rel (%p2212) target = $region60
        $region59: #{tpu_custom_call.1} parent=39 // pred_region
          %s2215 = smul.u32 %s38, 2
          %s2216 = ssub.s32 0, %s2215
          %s2217 = smul.u32 %s36, %s2216
          %s2218 = sadd.s32 %s38, %s2217
          %s2219 = smul.u32 8, %s2218
          %s2221 = ssub.s32 512, 512
          %2222 = vsyncadd %s2198, %s2221
          %s2223 = smul.addr %s37, 2
          %s2224 = sadd.s32 %s36, %s2223
          %s2225 = smul.addr %s2219, 2
          %s2226 = sadd.s32 %s2224, %s2225
          %s2227 = smul.addr %s2226, 64
          %s2228 = scalar_lea.hbm %s5, %s2227
          %s2229 = sshll.u32 %s2201, 4
          %s2230 = int_to_ptr.vmem [resolvable:$true] %s2229
          %2235 = dma.vmem_to_hbm [thread:$0]  %s2230, 512, %s2228, %s2198, 64, 128, 4
        $region60: #{tpu_custom_call.1} parent=39 // pred_fallthru
          _
        // Predicated region
        $region61: #{tpu_custom_call.1} parent=39 // pred_check
          %p2236 = pneg %p248
        $region62: #{tpu_custom_call.1} parent=39 // pred_check_branch
          %2238 = sbr.rel (%p2236) target = $region64
        $region63: #{tpu_custom_call.1} parent=39 // pred_region
          %s2240 = ssub.s32 128, 128
          %2241 = vsyncadd %s2203, %s2240
          %s2242 = sadd.s32 %s37, %s36
          %s2243 = smul.addr %s2242, 128
          %s2244 = scalar_lea.hbm %s6, %s2243
          %s2246 = sshll.u32 %s2206, 4
          %s2247 = int_to_ptr.vmem [resolvable:$true] %s2246
          %2249 = dma.vmem_to_hbm [thread:$0]  %s2247, 128, %s2244, %s2203
        $region64: #{tpu_custom_call.1} parent=39 // pred_fallthru
          _
        // Predicated region
        $region65: #{tpu_custom_call.1} parent=39 // pred_check
          %p2250 = pneg %p276
        $region66: #{tpu_custom_call.1} parent=39 // pred_check_branch
          %2252 = sbr.rel (%p2250) target = $region68
        $region67: #{tpu_custom_call.1} parent=39 // pred_region
          %s2254 = ssub.s32 128, 128
          %2255 = vsyncadd %s2208, %s2254
          %s2256 = sadd.s32 %s37, %s36
          %s2257 = smul.addr %s2256, 128
          %s2258 = scalar_lea.hbm %s7, %s2257
          %s2260 = sshll.u32 %s2211, 4
          %s2261 = int_to_ptr.vmem [resolvable:$true] %s2260
          %2263 = dma.vmem_to_hbm [thread:$0]  %s2261, 128, %s2258, %s2208
        $region68: #{tpu_custom_call.1} parent=39 // pred_fallthru
          _
      $region40: #{tpu_custom_call.1} parent=5 // pred_fallthru
        _
      %p2264 = scmp.le.s32.totalorder 2, %s26
      // Predicated region
      $region69: #{tpu_custom_call.1} parent=5 // pred_check
        %p2265 = pneg %p2264
      $region70: #{tpu_custom_call.1} parent=5 // pred_check_branch
        %2267 = sbr.rel (%p2265) target = $region72
      $region71: #{tpu_custom_call.1} parent=5 // pred_region
        %s2268 = ssub.s32 %s26, 2
        // Predicated region
        $region73: #{tpu_custom_call.1} parent=71 // pred_check
          %p2269 = pneg %p226
        $region74: #{tpu_custom_call.1} parent=71 // pred_check_branch
          %2271 = sbr.rel (%p2269) target = $region76
        $region75: #{tpu_custom_call.1} parent=71 // pred_region
          %s2272 = sand.u32 %s211, 1
          %s2273 = scalar_lea.sflag [#allocation5], %s2272
          %s2274 = sand.u32 %s211, 1
          %s2275 = smul.addr %s2274, 32
          %s2276 = scalar_lea.vmem [#allocation9], %s2275
          %2277 = dma.done %s2273, 512
        $region76: #{tpu_custom_call.1} parent=71 // pred_fallthru
          _
        // Predicated region
        $region77: #{tpu_custom_call.1} parent=71 // pred_check
          %p2278 = pneg %p254
        $region78: #{tpu_custom_call.1} parent=71 // pred_check_branch
          %2280 = sbr.rel (%p2278) target = $region80
        $region79: #{tpu_custom_call.1} parent=71 // pred_region
          %s2281 = sand.u32 %s32, 1
          %s2282 = scalar_lea.sflag [#allocation11], %s2281
          %s2283 = sand.u32 %s239, 1
          %s2284 = smul.addr %s2283, 8
          %s2285 = scalar_lea.vmem [#allocation10], %s2284
          %2286 = dma.done %s2282, 128
        $region80: #{tpu_custom_call.1} parent=71 // pred_fallthru
          _
        // Predicated region
        $region81: #{tpu_custom_call.1} parent=71 // pred_check
          %p2287 = pneg %p282
        $region82: #{tpu_custom_call.1} parent=71 // pred_check_branch
          %2289 = sbr.rel (%p2287) target = $region84
        $region83: #{tpu_custom_call.1} parent=71 // pred_region
          %s2290 = sand.u32 %s32, 1
          %s2291 = scalar_lea.sflag [#allocation11], %s2290
          %s2292 = sand.u32 %s267, 1
          %s2293 = smul.addr %s2292, 8
          %s2294 = scalar_lea.vmem [#allocation12], %s2293
          %2295 = dma.done %s2291, 128
        $region84: #{tpu_custom_call.1} parent=71 // pred_fallthru
          _
      $region72: #{tpu_custom_call.1} parent=5 // pred_fallthru
        _
    $region6: #{tpu_custom_call.1} parent=1 // loop_footer
      %s30 = sadd.s32 1, %s26
    $region7: #{tpu_custom_call.1} parent=1 // loop_footer_branch
      %25 = sbr.rel target = $region3
    $region8: #{tpu_custom_call.1} parent=1 // loop_exit
      _
    %2296 = vsyncpa [#allocation4], 1
    %s2297 = scalar_lea.sflag [#allocation4], 1
    %2298 = vsyncpa %s2297, 1
    %2299 = vsyncpa [#allocation7], 1
    %s2300 = scalar_lea.sflag [#allocation7], 1
    %2301 = vsyncpa %s2300, 1
    %2302 = vsyncpa [#allocation5], 1
    %s2303 = scalar_lea.sflag [#allocation5], 1
    %2304 = vsyncpa %s2303, 1
    %2305 = vsyncpa [#allocation11], 1
    %s2306 = scalar_lea.sflag [#allocation11], 1
    %2307 = vsyncpa %s2306, 1

</llo_original>
